<compile_context>
chip_gen: v7x
topology: tpu7x:2x2x1
jax: 0.10.0
libtpu: 0.0.40
codegen_flags: <defaults>
</compile_context>

<pallas_src>
import jax
import jax.numpy as jnp
from jax import lax
from jax.experimental import pallas as pl
from jax.experimental.pallas import tpu as pltpu

LANE = 128          # TPU lane width: channel padding granularity
COUT_TILE = 128     # output-channel tile (lane-dense output, N=128 matmuls)


def _round_up(x, m):
    return (x + m - 1) // m * m


def _pick_strip_rows(H, W, cin_p, cout_t):
    """Output rows per grid step, sized so each VMEM buffer stays ~2 MiB."""
    per_row = max((W + 2) * cin_p * 2,   # bf16 input strip, per output row
                  W * cout_t * 4)        # f32 output strip, per output row
    th = max(1, (2 * 1024 * 1024) // per_row)
    th = min(th, H)
    if th >= 8:
        th -= th % 8                     # keep the row count sublane-friendly
    return th


def _conv3x3_relu_kernel(x_ref, w_ref, b_ref, o_ref, acc_ref):
    # x_ref  : (TH+2, W+2, Cin_p)  bf16  padded input strip (2-row halo)
    # w_ref  : (9, Cin_p, CT)      bf16  one 128-wide Cout tile of the weights
    # b_ref  : (1, CT)             f32   bias tile
    # o_ref  : (TH, W, CT)         f32   output strip (lane-dense, CT = 128)
    # acc_ref: (TH*W, CT)          f32   VMEM accumulator scratch
    TH, W, CT = o_ref.shape
    cin_p = x_ref.shape[-1]

    # 3x3 conv as 9 shifted (TH*W, Cin_p) x (Cin_p, CT) MXU matmuls with
    # K = Cin_p (>= 128) and N = CT = 128, accumulated in f32 in VMEM.
    for t in range(9):
        kh, kw = divmod(t, 3)
        patch = x_ref[kh:kh + TH, kw:kw + W, :].reshape(TH * W, cin_p)
        contrib = jnp.dot(patch, w_ref[t], preferred_element_type=jnp.float32)
        if t == 0:
            acc_ref[...] = contrib
        else:
            acc_ref[...] += contrib

    # Bias + ReLU in f32, then a single lane-dense store.
    out = jnp.maximum(acc_ref[...] + b_ref[...], 0.0)
    o_ref[...] = out.reshape(TH, W, CT).astype(o_ref.dtype)


def conv3x3_relu(x_nchw, weight, bias):
    """Forward of the PyTorch `Conv` module (Conv2d(k=3, pad=1) + ReLU).

    x_nchw : (B, Cin, H, W)     float32
    weight : (Cout, Cin, 3, 3)  float32 (PyTorch OIHW layout)
    bias   : (Cout,)            float32
    returns: (B, Cout, H, W)    float32
    """
    B, Cin, H, W = x_nchw.shape
    Cout = weight.shape[0]

    cin_p = _round_up(Cin, LANE)
    cout_p = _round_up(Cout, COUT_TILE)
    n_cout = cout_p // COUT_TILE

    TH = _pick_strip_rows(H, W, cin_p, COUT_TILE)
    n_strips = -(-H // TH)
    Hp = n_strips * TH

    # ---- layout / padding glue (XLA) -------------------------------------
    # NCHW -> NHWC, bf16, zero-pad: +1 spatial halo, H up to Hp, Cin up to cin_p.
    x_nhwc = jnp.transpose(x_nchw, (0, 2, 3, 1)).astype(jnp.bfloat16)
    x_pad = jnp.pad(x_nhwc,
                    ((0, 0), (1, 1 + Hp - H), (1, 1), (0, cin_p - Cin)))
    # Overlapping H-strips with a 2-row halo -> plain Blocked BlockSpecs.
    strips = [x_pad[:, i * TH:i * TH + TH + 2] for i in range(n_strips)]
    x_strips = jnp.stack(strips, axis=1)           # (B, S, TH+2, W+2, cin_p)

    # Weights: OIHW -> (3,3,Cin,Cout) -> pad channels -> (9, cin_p, cout_p) bf16
    w_hwio = jnp.transpose(weight, (2, 3, 1, 0))
    w_pad = jnp.pad(w_hwio,
                    ((0, 0), (0, 0), (0, cin_p - Cin), (0, cout_p - Cout)))
    w_taps = w_pad.reshape(9, cin_p, cout_p).astype(jnp.bfloat16)

    b_pad = jnp.pad(bias, (0, cout_p - Cout)).reshape(1, cout_p)
    b_pad = b_pad.astype(jnp.float32)

    flops = 2 * B * n_strips * n_cout * 9 * (TH * W) * cin_p * COUT_TILE
    bytes_accessed = (x_strips.size * 2 + w_taps.size * 2 + b_pad.size * 4
                      + B * Hp * W * cout_p * 4)

    out_padded = pl.pallas_call(
        _conv3x3_relu_kernel,
        out_shape=jax.ShapeDtypeStruct((B, Hp, W, cout_p), x_nchw.dtype),
        grid_spec=pltpu.PrefetchScalarGridSpec(
            num_scalar_prefetch=0,
            grid=(B, n_strips, n_cout),
            in_specs=[
                # Halo'd activation strip for (batch b, strip s).
                pl.BlockSpec((None, None, TH + 2, W + 2, cin_p),
                             lambda b, s, c: (b, s, 0, 0, 0)),
                # One 128-wide Cout tile of the weights; constant over (b, s)
                # so it is fetched once per Cout tile.
                pl.BlockSpec((9, cin_p, COUT_TILE),
                             lambda b, s, c: (0, 0, c)),
                # Matching bias tile.
                pl.BlockSpec((1, COUT_TILE), lambda b, s, c: (0, c)),
            ],
            out_specs=pl.BlockSpec((None, TH, W, COUT_TILE),
                                   lambda b, s, c: (b, s, 0, c)),
            scratch_shapes=[pltpu.VMEM((TH * W, COUT_TILE), jnp.float32)],
        ),
        compiler_params=pltpu.CompilerParams(
            dimension_semantics=("parallel", "parallel", "parallel")),
        cost_estimate=pl.CostEstimate(
            flops=flops, transcendentals=0, bytes_accessed=bytes_accessed),
    )(x_strips, w_taps, b_pad)

    # Strip the H / Cout padding, back to NCHW.
    out_nhwc = out_padded[:, :H, :, :Cout]
    return jnp.transpose(out_nhwc, (0, 3, 1, 2))


if __name__ == "__main__":
    # Small deterministic example consistent with the module's forward:
    # Conv(ch_in=4, ch_out=8) applied to NCHW input (2, 4, 16, 16).
    B, Cin, Cout, H, W = 2, 4, 8, 16, 16

    key = jax.random.PRNGKey(0)
    kx, kw, kb = jax.random.split(key, 3)

    x = jax.random.normal(kx, (B, Cin, H, W), dtype=jnp.float32)
    fan_in = Cin * 3 * 3
    bound = 1.0 / (fan_in ** 0.5)
    weight = jax.random.uniform(kw, (Cout, Cin, 3, 3), jnp.float32,
                                minval=-bound, maxval=bound)
    bias = jax.random.uniform(kb, (Cout,), jnp.float32,
                              minval=-bound, maxval=bound)

    out = conv3x3_relu(x, weight, bias)
    out = jax.block_until_ready(out)

    # Reference: same conv + bias + ReLU, with activations/weights quantized
    # to bf16 exactly as the kernel does (accumulation stays f32).
    xq = x.astype(jnp.bfloat16).astype(jnp.float32)
    wq = weight.astype(jnp.bfloat16).astype(jnp.float32)
    ref = lax.conv_general_dilated(
        xq, wq, window_strides=(1, 1), padding=((1, 1), (1, 1)),
        dimension_numbers=("NCHW", "OIHW", "NCHW"),
        precision=lax.Precision.HIGHEST)
    ref = jnp.maximum(ref + bias.reshape(1, Cout, 1, 1), 0.0)

    assert out.shape == (B, Cout, H, W)
    assert out.dtype == x.dtype
    max_err = float(jnp.max(jnp.abs(out - ref)))
    assert jnp.allclose(out, ref, atol=2e-3, rtol=2e-3), max_err

    print("KERNEL_OK")
</pallas_src>

<mosaic_0001>
module attributes {stable_mosaic.version = 11 : i64} {
  func.func @_conv3x3_relu_kernel(%arg0: i32, %arg1: i32, %arg2: i32, %arg3: memref<1x1x18x18x128xbf16, #tpu.memory_space<vmem>>, %arg4: memref<9x128x128xbf16, #tpu.memory_space<vmem>>, %arg5: memref<1x128xf32, #tpu.memory_space<vmem>>, %arg6: memref<1x16x16x128xf32, #tpu.memory_space<vmem>>, %arg7: memref<256x128xf32, #tpu.memory_space<vmem>>) attributes {dimension_semantics = [#tpu.dimension_semantics<parallel>, #tpu.dimension_semantics<parallel>, #tpu.dimension_semantics<parallel>], iteration_bounds = array<i64: 2, 1, 1>, scalar_prefetch = 0 : i64, scratch_operands = 1 : i64, tpu.core_type = #tpu.core_type<tc>, window_params = [{transform_indices = @transform_0, window_bounds = array<i64: 1, 1, 18, 18, 128>}, {transform_indices = @transform_1, window_bounds = array<i64: 9, 128, 128>}, {transform_indices = @transform_2, window_bounds = array<i64: 1, 128>}, {transform_indices = @transform_3, window_bounds = array<i64: 1, 16, 16, 128>}]} {
    %c0 = arith.constant 0 : index
    %c0_0 = arith.constant 0 : index
    %c0_1 = arith.constant 0 : index
    %c0_2 = arith.constant 0 : index
    %c0_3 = arith.constant 0 : index
    %0 = vector.load %arg3[%c0, %c0_0, %c0_1, %c0_2, %c0_3] : memref<1x1x18x18x128xbf16, #tpu.memory_space<vmem>>, vector<1x1x16x16x128xbf16>
    %1 = vector.shape_cast %0 : vector<1x1x16x16x128xbf16> to vector<16x16x128xbf16>
    %2 = vector.shape_cast %1 : vector<16x16x128xbf16> to vector<256x128xbf16>
    %c0_4 = arith.constant 0 : index
    %c0_5 = arith.constant 0 : index
    %c0_6 = arith.constant 0 : index
    %3 = vector.load %arg4[%c0_4, %c0_5, %c0_6] : memref<9x128x128xbf16, #tpu.memory_space<vmem>>, vector<1x128x128xbf16>
    %4 = vector.shape_cast %3 : vector<1x128x128xbf16> to vector<128x128xbf16>
    %cst = arith.constant dense<0.000000e+00> : vector<256x128xf32>
    %5 = tpu.matmul %2, %4, %cst {dimension_numbers = #tpu.dot_dimension_numbers<[1], [0], [0], [1], [0, 0, 1, 1], [], []>} : vector<256x128xbf16>, vector<128x128xbf16>, vector<256x128xf32> -> vector<256x128xf32>
    %c0_7 = arith.constant 0 : index
    %c0_8 = arith.constant 0 : index
    %6 = vector.load %arg7[%c0_7, %c0_8] : memref<256x128xf32, #tpu.memory_space<vmem>>, vector<256x128xf32>
    tpu.vector_store %arg7[%c0_7, %c0_8], %5 {strides = array<i32>} : memref<256x128xf32, #tpu.memory_space<vmem>>, vector<256x128xf32>,
    %c0_9 = arith.constant 0 : index
    %c0_10 = arith.constant 0 : index
    %c0_11 = arith.constant 0 : index
    %c1 = arith.constant 1 : index
    %c0_12 = arith.constant 0 : index
    %7 = vector.load %arg3[%c0_9, %c0_10, %c0_11, %c1, %c0_12] : memref<1x1x18x18x128xbf16, #tpu.memory_space<vmem>>, vector<1x1x16x16x128xbf16>
    %8 = vector.shape_cast %7 : vector<1x1x16x16x128xbf16> to vector<16x16x128xbf16>
    %9 = vector.shape_cast %8 : vector<16x16x128xbf16> to vector<256x128xbf16>
    %c1_13 = arith.constant 1 : index
    %c0_14 = arith.constant 0 : index
    %c0_15 = arith.constant 0 : index
    %10 = vector.load %arg4[%c1_13, %c0_14, %c0_15] : memref<9x128x128xbf16, #tpu.memory_space<vmem>>, vector<1x128x128xbf16>
    %11 = vector.shape_cast %10 : vector<1x128x128xbf16> to vector<128x128xbf16>
    %cst_16 = arith.constant dense<0.000000e+00> : vector<256x128xf32>
    %12 = tpu.matmul %9, %11, %cst_16 {dimension_numbers = #tpu.dot_dimension_numbers<[1], [0], [0], [1], [0, 0, 1, 1], [], []>} : vector<256x128xbf16>, vector<128x128xbf16>, vector<256x128xf32> -> vector<256x128xf32>
    %c0_17 = arith.constant 0 : index
    %c0_18 = arith.constant 0 : index
    %13 = vector.load %arg7[%c0_17, %c0_18] : memref<256x128xf32, #tpu.memory_space<vmem>>, vector<256x128xf32>
    %14 = arith.addf %13, %12 : vector<256x128xf32>
    %c0_19 = arith.constant 0 : index
    %c0_20 = arith.constant 0 : index
    %15 = vector.load %arg7[%c0_19, %c0_20] : memref<256x128xf32, #tpu.memory_space<vmem>>, vector<256x128xf32>
    tpu.vector_store %arg7[%c0_19, %c0_20], %14 {strides = array<i32>} : memref<256x128xf32, #tpu.memory_space<vmem>>, vector<256x128xf32>,
    %c0_21 = arith.constant 0 : index
    %c0_22 = arith.constant 0 : index
    %c0_23 = arith.constant 0 : index
    %c2 = arith.constant 2 : index
    %c0_24 = arith.constant 0 : index
    %16 = vector.load %arg3[%c0_21, %c0_22, %c0_23, %c2, %c0_24] : memref<1x1x18x18x128xbf16, #tpu.memory_space<vmem>>, vector<1x1x16x16x128xbf16>
    %17 = vector.shape_cast %16 : vector<1x1x16x16x128xbf16> to vector<16x16x128xbf16>
    %18 = vector.shape_cast %17 : vector<16x16x128xbf16> to vector<256x128xbf16>
    %c2_25 = arith.constant 2 : index
    %c0_26 = arith.constant 0 : index
    %c0_27 = arith.constant 0 : index
    %19 = vector.load %arg4[%c2_25, %c0_26, %c0_27] : memref<9x128x128xbf16, #tpu.memory_space<vmem>>, vector<1x128x128xbf16>
    %20 = vector.shape_cast %19 : vector<1x128x128xbf16> to vector<128x128xbf16>
    %cst_28 = arith.constant dense<0.000000e+00> : vector<256x128xf32>
    %21 = tpu.matmul %18, %20, %cst_28 {dimension_numbers = #tpu.dot_dimension_numbers<[1], [0], [0], [1], [0, 0, 1, 1], [], []>} : vector<256x128xbf16>, vector<128x128xbf16>, vector<256x128xf32> -> vector<256x128xf32>
    %c0_29 = arith.constant 0 : index
    %c0_30 = arith.constant 0 : index
    %22 = vector.load %arg7[%c0_29, %c0_30] : memref<256x128xf32, #tpu.memory_space<vmem>>, vector<256x128xf32>
    %23 = arith.addf %22, %21 : vector<256x128xf32>
    %c0_31 = arith.constant 0 : index
    %c0_32 = arith.constant 0 : index
    %24 = vector.load %arg7[%c0_31, %c0_32] : memref<256x128xf32, #tpu.memory_space<vmem>>, vector<256x128xf32>
    tpu.vector_store %arg7[%c0_31, %c0_32], %23 {strides = array<i32>} : memref<256x128xf32, #tpu.memory_space<vmem>>, vector<256x128xf32>,
    %c0_33 = arith.constant 0 : index
    %c0_34 = arith.constant 0 : index
    %c1_35 = arith.constant 1 : index
    %c0_36 = arith.constant 0 : index
    %c0_37 = arith.constant 0 : index
    %25 = vector.load %arg3[%c0_33, %c0_34, %c1_35, %c0_36, %c0_37] : memref<1x1x18x18x128xbf16, #tpu.memory_space<vmem>>, vector<1x1x16x16x128xbf16>
    %26 = vector.shape_cast %25 : vector<1x1x16x16x128xbf16> to vector<16x16x128xbf16>
    %27 = vector.shape_cast %26 : vector<16x16x128xbf16> to vector<256x128xbf16>
    %c3 = arith.constant 3 : index
    %c0_38 = arith.constant 0 : index
    %c0_39 = arith.constant 0 : index
    %28 = vector.load %arg4[%c3, %c0_38, %c0_39] : memref<9x128x128xbf16, #tpu.memory_space<vmem>>, vector<1x128x128xbf16>
    %29 = vector.shape_cast %28 : vector<1x128x128xbf16> to vector<128x128xbf16>
    %cst_40 = arith.constant dense<0.000000e+00> : vector<256x128xf32>
    %30 = tpu.matmul %27, %29, %cst_40 {dimension_numbers = #tpu.dot_dimension_numbers<[1], [0], [0], [1], [0, 0, 1, 1], [], []>} : vector<256x128xbf16>, vector<128x128xbf16>, vector<256x128xf32> -> vector<256x128xf32>
    %c0_41 = arith.constant 0 : index
    %c0_42 = arith.constant 0 : index
    %31 = vector.load %arg7[%c0_41, %c0_42] : memref<256x128xf32, #tpu.memory_space<vmem>>, vector<256x128xf32>
    %32 = arith.addf %31, %30 : vector<256x128xf32>
    %c0_43 = arith.constant 0 : index
    %c0_44 = arith.constant 0 : index
    %33 = vector.load %arg7[%c0_43, %c0_44] : memref<256x128xf32, #tpu.memory_space<vmem>>, vector<256x128xf32>
    tpu.vector_store %arg7[%c0_43, %c0_44], %32 {strides = array<i32>} : memref<256x128xf32, #tpu.memory_space<vmem>>, vector<256x128xf32>,
    %c0_45 = arith.constant 0 : index
    %c0_46 = arith.constant 0 : index
    %c1_47 = arith.constant 1 : index
    %c1_48 = arith.constant 1 : index
    %c0_49 = arith.constant 0 : index
    %34 = vector.load %arg3[%c0_45, %c0_46, %c1_47, %c1_48, %c0_49] : memref<1x1x18x18x128xbf16, #tpu.memory_space<vmem>>, vector<1x1x16x16x128xbf16>
    %35 = vector.shape_cast %34 : vector<1x1x16x16x128xbf16> to vector<16x16x128xbf16>
    %36 = vector.shape_cast %35 : vector<16x16x128xbf16> to vector<256x128xbf16>
    %c4 = arith.constant 4 : index
    %c0_50 = arith.constant 0 : index
    %c0_51 = arith.constant 0 : index
    %37 = vector.load %arg4[%c4, %c0_50, %c0_51] : memref<9x128x128xbf16, #tpu.memory_space<vmem>>, vector<1x128x128xbf16>
    %38 = vector.shape_cast %37 : vector<1x128x128xbf16> to vector<128x128xbf16>
    %cst_52 = arith.constant dense<0.000000e+00> : vector<256x128xf32>
    %39 = tpu.matmul %36, %38, %cst_52 {dimension_numbers = #tpu.dot_dimension_numbers<[1], [0], [0], [1], [0, 0, 1, 1], [], []>} : vector<256x128xbf16>, vector<128x128xbf16>, vector<256x128xf32> -> vector<256x128xf32>
    %c0_53 = arith.constant 0 : index
    %c0_54 = arith.constant 0 : index
    %40 = vector.load %arg7[%c0_53, %c0_54] : memref<256x128xf32, #tpu.memory_space<vmem>>, vector<256x128xf32>
    %41 = arith.addf %40, %39 : vector<256x128xf32>
    %c0_55 = arith.constant 0 : index
    %c0_56 = arith.constant 0 : index
    %42 = vector.load %arg7[%c0_55, %c0_56] : memref<256x128xf32, #tpu.memory_space<vmem>>, vector<256x128xf32>
    tpu.vector_store %arg7[%c0_55, %c0_56], %41 {strides = array<i32>} : memref<256x128xf32, #tpu.memory_space<vmem>>, vector<256x128xf32>,
    %c0_57 = arith.constant 0 : index
    %c0_58 = arith.constant 0 : index
    %c1_59 = arith.constant 1 : index
    %c2_60 = arith.constant 2 : index
    %c0_61 = arith.constant 0 : index
    %43 = vector.load %arg3[%c0_57, %c0_58, %c1_59, %c2_60, %c0_61] : memref<1x1x18x18x128xbf16, #tpu.memory_space<vmem>>, vector<1x1x16x16x128xbf16>
    %44 = vector.shape_cast %43 : vector<1x1x16x16x128xbf16> to vector<16x16x128xbf16>
    %45 = vector.shape_cast %44 : vector<16x16x128xbf16> to vector<256x128xbf16>
    %c5 = arith.constant 5 : index
    %c0_62 = arith.constant 0 : index
    %c0_63 = arith.constant 0 : index
    %46 = vector.load %arg4[%c5, %c0_62, %c0_63] : memref<9x128x128xbf16, #tpu.memory_space<vmem>>, vector<1x128x128xbf16>
    %47 = vector.shape_cast %46 : vector<1x128x128xbf16> to vector<128x128xbf16>
    %cst_64 = arith.constant dense<0.000000e+00> : vector<256x128xf32>
    %48 = tpu.matmul %45, %47, %cst_64 {dimension_numbers = #tpu.dot_dimension_numbers<[1], [0], [0], [1], [0, 0, 1, 1], [], []>} : vector<256x128xbf16>, vector<128x128xbf16>, vector<256x128xf32> -> vector<256x128xf32>
    %c0_65 = arith.constant 0 : index
    %c0_66 = arith.constant 0 : index
    %49 = vector.load %arg7[%c0_65, %c0_66] : memref<256x128xf32, #tpu.memory_space<vmem>>, vector<256x128xf32>
    %50 = arith.addf %49, %48 : vector<256x128xf32>
    %c0_67 = arith.constant 0 : index
    %c0_68 = arith.constant 0 : index
    %51 = vector.load %arg7[%c0_67, %c0_68] : memref<256x128xf32, #tpu.memory_space<vmem>>, vector<256x128xf32>
    tpu.vector_store %arg7[%c0_67, %c0_68], %50 {strides = array<i32>} : memref<256x128xf32, #tpu.memory_space<vmem>>, vector<256x128xf32>,
    %c0_69 = arith.constant 0 : index
    %c0_70 = arith.constant 0 : index
    %c2_71 = arith.constant 2 : index
    %c0_72 = arith.constant 0 : index
    %c0_73 = arith.constant 0 : index
    %52 = vector.load %arg3[%c0_69, %c0_70, %c2_71, %c0_72, %c0_73] : memref<1x1x18x18x128xbf16, #tpu.memory_space<vmem>>, vector<1x1x16x16x128xbf16>
    %53 = vector.shape_cast %52 : vector<1x1x16x16x128xbf16> to vector<16x16x128xbf16>
    %54 = vector.shape_cast %53 : vector<16x16x128xbf16> to vector<256x128xbf16>
    %c6 = arith.constant 6 : index
    %c0_74 = arith.constant 0 : index
    %c0_75 = arith.constant 0 : index
    %55 = vector.load %arg4[%c6, %c0_74, %c0_75] : memref<9x128x128xbf16, #tpu.memory_space<vmem>>, vector<1x128x128xbf16>
    %56 = vector.shape_cast %55 : vector<1x128x128xbf16> to vector<128x128xbf16>
    %cst_76 = arith.constant dense<0.000000e+00> : vector<256x128xf32>
    %57 = tpu.matmul %54, %56, %cst_76 {dimension_numbers = #tpu.dot_dimension_numbers<[1], [0], [0], [1], [0, 0, 1, 1], [], []>} : vector<256x128xbf16>, vector<128x128xbf16>, vector<256x128xf32> -> vector<256x128xf32>
    %c0_77 = arith.constant 0 : index
    %c0_78 = arith.constant 0 : index
    %58 = vector.load %arg7[%c0_77, %c0_78] : memref<256x128xf32, #tpu.memory_space<vmem>>, vector<256x128xf32>
    %59 = arith.addf %58, %57 : vector<256x128xf32>
    %c0_79 = arith.constant 0 : index
    %c0_80 = arith.constant 0 : index
    %60 = vector.load %arg7[%c0_79, %c0_80] : memref<256x128xf32, #tpu.memory_space<vmem>>, vector<256x128xf32>
    tpu.vector_store %arg7[%c0_79, %c0_80], %59 {strides = array<i32>} : memref<256x128xf32, #tpu.memory_space<vmem>>, vector<256x128xf32>,
    %c0_81 = arith.constant 0 : index
    %c0_82 = arith.constant 0 : index
    %c2_83 = arith.constant 2 : index
    %c1_84 = arith.constant 1 : index
    %c0_85 = arith.constant 0 : index
    %61 = vector.load %arg3[%c0_81, %c0_82, %c2_83, %c1_84, %c0_85] : memref<1x1x18x18x128xbf16, #tpu.memory_space<vmem>>, vector<1x1x16x16x128xbf16>
    %62 = vector.shape_cast %61 : vector<1x1x16x16x128xbf16> to vector<16x16x128xbf16>
    %63 = vector.shape_cast %62 : vector<16x16x128xbf16> to vector<256x128xbf16>
    %c7 = arith.constant 7 : index
    %c0_86 = arith.constant 0 : index
    %c0_87 = arith.constant 0 : index
    %64 = vector.load %arg4[%c7, %c0_86, %c0_87] : memref<9x128x128xbf16, #tpu.memory_space<vmem>>, vector<1x128x128xbf16>
    %65 = vector.shape_cast %64 : vector<1x128x128xbf16> to vector<128x128xbf16>
    %cst_88 = arith.constant dense<0.000000e+00> : vector<256x128xf32>
    %66 = tpu.matmul %63, %65, %cst_88 {dimension_numbers = #tpu.dot_dimension_numbers<[1], [0], [0], [1], [0, 0, 1, 1], [], []>} : vector<256x128xbf16>, vector<128x128xbf16>, vector<256x128xf32> -> vector<256x128xf32>
    %c0_89 = arith.constant 0 : index
    %c0_90 = arith.constant 0 : index
    %67 = vector.load %arg7[%c0_89, %c0_90] : memref<256x128xf32, #tpu.memory_space<vmem>>, vector<256x128xf32>
    %68 = arith.addf %67, %66 : vector<256x128xf32>
    %c0_91 = arith.constant 0 : index
    %c0_92 = arith.constant 0 : index
    %69 = vector.load %arg7[%c0_91, %c0_92] : memref<256x128xf32, #tpu.memory_space<vmem>>, vector<256x128xf32>
    tpu.vector_store %arg7[%c0_91, %c0_92], %68 {strides = array<i32>} : memref<256x128xf32, #tpu.memory_space<vmem>>, vector<256x128xf32>,
    %c0_93 = arith.constant 0 : index
    %c0_94 = arith.constant 0 : index
    %c2_95 = arith.constant 2 : index
    %c2_96 = arith.constant 2 : index
    %c0_97 = arith.constant 0 : index
    %70 = vector.load %arg3[%c0_93, %c0_94, %c2_95, %c2_96, %c0_97] : memref<1x1x18x18x128xbf16, #tpu.memory_space<vmem>>, vector<1x1x16x16x128xbf16>
    %71 = vector.shape_cast %70 : vector<1x1x16x16x128xbf16> to vector<16x16x128xbf16>
    %72 = vector.shape_cast %71 : vector<16x16x128xbf16> to vector<256x128xbf16>
    %c8 = arith.constant 8 : index
    %c0_98 = arith.constant 0 : index
    %c0_99 = arith.constant 0 : index
    %73 = vector.load %arg4[%c8, %c0_98, %c0_99] : memref<9x128x128xbf16, #tpu.memory_space<vmem>>, vector<1x128x128xbf16>
    %74 = vector.shape_cast %73 : vector<1x128x128xbf16> to vector<128x128xbf16>
    %cst_100 = arith.constant dense<0.000000e+00> : vector<256x128xf32>
    %75 = tpu.matmul %72, %74, %cst_100 {dimension_numbers = #tpu.dot_dimension_numbers<[1], [0], [0], [1], [0, 0, 1, 1], [], []>} : vector<256x128xbf16>, vector<128x128xbf16>, vector<256x128xf32> -> vector<256x128xf32>
    %c0_101 = arith.constant 0 : index
    %c0_102 = arith.constant 0 : index
    %76 = vector.load %arg7[%c0_101, %c0_102] : memref<256x128xf32, #tpu.memory_space<vmem>>, vector<256x128xf32>
    %77 = arith.addf %76, %75 : vector<256x128xf32>
    %c0_103 = arith.constant 0 : index
    %c0_104 = arith.constant 0 : index
    %78 = vector.load %arg7[%c0_103, %c0_104] : memref<256x128xf32, #tpu.memory_space<vmem>>, vector<256x128xf32>
    tpu.vector_store %arg7[%c0_103, %c0_104], %77 {strides = array<i32>} : memref<256x128xf32, #tpu.memory_space<vmem>>, vector<256x128xf32>,
    %c0_105 = arith.constant 0 : index
    %c0_106 = arith.constant 0 : index
    %79 = vector.load %arg7[%c0_105, %c0_106] : memref<256x128xf32, #tpu.memory_space<vmem>>, vector<256x128xf32>
    %c0_107 = arith.constant 0 : index
    %c0_108 = arith.constant 0 : index
    %80 = vector.load %arg5[%c0_107, %c0_108] : memref<1x128xf32, #tpu.memory_space<vmem>>, vector<1x128xf32>
    %81 = vector.broadcast %80 : vector<1x128xf32> to vector<256x128xf32>
    %82 = arith.addf %79, %81 : vector<256x128xf32>
    %cst_109 = arith.constant 0.000000e+00 : f32
    %83 = vector.broadcast %cst_109 : f32 to vector<256x128xf32>
    %84 = arith.maximumf %82, %83 : vector<256x128xf32>
    %85 = vector.shape_cast %84 : vector<256x128xf32> to vector<16x16x128xf32>
    %c0_110 = arith.constant 0 : index
    %c0_111 = arith.constant 0 : index
    %c0_112 = arith.constant 0 : index
    %c0_113 = arith.constant 0 : index
    %86 = vector.load %arg6[%c0_110, %c0_111, %c0_112, %c0_113] : memref<1x16x16x128xf32, #tpu.memory_space<vmem>>, vector<1x16x16x128xf32>
    %87 = vector.shape_cast %86 : vector<1x16x16x128xf32> to vector<16x16x128xf32>
    %88 = vector.shape_cast %85 : vector<16x16x128xf32> to vector<1x16x16x128xf32>
    tpu.vector_store %arg6[%c0_110, %c0_111, %c0_112, %c0_113], %88 {strides = array<i32>} : memref<1x16x16x128xf32, #tpu.memory_space<vmem>>, vector<1x16x16x128xf32>,
    return
  }
  func.func @transform_0(%arg0: i32, %arg1: i32, %arg2: i32) -> (i32, i32, i32, i32, i32) {
    %c0_i32 = arith.constant 0 : i32
    %c0_i32_0 = arith.constant 0 : i32
    %c0_i32_1 = arith.constant 0 : i32
    %c0_i32_2 = arith.constant 0 : i32
    return %arg0, %arg1, %c0_i32, %c0_i32_0, %c0_i32_1 : i32, i32, i32, i32, i32
  }
  func.func @transform_1(%arg0: i32, %arg1: i32, %arg2: i32) -> (i32, i32, i32) {
    %c0_i32 = arith.constant 0 : i32
    %c0_i32_0 = arith.constant 0 : i32
    %c0_i32_1 = arith.constant 0 : i32
    return %c0_i32, %c0_i32_0, %arg2 : i32, i32, i32
  }
  func.func @transform_2(%arg0: i32, %arg1: i32, %arg2: i32) -> (i32, i32) {
    %c0_i32 = arith.constant 0 : i32
    %c0_i32_0 = arith.constant 0 : i32
    return %c0_i32, %arg2 : i32, i32
  }
  func.func @transform_3(%arg0: i32, %arg1: i32, %arg2: i32) -> (i32, i32, i32, i32) {
    %c0_i32 = arith.constant 0 : i32
    %c0_i32_0 = arith.constant 0 : i32
    return %arg0, %arg1, %c0_i32, %arg2 : i32, i32, i32, i32
  }
}

</mosaic_0001>

<llo_original>
// kernel: tpu_custom_call.1
$region0: #{tpu_custom_call.1}
  #allocation0 [shape = 'u32[]', space=smem, size = 0x4, offset = 0x4, fixed_abs, tag = 'smem constant byte address 0x4 - core index']
  #allocation1 [shape = 'u32[144,128]{1,0:T(1,128)}', space=vmem, size = 0x12000, scoped, tag = 'internal scratch']
  #allocation2 [shape = 'f32[256,128]{1,0:T(8,128)}', space=vmem, size = 0x20000, scoped, tag = 'scratch operand']
  %s0 = inlined_call_operand.vmem [shape: bf16[2,1,18,18,128], index: 0, kind: input, shape index: {}]
  %s1 = inlined_call_operand.vmem [shape: bf16[9,128,128], index: 1, kind: input, shape index: {}]
  %s2 = inlined_call_operand.vmem [shape: f32[1,128], index: 2, kind: input, shape index: {}]
  %s3 = inlined_call_operand.hbm [shape: f32[2,16,16,128], index: 3, kind: output, shape index: {}]
  %s4 = sld [smem:[#allocation0]]
  $region45: #{tpu_custom_call.1} parent=0
    _
  %s6 = ssub.s32 1, %s4
  %s7 = scalar_select 0, %s6, %s4
  $region1: #{tpu_custom_call.1} parent=0
    #allocation3 [shape = 'u8[262144]{0}', space=vmem, size = 0x40000, scoped, tag = 'output window, operand 0']
    #allocation4 [shape = 's32[2]{0}', space=sflag, size = 0x8, scoped, tag = 'scoped memory for tpu_custom_call.1']
    %8 = vsyncpa [#allocation4], 0
    %s9 = scalar_lea.sflag [#allocation4], 1
    %10 = vsyncpa %s9, 0
    loop: start=0, step=1, limit=4
    $region2: #{tpu_custom_call.1} parent=1 // loop_pre_header
      _
    $region3: #{tpu_custom_call.1} parent=1 // loop_header
      %s12 = sphi 0, %s16
      %p13 = scmp.ge.s32.totalorder %s12, 4
      %s19 = sphi 0, %s38
      %s20 = sphi 0, %s34
      %s21 = sphi 0, %s30
      %s22 = sphi 0, %s19
      %s23 = sphi 0, %s20
      %s24 = sphi 0, %s21
      %s25 = sphi 0, %s22
      %s26 = sphi 0, %s23
      %s27 = sphi 0, %s24
      %s43 = sphi 0, %s45
      %s46 = sphi 0, %s43
      %s47 = sphi 0, %s46
      %s63 = sphi 0, %s47
      %s69 = sphi 0, %s71
      %s72 = sphi 0, %s69
      %s73 = sphi 0, %s72
      %s89 = sphi 0, %s73
      %s95 = sphi 0, %s97
      %s98 = sphi 0, %s95
      %s99 = sphi 0, %s98
      %s115 = sphi 0, %s99
      %s125 = sphi 0, %s127
      %s128 = sphi 0, %s125
      %s129 = sphi 0, %s128
      %s145 = sphi 0, %s129
    $region4: #{tpu_custom_call.1} parent=1 // loop_header_branch
      %15 = sbr.rel (%p13) target = $region8
    $region5: #{tpu_custom_call.1} parent=1 // loop_body
      %s17 = ssub.s32 %s12, 1
      %s18 = ssub.s32 %s12, 2
      %s28 = sadd.s32 1, %s21
      %p29 = scmp.ge.s32.totalorder %s28, 1
      %s30 = scalar_select %p29, 0, %s28
      %s31 = sadd.s32 1, %s20
      %s32 = scalar_select %p29, %s31, %s20
      %p33 = scmp.ge.s32.totalorder %s32, 1
      %s34 = scalar_select %p33, 0, %s32
      %s35 = sadd.s32 1, %s19
      %s36 = scalar_select %p33, %s35, %s19
      %p37 = scmp.ge.s32.totalorder %s36, 2
      %s38 = scalar_select %p37, 0, %s36
      %s39 = ssub.s32 %s19, %s38
      %s40 = ssub.s32 %s20, %s34
      %s41 = sor.u32 %s39, %s40
      %p42 = scmp.eq.s32.totalorder %s41, 0
      %s44 = sadd.s32 %s43, 1
      %s45 = scalar_select %p42, %s43, %s44
      %p48 = pneg %p42
      %p49 = scmp.eq.s32.totalorder %s12, 1
      %p50 = por %p48, %p49
      %p51 = scmp.ne.s32.totalorder %s43, %s46
      %p52 = scmp.eq.s32.totalorder %s12, 0
      %p53 = por %p51, %p52
      %p54 = scmp.ne.s32.totalorder %s43, %s46
      %p55 = scmp.eq.s32.totalorder %s17, 1
      %p56 = por %p54, %p55
      %p57 = scmp.ne.s32.totalorder %s46, %s47
      %p58 = scmp.eq.s32.totalorder %s17, 0
      %p59 = por %p57, %p58
      %p60 = scmp.ne.s32.totalorder %s46, %s47
      %p61 = scmp.eq.s32.totalorder %s18, 1
      %p62 = por %p60, %p61
      %p64 = scmp.ne.s32.totalorder %s47, %s63
      %p65 = scmp.eq.s32.totalorder %s18, 0
      %p66 = por %p64, %p65
      %s67 = ssub.s32 %s21, %s30
      %p68 = scmp.eq.s32.totalorder %s67, 0
      %s70 = sadd.s32 %s69, 1
      %s71 = scalar_select %p68, %s69, %s70
      %p74 = pneg %p68
      %p75 = scmp.eq.s32.totalorder %s12, 1
      %p76 = por %p74, %p75
      %p77 = scmp.ne.s32.totalorder %s69, %s72
      %p78 = scmp.eq.s32.totalorder %s12, 0
      %p79 = por %p77, %p78
      %p80 = scmp.ne.s32.totalorder %s69, %s72
      %p81 = scmp.eq.s32.totalorder %s17, 1
      %p82 = por %p80, %p81
      %p83 = scmp.ne.s32.totalorder %s72, %s73
      %p84 = scmp.eq.s32.totalorder %s17, 0
      %p85 = por %p83, %p84
      %p86 = scmp.ne.s32.totalorder %s72, %s73
      %p87 = scmp.eq.s32.totalorder %s18, 1
      %p88 = por %p86, %p87
      %p90 = scmp.ne.s32.totalorder %s73, %s89
      %p91 = scmp.eq.s32.totalorder %s18, 0
      %p92 = por %p90, %p91
      %s93 = ssub.s32 %s21, %s30
      %p94 = scmp.eq.s32.totalorder %s93, 0
      %s96 = sadd.s32 %s95, 1
      %s97 = scalar_select %p94, %s95, %s96
      %p100 = pneg %p94
      %p101 = scmp.eq.s32.totalorder %s12, 1
      %p102 = por %p100, %p101
      %p103 = scmp.ne.s32.totalorder %s95, %s98
      %p104 = scmp.eq.s32.totalorder %s12, 0
      %p105 = por %p103, %p104
      %p106 = scmp.ne.s32.totalorder %s95, %s98
      %p107 = scmp.eq.s32.totalorder %s17, 1
      %p108 = por %p106, %p107
      %p109 = scmp.ne.s32.totalorder %s98, %s99
      %p110 = scmp.eq.s32.totalorder %s17, 0
      %p111 = por %p109, %p110
      %p112 = scmp.ne.s32.totalorder %s98, %s99
      %p113 = scmp.eq.s32.totalorder %s18, 1
      %p114 = por %p112, %p113
      %p116 = scmp.ne.s32.totalorder %s99, %s115
      %p117 = scmp.eq.s32.totalorder %s18, 0
      %p118 = por %p116, %p117
      %s119 = ssub.s32 %s19, %s38
      %s120 = ssub.s32 %s20, %s34
      %s121 = sor.u32 %s119, %s120
      %s122 = ssub.s32 %s21, %s30
      %s123 = sor.u32 %s121, %s122
      %p124 = scmp.eq.s32.totalorder %s123, 0
      %s126 = sadd.s32 %s125, 1
      %s127 = scalar_select %p124, %s125, %s126
      %p130 = pneg %p124
      %p131 = scmp.eq.s32.totalorder %s12, 1
      %p132 = por %p130, %p131
      %p133 = scmp.ne.s32.totalorder %s125, %s128
      %p134 = scmp.eq.s32.totalorder %s12, 0
      %p135 = por %p133, %p134
      %p136 = scmp.ne.s32.totalorder %s125, %s128
      %p137 = scmp.eq.s32.totalorder %s17, 1
      %p138 = por %p136, %p137
      %p139 = scmp.ne.s32.totalorder %s128, %s129
      %p140 = scmp.eq.s32.totalorder %s17, 0
      %p141 = por %p139, %p140
      %p142 = scmp.ne.s32.totalorder %s128, %s129
      %p143 = scmp.eq.s32.totalorder %s18, 1
      %p144 = por %p142, %p143
      %p146 = scmp.ne.s32.totalorder %s129, %s145
      %p147 = scmp.eq.s32.totalorder %s18, 0
      %p148 = por %p146, %p147
      %p149 = scmp.le.s32.totalorder 1, %s12
      %p150 = scmp.lt.s32.totalorder %s12, 3
      %p151 = pnand %p149, %p150
      %p152 = pneg %p151
      // Predicated region
      $region9: #{tpu_custom_call.1} parent=5 // pred_check
        _
      $region10: #{tpu_custom_call.1} parent=5 // pred_check_branch
        %154 = sbr.rel (%p151) target = $region12
      $region11: #{tpu_custom_call.1} parent=5 // pred_region
        %s155 = ssub.s32 %s12, 1
        // Predicated region
        $region13: #{tpu_custom_call.1} parent=11 // pred_check
          %p156 = pneg %p85
        $region14: #{tpu_custom_call.1} parent=11 // pred_check_branch
          %158 = sbr.rel (%p156) target = $region16
        $region15: #{tpu_custom_call.1} parent=11 // pred_region
          %p159 = scmp.lt.s32.totalorder %s24, 0
          %s160 = scalar_select %p159, %s24, 0
          %s161 = smul.addr %s160, 4
          %s162 = scalar_lea.vmem %s1, %s161
        $region16: #{tpu_custom_call.1} parent=11 // pred_fallthru
          _
        // Predicated region
        $region17: #{tpu_custom_call.1} parent=11 // pred_check
          %p163 = pneg %p111
        $region18: #{tpu_custom_call.1} parent=11 // pred_check_branch
          %165 = sbr.rel (%p163) target = $region20
        $region19: #{tpu_custom_call.1} parent=11 // pred_region
          %p166 = scmp.lt.s32.totalorder %s24, 0
          %s167 = scalar_select %p166, %s24, 0
          %s168 = scalar_lea.vmem %s2, %s167
        $region20: #{tpu_custom_call.1} parent=11 // pred_fallthru
          _
      $region12: #{tpu_custom_call.1} parent=5 // pred_fallthru
        _
      %p169 = scmp.lt.s32.totalorder %s12, 2
      // Predicated region
      $region21: #{tpu_custom_call.1} parent=5 // pred_check
        %p170 = pneg %p169
      $region22: #{tpu_custom_call.1} parent=5 // pred_check_branch
        %172 = sbr.rel (%p170) target = $region24
      $region23: #{tpu_custom_call.1} parent=5 // pred_region
        // Predicated region
        $region25: #{tpu_custom_call.1} parent=23 // pred_check
          %p173 = pneg %p53
        $region26: #{tpu_custom_call.1} parent=23 // pred_check_branch
          %175 = sbr.rel (%p173) target = $region28
        $region27: #{tpu_custom_call.1} parent=23 // pred_region
          %p176 = scmp.lt.s32.totalorder %s19, 1
          %s177 = scalar_select %p176, %s19, 1
          %p178 = scmp.lt.s32.totalorder %s20, 0
          %s179 = scalar_select %p178, %s20, 0
          %s180 = smul.addr %s179, 54
          %s181 = smul.addr %s177, 54
          %s182 = sadd.s32 %s180, %s181
          %s183 = smul.addr %s182, 4
          %s184 = scalar_lea.vmem %s0, %s183
        $region28: #{tpu_custom_call.1} parent=23 // pred_fallthru
          _
      $region24: #{tpu_custom_call.1} parent=5 // pred_fallthru
        _
      %p185 = scmp.le.s32.totalorder 1, %s12
      %p186 = scmp.lt.s32.totalorder %s12, 3
      %p187 = pnand %p185, %p186
      %p188 = pneg %p187
      // Predicated region
      $region29: #{tpu_custom_call.1} parent=5 // pred_check
        _
      $region30: #{tpu_custom_call.1} parent=5 // pred_check_branch
        %190 = sbr.rel (%p187) target = $region32
      $region31: #{tpu_custom_call.1} parent=5 // pred_region
        %s191 = ssub.s32 %s12, 1
        %p192 = scmp.lt.s32.totalorder %s22, 1
        %s193 = scalar_select %p192, %s22, 1
        %p194 = scmp.lt.s32.totalorder %s23, 0
        %s195 = scalar_select %p194, %s23, 0
        %s196 = smul.addr %s195, 54
        %s197 = smul.addr %s193, 54
        %s198 = sadd.s32 %s196, %s197
        %s199 = smul.addr %s198, 4
        %s200 = scalar_lea.vmem %s0, %s199
        %p201 = pneg %p59
        %p202 = pneg %p56
        %p203 = scmp.lt.s32.totalorder %s24, 0
        %s204 = scalar_select %p203, %s24, 0
        %s205 = smul.addr %s204, 4
        %s206 = scalar_lea.vmem %s1, %s205
        %p207 = pneg %p85
        %p208 = pneg %p82
        %p209 = scmp.lt.s32.totalorder %s24, 0
        %s210 = scalar_select %p209, %s24, 0
        %s211 = scalar_lea.vmem %s2, %s210
        %p212 = pneg %p111
        %p213 = pneg %p108
        %p214 = pneg %p141
        %p215 = pneg %p138
        %s216 = sand.u32 %s128, 1
        %s217 = scalar_lea.sflag [#allocation4], %s216
        %s218 = sand.u32 %s128, 1
        %s219 = smul.addr %s218, 256
        %s220 = scalar_lea.vmem [#allocation3], %s219
        %p221 = scmp.lt.s32.totalorder %s22, 1
        %s222 = scalar_select %p221, %s22, 1
        %p223 = scmp.lt.s32.totalorder %s23, 0
        %s224 = scalar_select %p223, %s23, 0
        %s225 = smul.addr %s224, 54
        %s226 = smul.addr %s222, 54
        %s227 = sadd.s32 %s225, %s226
        %s228 = smul.addr %s227, 4
        %s229 = scalar_lea.vmem %s0, %s228
        %p230 = scmp.lt.s32.totalorder %s24, 0
        %s231 = scalar_select %p230, %s24, 0
        %s232 = smul.addr %s231, 4
        %s233 = scalar_lea.vmem %s1, %s232
        %p234 = scmp.lt.s32.totalorder %s24, 0
        %s235 = scalar_select %p234, %s24, 0
        %s236 = scalar_lea.vmem %s2, %s235
        %s237 = smul.u32 16, %s23
        %v239 = vld [vmem:[%s229] sm:$0xf]
        %v240 = vld [vmem:[%s229 + $0x4] sm:$0xf]
        %v241 = vld [vmem:[%s229 + $0xc] sm:$0xf]
        %v242 = vld [vmem:[%s229 + $0x10] sm:$0xf]
        %v243 = vld [vmem:[%s229 + $0x18] sm:$0xf]
        %v244 = vld [vmem:[%s229 + $0x1c] sm:$0xf]
        %v245 = vld [vmem:[%s229 + $0x24] sm:$0xf]
        %v246 = vld [vmem:[%s229 + $0x28] sm:$0xf]
        %v247 = vld [vmem:[%s229 + $0x30] sm:$0xf]
        %v248 = vld [vmem:[%s229 + $0x34] sm:$0xf]
        %v249 = vld [vmem:[%s229 + $0x3c] sm:$0xf]
        %v250 = vld [vmem:[%s229 + $0x40] sm:$0xf]
        %v251 = vld [vmem:[%s229 + $0x48] sm:$0xf]
        %v252 = vld [vmem:[%s229 + $0x4c] sm:$0xf]
        %v253 = vld [vmem:[%s229 + $0x54] sm:$0xf]
        %v254 = vld [vmem:[%s229 + $0x58] sm:$0xf]
        %v255 = vld [vmem:[%s229 + $0x60] sm:$0xf]
        %v256 = vld [vmem:[%s229 + $0x64] sm:$0xf]
        %v257 = vld [vmem:[%s229 + $0x6c] sm:$0xf]
        %v258 = vld [vmem:[%s229 + $0x70] sm:$0xf]
        %v259 = vld [vmem:[%s229 + $0x78] sm:$0xf]
        %v260 = vld [vmem:[%s229 + $0x7c] sm:$0xf]
        %v261 = vld [vmem:[%s229 + $0x84] sm:$0xf]
        %v262 = vld [vmem:[%s229 + $0x88] sm:$0xf]
        %v263 = vld [vmem:[%s229 + $0x90] sm:$0xf]
        %v264 = vld [vmem:[%s229 + $0x94] sm:$0xf]
        %v265 = vld [vmem:[%s229 + $0x9c] sm:$0xf]
        %v266 = vld [vmem:[%s229 + $0xa0] sm:$0xf]
        %v267 = vld [vmem:[%s229 + $0xa8] sm:$0xf]
        %v268 = vld [vmem:[%s229 + $0xac] sm:$0xf]
        %v269 = vld [vmem:[%s229 + $0xb4] sm:$0xf]
        %v270 = vld [vmem:[%s229 + $0xb8] sm:$0xf]
        %v271 = vld [vmem:[%s233] sm:$0xf]
        %v272 = vld [vmem:[%s233 + $0x4] sm:$0xf]
        %v273 = vld [vmem:[%s233 + $0x8] sm:$0xf]
        %v274 = vld [vmem:[%s233 + $0xc] sm:$0xf]
        %v275 = vld [vmem:[%s233 + $0x10] sm:$0xf]
        %v276 = vld [vmem:[%s233 + $0x14] sm:$0xf]
        %v277 = vld [vmem:[%s233 + $0x18] sm:$0xf]
        %v278 = vld [vmem:[%s233 + $0x1c] sm:$0xf]
        %v279 = vld [vmem:[%s233 + $0x20] sm:$0xf]
        %v280 = vld [vmem:[%s233 + $0x24] sm:$0xf]
        %v281 = vld [vmem:[%s233 + $0x28] sm:$0xf]
        %v282 = vld [vmem:[%s233 + $0x2c] sm:$0xf]
        %v283 = vld [vmem:[%s233 + $0x30] sm:$0xf]
        %v284 = vld [vmem:[%s233 + $0x34] sm:$0xf]
        %v285 = vld [vmem:[%s233 + $0x38] sm:$0xf]
        %v286 = vld [vmem:[%s233 + $0x3c] sm:$0xf]
        %v319 = vunpack.c.l.b16 %v239
        %v320 = vunpack.c.l.b16 %v240
        %v321 = vunpack.c.l.b16 %v241
        %v322 = vunpack.c.l.b16 %v242
        %v323 = vunpack.c.l.b16 %v243
        %v324 = vunpack.c.l.b16 %v244
        %v325 = vunpack.c.l.b16 %v245
        %v326 = vunpack.c.l.b16 %v246
        %v327 = vunpack.c.l.b16 %v247
        %v328 = vunpack.c.l.b16 %v248
        %v329 = vunpack.c.l.b16 %v249
        %v330 = vunpack.c.l.b16 %v250
        %v331 = vunpack.c.l.b16 %v251
        %v332 = vunpack.c.l.b16 %v252
        %v333 = vunpack.c.l.b16 %v253
        %v334 = vunpack.c.l.b16 %v254
        %v335 = vunpack.c.l.b16 %v255
        %v336 = vunpack.c.l.b16 %v256
        %v337 = vunpack.c.l.b16 %v257
        %v338 = vunpack.c.l.b16 %v258
        %v339 = vunpack.c.l.b16 %v259
        %v340 = vunpack.c.l.b16 %v260
        %v341 = vunpack.c.l.b16 %v261
        %v342 = vunpack.c.l.b16 %v262
        %v343 = vunpack.c.l.b16 %v263
        %v344 = vunpack.c.l.b16 %v264
        %v345 = vunpack.c.l.b16 %v265
        %v346 = vunpack.c.l.b16 %v266
        %v347 = vunpack.c.l.b16 %v267
        %v348 = vunpack.c.l.b16 %v268
        %v349 = vunpack.c.l.b16 %v269
        %v350 = vunpack.c.l.b16 %v270
        %v351 = vpack.c.b16 %v320, %v319
        %v352 = vpack.c.b16 %v322, %v321
        %v353 = vpack.c.b16 %v324, %v323
        %v354 = vpack.c.b16 %v326, %v325
        %v355 = vpack.c.b16 %v328, %v327
        %v356 = vpack.c.b16 %v330, %v329
        %v357 = vpack.c.b16 %v332, %v331
        %v358 = vpack.c.b16 %v334, %v333
        %v359 = vpack.c.b16 %v336, %v335
        %v360 = vpack.c.b16 %v338, %v337
        %v361 = vpack.c.b16 %v340, %v339
        %v362 = vpack.c.b16 %v342, %v341
        %v363 = vpack.c.b16 %v344, %v343
        %v364 = vpack.c.b16 %v346, %v345
        %v365 = vpack.c.b16 %v348, %v347
        %v366 = vpack.c.b16 %v350, %v349
        %v399 = vunpack.c.l.b16 %v271
        %v400 = vunpack.c.l.b16 %v272
        %v401 = vunpack.c.l.b16 %v273
        %v402 = vunpack.c.l.b16 %v274
        %v403 = vunpack.c.l.b16 %v275
        %v404 = vunpack.c.l.b16 %v276
        %v405 = vunpack.c.l.b16 %v277
        %v406 = vunpack.c.l.b16 %v278
        %v407 = vunpack.c.l.b16 %v279
        %v408 = vunpack.c.l.b16 %v280
        %v409 = vunpack.c.l.b16 %v281
        %v410 = vunpack.c.l.b16 %v282
        %v411 = vunpack.c.l.b16 %v283
        %v412 = vunpack.c.l.b16 %v284
        %v413 = vunpack.c.l.b16 %v285
        %v414 = vunpack.c.l.b16 %v286
        %v415 = vpack.c.b16 %v400, %v399
        %v416 = vpack.c.b16 %v402, %v401
        %v417 = vpack.c.b16 %v404, %v403
        %v418 = vpack.c.b16 %v406, %v405
        %v419 = vpack.c.b16 %v408, %v407
        %v420 = vpack.c.b16 %v410, %v409
        %v421 = vpack.c.b16 %v412, %v411
        %v422 = vpack.c.b16 %v414, %v413
        %431 = vmatprep.subr.bf16.mxu0 0
        %432 = vmatpush1.bf16.msra.mxu0 %v415
        %433 = vmatprep.subr.bf16.mxu0 0
        %434 = vmatpush1.bf16.msra.mxu0 %v416
        %435 = vmatprep.subr.bf16.mxu0 0
        %436 = vmatpush1.bf16.msra.mxu0 %v417
        %437 = vmatprep.subr.bf16.mxu0 0
        %438 = vmatpush1.bf16.msra.mxu0 %v418
        %439 = vmatprep.subr.bf16.mxu0 0
        %440 = vmatpush1.bf16.msra.mxu0 %v419
        %441 = vmatprep.subr.bf16.mxu0 0
        %442 = vmatpush1.bf16.msra.mxu0 %v420
        %443 = vmatprep.subr.bf16.mxu0 0
        %444 = vmatpush1.bf16.msra.mxu0 %v421
        %445 = vmatprep.subr.bf16.mxu0 0
        %446 = vmatpush1.bf16.msra.mxu0 %v422
        %447 = vmatprep.subr.bf16.mxu0 0
        %448 = vmatpush1.bf16.msra.mxu0 0
        %449 = vmatprep.subr.bf16.mxu0 0
        %450 = vmatpush1.bf16.msra.mxu0 0
        %451 = vmatprep.subr.bf16.mxu0 0
        %452 = vmatpush1.bf16.msra.mxu0 0
        %453 = vmatprep.subr.bf16.mxu0 0
        %454 = vmatpush1.bf16.msra.mxu0 0
        %455 = vmatprep.subr.bf16.mxu0 0
        %456 = vmatpush1.bf16.msra.mxu0 0
        %457 = vmatprep.subr.bf16.mxu0 0
        %458 = vmatpush1.bf16.msra.mxu0 0
        %459 = vmatprep.subr.bf16.mxu0 0
        %460 = vmatpush1.bf16.msra.mxu0 0
        %461 = vmatprep.subr.bf16.mxu0 0
        %462 = vmatpush1.bf16.msra.mxu0 0
        %463 = vmatprep.mubr.bf16.mxu0 0
        %464 = vmatmul.mubr.bf16.gmra.mrb[0].mxu0 %v351
        %v465 = vpop.f32.mrb[0].mxu0
        %v466 = vadd.f32 0.0, %v465
        %v467 = vpop.f32.mrb[0].mxu0
        %v468 = vpop.f32.mrb[0].mxu0
        %v469 = vadd.f32 0.0, %v468
        %v470 = vpop.f32.mrb[0].mxu0
        %471 = vmatprep.mubr.bf16.mxu0 0
        %472 = vmatmul.mubr.bf16.gmra.mrb[0].mxu0 %v352
        %v473 = vpop.f32.mrb[0].mxu0
        %v474 = vadd.f32 0.0, %v473
        %v475 = vpop.f32.mrb[0].mxu0
        %v476 = vpop.f32.mrb[0].mxu0
        %v477 = vadd.f32 0.0, %v476
        %v478 = vpop.f32.mrb[0].mxu0
        %479 = vmatprep.mubr.bf16.mxu0 0
        %480 = vmatmul.mubr.bf16.gmra.mrb[0].mxu0 %v353
        %v481 = vpop.f32.mrb[0].mxu0
        %v482 = vadd.f32 0.0, %v481
        %v483 = vpop.f32.mrb[0].mxu0
        %v484 = vpop.f32.mrb[0].mxu0
        %v485 = vadd.f32 0.0, %v484
        %v486 = vpop.f32.mrb[0].mxu0
        %487 = vmatprep.mubr.bf16.mxu0 0
        %488 = vmatmul.mubr.bf16.gmra.mrb[0].mxu0 %v354
        %v489 = vpop.f32.mrb[0].mxu0
        %v490 = vadd.f32 0.0, %v489
        %v491 = vpop.f32.mrb[0].mxu0
        %v492 = vpop.f32.mrb[0].mxu0
        %v493 = vadd.f32 0.0, %v492
        %v494 = vpop.f32.mrb[0].mxu0
        %495 = vmatprep.mubr.bf16.mxu0 0
        %496 = vmatmul.mubr.bf16.gmra.mrb[0].mxu0 %v355
        %v497 = vpop.f32.mrb[0].mxu0
        %v498 = vadd.f32 0.0, %v497
        %v499 = vpop.f32.mrb[0].mxu0
        %v500 = vpop.f32.mrb[0].mxu0
        %v501 = vadd.f32 0.0, %v500
        %v502 = vpop.f32.mrb[0].mxu0
        %503 = vmatprep.mubr.bf16.mxu0 0
        %504 = vmatmul.mubr.bf16.gmra.mrb[0].mxu0 %v356
        %v505 = vpop.f32.mrb[0].mxu0
        %v506 = vadd.f32 0.0, %v505
        %v507 = vpop.f32.mrb[0].mxu0
        %v508 = vpop.f32.mrb[0].mxu0
        %v509 = vadd.f32 0.0, %v508
        %v510 = vpop.f32.mrb[0].mxu0
        %511 = vmatprep.mubr.bf16.mxu0 0
        %512 = vmatmul.mubr.bf16.gmra.mrb[0].mxu0 %v357
        %v513 = vpop.f32.mrb[0].mxu0
        %v514 = vadd.f32 0.0, %v513
        %v515 = vpop.f32.mrb[0].mxu0
        %v516 = vpop.f32.mrb[0].mxu0
        %v517 = vadd.f32 0.0, %v516
        %v518 = vpop.f32.mrb[0].mxu0
        %519 = vmatprep.mubr.bf16.mxu0 0
        %520 = vmatmul.mubr.bf16.gmra.mrb[0].mxu0 %v358
        %v521 = vpop.f32.mrb[0].mxu0
        %v522 = vadd.f32 0.0, %v521
        %v523 = vpop.f32.mrb[0].mxu0
        %v524 = vpop.f32.mrb[0].mxu0
        %v525 = vadd.f32 0.0, %v524
        %v526 = vpop.f32.mrb[0].mxu0
        %527 = vmatprep.mubr.bf16.mxu0 0
        %528 = vmatmul.mubr.bf16.gmra.mrb[0].mxu0 %v359
        %v529 = vpop.f32.mrb[0].mxu0
        %v530 = vadd.f32 0.0, %v529
        %v531 = vpop.f32.mrb[0].mxu0
        %v532 = vpop.f32.mrb[0].mxu0
        %v533 = vadd.f32 0.0, %v532
        %v534 = vpop.f32.mrb[0].mxu0
        %535 = vmatprep.mubr.bf16.mxu0 0
        %536 = vmatmul.mubr.bf16.gmra.mrb[0].mxu0 %v360
        %v537 = vpop.f32.mrb[0].mxu0
        %v538 = vadd.f32 0.0, %v537
        %v539 = vpop.f32.mrb[0].mxu0
        %v540 = vpop.f32.mrb[0].mxu0
        %v541 = vadd.f32 0.0, %v540
        %v542 = vpop.f32.mrb[0].mxu0
        %543 = vmatprep.mubr.bf16.mxu0 0
        %544 = vmatmul.mubr.bf16.gmra.mrb[0].mxu0 %v361
        %v545 = vpop.f32.mrb[0].mxu0
        %v546 = vadd.f32 0.0, %v545
        %v547 = vpop.f32.mrb[0].mxu0
        %v548 = vpop.f32.mrb[0].mxu0
        %v549 = vadd.f32 0.0, %v548
        %v550 = vpop.f32.mrb[0].mxu0
        %551 = vmatprep.mubr.bf16.mxu0 0
        %552 = vmatmul.mubr.bf16.gmra.mrb[0].mxu0 %v362
        %v553 = vpop.f32.mrb[0].mxu0
        %v554 = vadd.f32 0.0, %v553
        %v555 = vpop.f32.mrb[0].mxu0
        %v556 = vpop.f32.mrb[0].mxu0
        %v557 = vadd.f32 0.0, %v556
        %v558 = vpop.f32.mrb[0].mxu0
        %559 = vmatprep.mubr.bf16.mxu0 0
        %560 = vmatmul.mubr.bf16.gmra.mrb[0].mxu0 %v363
        %v561 = vpop.f32.mrb[0].mxu0
        %v562 = vadd.f32 0.0, %v561
        %v563 = vpop.f32.mrb[0].mxu0
        %v564 = vpop.f32.mrb[0].mxu0
        %v565 = vadd.f32 0.0, %v564
        %v566 = vpop.f32.mrb[0].mxu0
        %567 = vmatprep.mubr.bf16.mxu0 0
        %568 = vmatmul.mubr.bf16.gmra.mrb[0].mxu0 %v364
        %v569 = vpop.f32.mrb[0].mxu0
        %v570 = vadd.f32 0.0, %v569
        %v571 = vpop.f32.mrb[0].mxu0
        %v572 = vpop.f32.mrb[0].mxu0
        %v573 = vadd.f32 0.0, %v572
        %v574 = vpop.f32.mrb[0].mxu0
        %575 = vmatprep.mubr.bf16.mxu0 0
        %576 = vmatmul.mubr.bf16.gmra.mrb[0].mxu0 %v365
        %v577 = vpop.f32.mrb[0].mxu0
        %v578 = vadd.f32 0.0, %v577
        %v579 = vpop.f32.mrb[0].mxu0
        %v580 = vpop.f32.mrb[0].mxu0
        %v581 = vadd.f32 0.0, %v580
        %v582 = vpop.f32.mrb[0].mxu0
        %583 = vmatprep.mubr.bf16.mxu0 0
        %584 = vmatmul.mubr.bf16.gmra.mrb[0].mxu0 %v366
        %v585 = vpop.f32.mrb[0].mxu0
        %v586 = vadd.f32 0.0, %v585
        %v587 = vpop.f32.mrb[0].mxu0
        %v588 = vpop.f32.mrb[0].mxu0
        %v589 = vadd.f32 0.0, %v588
        %v590 = vpop.f32.mrb[0].mxu0
        %591 = vdwg.mxu0
        %592 = vst [vmem:[#allocation2] sm:$0xff] %v466
        %593 = vst [vmem:[#allocation2 + $0x8] sm:$0xff] %v469
        %594 = vst [vmem:[#allocation2 + $0x10] sm:$0xff] %v474
        %595 = vst [vmem:[#allocation2 + $0x18] sm:$0xff] %v477
        %596 = vst [vmem:[#allocation2 + $0x20] sm:$0xff] %v482
        %597 = vst [vmem:[#allocation2 + $0x28] sm:$0xff] %v485
        %598 = vst [vmem:[#allocation2 + $0x30] sm:$0xff] %v490
        %599 = vst [vmem:[#allocation2 + $0x38] sm:$0xff] %v493
        %600 = vst [vmem:[#allocation2 + $0x40] sm:$0xff] %v498
        %601 = vst [vmem:[#allocation2 + $0x48] sm:$0xff] %v501
        %602 = vst [vmem:[#allocation2 + $0x50] sm:$0xff] %v506
        %603 = vst [vmem:[#allocation2 + $0x58] sm:$0xff] %v509
        %604 = vst [vmem:[#allocation2 + $0x60] sm:$0xff] %v514
        %605 = vst [vmem:[#allocation2 + $0x68] sm:$0xff] %v517
        %606 = vst [vmem:[#allocation2 + $0x70] sm:$0xff] %v522
        %607 = vst [vmem:[#allocation2 + $0x78] sm:$0xff] %v525
        %608 = vst [vmem:[#allocation2 + $0x80] sm:$0xff] %v530
        %609 = vst [vmem:[#allocation2 + $0x88] sm:$0xff] %v533
        %610 = vst [vmem:[#allocation2 + $0x90] sm:$0xff] %v538
        %611 = vst [vmem:[#allocation2 + $0x98] sm:$0xff] %v541
        %612 = vst [vmem:[#allocation2 + $0xa0] sm:$0xff] %v546
        %613 = vst [vmem:[#allocation2 + $0xa8] sm:$0xff] %v549
        %614 = vst [vmem:[#allocation2 + $0xb0] sm:$0xff] %v554
        %615 = vst [vmem:[#allocation2 + $0xb8] sm:$0xff] %v557
        %616 = vst [vmem:[#allocation2 + $0xc0] sm:$0xff] %v562
        %617 = vst [vmem:[#allocation2 + $0xc8] sm:$0xff] %v565
        %618 = vst [vmem:[#allocation2 + $0xd0] sm:$0xff] %v570
        %619 = vst [vmem:[#allocation2 + $0xd8] sm:$0xff] %v573
        %620 = vst [vmem:[#allocation2 + $0xe0] sm:$0xff] %v578
        %621 = vst [vmem:[#allocation2 + $0xe8] sm:$0xff] %v581
        %622 = vst [vmem:[#allocation2 + $0xf0] sm:$0xff] %v586
        %623 = vst [vmem:[#allocation2 + $0xf8] sm:$0xff] %v589
        %v624 = vld [vmem:[%s229] sm:$0xf]
        %v625 = vld [vmem:[%s229 + $0x4] sm:$0xf]
        %v626 = vld [vmem:[%s229 + $0x8] sm:$0x1]
        %v627 = vld [vmem:[%s229 + $0xc] sm:$0xf]
        %v628 = vld [vmem:[%s229 + $0x10] sm:$0xf]
        %v629 = vld [vmem:[%s229 + $0x14] sm:$0x1]
        %v630 = vld [vmem:[%s229 + $0x18] sm:$0xf]
        %v631 = vld [vmem:[%s229 + $0x1c] sm:$0xf]
        %v632 = vld [vmem:[%s229 + $0x20] sm:$0x1]
        %v633 = vld [vmem:[%s229 + $0x24] sm:$0xf]
        %v634 = vld [vmem:[%s229 + $0x28] sm:$0xf]
        %v635 = vld [vmem:[%s229 + $0x2c] sm:$0x1]
        %v636 = vld [vmem:[%s229 + $0x30] sm:$0xf]
        %v637 = vld [vmem:[%s229 + $0x34] sm:$0xf]
        %v638 = vld [vmem:[%s229 + $0x38] sm:$0x1]
        %v639 = vld [vmem:[%s229 + $0x3c] sm:$0xf]
        %v640 = vld [vmem:[%s229 + $0x40] sm:$0xf]
        %v641 = vld [vmem:[%s229 + $0x44] sm:$0x1]
        %v642 = vld [vmem:[%s229 + $0x48] sm:$0xf]
        %v643 = vld [vmem:[%s229 + $0x4c] sm:$0xf]
        %v644 = vld [vmem:[%s229 + $0x50] sm:$0x1]
        %v645 = vld [vmem:[%s229 + $0x54] sm:$0xf]
        %v646 = vld [vmem:[%s229 + $0x58] sm:$0xf]
        %v647 = vld [vmem:[%s229 + $0x5c] sm:$0x1]
        %v648 = vld [vmem:[%s229 + $0x60] sm:$0xf]
        %v649 = vld [vmem:[%s229 + $0x64] sm:$0xf]
        %v650 = vld [vmem:[%s229 + $0x68] sm:$0x1]
        %v651 = vld [vmem:[%s229 + $0x6c] sm:$0xf]
        %v652 = vld [vmem:[%s229 + $0x70] sm:$0xf]
        %v653 = vld [vmem:[%s229 + $0x74] sm:$0x1]
        %v654 = vld [vmem:[%s229 + $0x78] sm:$0xf]
        %v655 = vld [vmem:[%s229 + $0x7c] sm:$0xf]
        %v656 = vld [vmem:[%s229 + $0x80] sm:$0x1]
        %v657 = vld [vmem:[%s229 + $0x84] sm:$0xf]
        %v658 = vld [vmem:[%s229 + $0x88] sm:$0xf]
        %v659 = vld [vmem:[%s229 + $0x8c] sm:$0x1]
        %v660 = vld [vmem:[%s229 + $0x90] sm:$0xf]
        %v661 = vld [vmem:[%s229 + $0x94] sm:$0xf]
        %v662 = vld [vmem:[%s229 + $0x98] sm:$0x1]
        %v663 = vld [vmem:[%s229 + $0x9c] sm:$0xf]
        %v664 = vld [vmem:[%s229 + $0xa0] sm:$0xf]
        %v665 = vld [vmem:[%s229 + $0xa4] sm:$0x1]
        %v666 = vld [vmem:[%s229 + $0xa8] sm:$0xf]
        %v667 = vld [vmem:[%s229 + $0xac] sm:$0xf]
        %v668 = vld [vmem:[%s229 + $0xb0] sm:$0x1]
        %v669 = vld [vmem:[%s229 + $0xb4] sm:$0xf]
        %v670 = vld [vmem:[%s229 + $0xb8] sm:$0xf]
        %v671 = vld [vmem:[%s229 + $0xbc] sm:$0x1]
        %vm672 = vsmask.f32 3328
        %vm673 = vsmask.f32 7440
        %vm674 = vmor %vm672, %vm673
        %v676 = vshrl.u32 %v624, 16
        %v678 = vrot.slane %v676, 4
        %v679 = vshll.u32 %v624, 16
        %v681 = vrot.slane %v679, 5
        %v682 = vor.u32 %v678, %v681
        %v683 = vrot.slane %v682, 4
        %v685 = vshll.u32 %v625, 16
        %v687 = vrot.slane %v685, 5
        %v688 = vsel %vm674, %v683, %v687
        %v689 = vshrl.u32 %v625, 16
        %v691 = vrot.slane %v689, 4
        %v692 = vor.u32 %v691, %v687
        %v693 = vrot.slane %v692, 4
        %v695 = vshll.u32 %v626, 16
        %v697 = vrot.slane %v695, 5
        %v698 = vsel %vm674, %v693, %v697
        %v700 = vshrl.u32 %v627, 16
        %v702 = vrot.slane %v700, 4
        %v703 = vshll.u32 %v627, 16
        %v705 = vrot.slane %v703, 5
        %v706 = vor.u32 %v702, %v705
        %v707 = vrot.slane %v706, 4
        %v709 = vshll.u32 %v628, 16
        %v711 = vrot.slane %v709, 5
        %v712 = vsel %vm674, %v707, %v711
        %v713 = vshrl.u32 %v628, 16
        %v715 = vrot.slane %v713, 4
        %v716 = vor.u32 %v715, %v711
        %v717 = vrot.slane %v716, 4
        %v719 = vshll.u32 %v629, 16
        %v721 = vrot.slane %v719, 5
        %v722 = vsel %vm674, %v717, %v721
        %v724 = vshrl.u32 %v630, 16
        %v726 = vrot.slane %v724, 4
        %v727 = vshll.u32 %v630, 16
        %v729 = vrot.slane %v727, 5
        %v730 = vor.u32 %v726, %v729
        %v731 = vrot.slane %v730, 4
        %v733 = vshll.u32 %v631, 16
        %v735 = vrot.slane %v733, 5
        %v736 = vsel %vm674, %v731, %v735
        %v737 = vshrl.u32 %v631, 16
        %v739 = vrot.slane %v737, 4
        %v740 = vor.u32 %v739, %v735
        %v741 = vrot.slane %v740, 4
        %v743 = vshll.u32 %v632, 16
        %v745 = vrot.slane %v743, 5
        %v746 = vsel %vm674, %v741, %v745
        %v748 = vshrl.u32 %v633, 16
        %v750 = vrot.slane %v748, 4
        %v751 = vshll.u32 %v633, 16
        %v753 = vrot.slane %v751, 5
        %v754 = vor.u32 %v750, %v753
        %v755 = vrot.slane %v754, 4
        %v757 = vshll.u32 %v634, 16
        %v759 = vrot.slane %v757, 5
        %v760 = vsel %vm674, %v755, %v759
        %v761 = vshrl.u32 %v634, 16
        %v763 = vrot.slane %v761, 4
        %v764 = vor.u32 %v763, %v759
        %v765 = vrot.slane %v764, 4
        %v767 = vshll.u32 %v635, 16
        %v769 = vrot.slane %v767, 5
        %v770 = vsel %vm674, %v765, %v769
        %v772 = vshrl.u32 %v636, 16
        %v774 = vrot.slane %v772, 4
        %v775 = vshll.u32 %v636, 16
        %v777 = vrot.slane %v775, 5
        %v778 = vor.u32 %v774, %v777
        %v779 = vrot.slane %v778, 4
        %v781 = vshll.u32 %v637, 16
        %v783 = vrot.slane %v781, 5
        %v784 = vsel %vm674, %v779, %v783
        %v785 = vshrl.u32 %v637, 16
        %v787 = vrot.slane %v785, 4
        %v788 = vor.u32 %v787, %v783
        %v789 = vrot.slane %v788, 4
        %v791 = vshll.u32 %v638, 16
        %v793 = vrot.slane %v791, 5
        %v794 = vsel %vm674, %v789, %v793
        %v796 = vshrl.u32 %v639, 16
        %v798 = vrot.slane %v796, 4
        %v799 = vshll.u32 %v639, 16
        %v801 = vrot.slane %v799, 5
        %v802 = vor.u32 %v798, %v801
        %v803 = vrot.slane %v802, 4
        %v805 = vshll.u32 %v640, 16
        %v807 = vrot.slane %v805, 5
        %v808 = vsel %vm674, %v803, %v807
        %v809 = vshrl.u32 %v640, 16
        %v811 = vrot.slane %v809, 4
        %v812 = vor.u32 %v811, %v807
        %v813 = vrot.slane %v812, 4
        %v815 = vshll.u32 %v641, 16
        %v817 = vrot.slane %v815, 5
        %v818 = vsel %vm674, %v813, %v817
        %v820 = vshrl.u32 %v642, 16
        %v822 = vrot.slane %v820, 4
        %v823 = vshll.u32 %v642, 16
        %v825 = vrot.slane %v823, 5
        %v826 = vor.u32 %v822, %v825
        %v827 = vrot.slane %v826, 4
        %v829 = vshll.u32 %v643, 16
        %v831 = vrot.slane %v829, 5
        %v832 = vsel %vm674, %v827, %v831
        %v833 = vshrl.u32 %v643, 16
        %v835 = vrot.slane %v833, 4
        %v836 = vor.u32 %v835, %v831
        %v837 = vrot.slane %v836, 4
        %v839 = vshll.u32 %v644, 16
        %v841 = vrot.slane %v839, 5
        %v842 = vsel %vm674, %v837, %v841
        %v844 = vshrl.u32 %v645, 16
        %v846 = vrot.slane %v844, 4
        %v847 = vshll.u32 %v645, 16
        %v849 = vrot.slane %v847, 5
        %v850 = vor.u32 %v846, %v849
        %v851 = vrot.slane %v850, 4
        %v853 = vshll.u32 %v646, 16
        %v855 = vrot.slane %v853, 5
        %v856 = vsel %vm674, %v851, %v855
        %v857 = vshrl.u32 %v646, 16
        %v859 = vrot.slane %v857, 4
        %v860 = vor.u32 %v859, %v855
        %v861 = vrot.slane %v860, 4
        %v863 = vshll.u32 %v647, 16
        %v865 = vrot.slane %v863, 5
        %v866 = vsel %vm674, %v861, %v865
        %v868 = vshrl.u32 %v648, 16
        %v870 = vrot.slane %v868, 4
        %v871 = vshll.u32 %v648, 16
        %v873 = vrot.slane %v871, 5
        %v874 = vor.u32 %v870, %v873
        %v875 = vrot.slane %v874, 4
        %v877 = vshll.u32 %v649, 16
        %v879 = vrot.slane %v877, 5
        %v880 = vsel %vm674, %v875, %v879
        %v881 = vshrl.u32 %v649, 16
        %v883 = vrot.slane %v881, 4
        %v884 = vor.u32 %v883, %v879
        %v885 = vrot.slane %v884, 4
        %v887 = vshll.u32 %v650, 16
        %v889 = vrot.slane %v887, 5
        %v890 = vsel %vm674, %v885, %v889
        %v892 = vshrl.u32 %v651, 16
        %v894 = vrot.slane %v892, 4
        %v895 = vshll.u32 %v651, 16
        %v897 = vrot.slane %v895, 5
        %v898 = vor.u32 %v894, %v897
        %v899 = vrot.slane %v898, 4
        %v901 = vshll.u32 %v652, 16
        %v903 = vrot.slane %v901, 5
        %v904 = vsel %vm674, %v899, %v903
        %v905 = vshrl.u32 %v652, 16
        %v907 = vrot.slane %v905, 4
        %v908 = vor.u32 %v907, %v903
        %v909 = vrot.slane %v908, 4
        %v911 = vshll.u32 %v653, 16
        %v913 = vrot.slane %v911, 5
        %v914 = vsel %vm674, %v909, %v913
        %v916 = vshrl.u32 %v654, 16
        %v918 = vrot.slane %v916, 4
        %v919 = vshll.u32 %v654, 16
        %v921 = vrot.slane %v919, 5
        %v922 = vor.u32 %v918, %v921
        %v923 = vrot.slane %v922, 4
        %v925 = vshll.u32 %v655, 16
        %v927 = vrot.slane %v925, 5
        %v928 = vsel %vm674, %v923, %v927
        %v929 = vshrl.u32 %v655, 16
        %v931 = vrot.slane %v929, 4
        %v932 = vor.u32 %v931, %v927
        %v933 = vrot.slane %v932, 4
        %v935 = vshll.u32 %v656, 16
        %v937 = vrot.slane %v935, 5
        %v938 = vsel %vm674, %v933, %v937
        %v940 = vshrl.u32 %v657, 16
        %v942 = vrot.slane %v940, 4
        %v943 = vshll.u32 %v657, 16
        %v945 = vrot.slane %v943, 5
        %v946 = vor.u32 %v942, %v945
        %v947 = vrot.slane %v946, 4
        %v949 = vshll.u32 %v658, 16
        %v951 = vrot.slane %v949, 5
        %v952 = vsel %vm674, %v947, %v951
        %v953 = vshrl.u32 %v658, 16
        %v955 = vrot.slane %v953, 4
        %v956 = vor.u32 %v955, %v951
        %v957 = vrot.slane %v956, 4
        %v959 = vshll.u32 %v659, 16
        %v961 = vrot.slane %v959, 5
        %v962 = vsel %vm674, %v957, %v961
        %v964 = vshrl.u32 %v660, 16
        %v966 = vrot.slane %v964, 4
        %v967 = vshll.u32 %v660, 16
        %v969 = vrot.slane %v967, 5
        %v970 = vor.u32 %v966, %v969
        %v971 = vrot.slane %v970, 4
        %v973 = vshll.u32 %v661, 16
        %v975 = vrot.slane %v973, 5
        %v976 = vsel %vm674, %v971, %v975
        %v977 = vshrl.u32 %v661, 16
        %v979 = vrot.slane %v977, 4
        %v980 = vor.u32 %v979, %v975
        %v981 = vrot.slane %v980, 4
        %v983 = vshll.u32 %v662, 16
        %v985 = vrot.slane %v983, 5
        %v986 = vsel %vm674, %v981, %v985
        %v988 = vshrl.u32 %v663, 16
        %v990 = vrot.slane %v988, 4
        %v991 = vshll.u32 %v663, 16
        %v993 = vrot.slane %v991, 5
        %v994 = vor.u32 %v990, %v993
        %v995 = vrot.slane %v994, 4
        %v997 = vshll.u32 %v664, 16
        %v999 = vrot.slane %v997, 5
        %v1000 = vsel %vm674, %v995, %v999
        %v1001 = vshrl.u32 %v664, 16
        %v1003 = vrot.slane %v1001, 4
        %v1004 = vor.u32 %v1003, %v999
        %v1005 = vrot.slane %v1004, 4
        %v1007 = vshll.u32 %v665, 16
        %v1009 = vrot.slane %v1007, 5
        %v1010 = vsel %vm674, %v1005, %v1009
        %v1012 = vshrl.u32 %v666, 16
        %v1014 = vrot.slane %v1012, 4
        %v1015 = vshll.u32 %v666, 16
        %v1017 = vrot.slane %v1015, 5
        %v1018 = vor.u32 %v1014, %v1017
        %v1019 = vrot.slane %v1018, 4
        %v1021 = vshll.u32 %v667, 16
        %v1023 = vrot.slane %v1021, 5
        %v1024 = vsel %vm674, %v1019, %v1023
        %v1025 = vshrl.u32 %v667, 16
        %v1027 = vrot.slane %v1025, 4
        %v1028 = vor.u32 %v1027, %v1023
        %v1029 = vrot.slane %v1028, 4
        %v1031 = vshll.u32 %v668, 16
        %v1033 = vrot.slane %v1031, 5
        %v1034 = vsel %vm674, %v1029, %v1033
        %v1036 = vshrl.u32 %v669, 16
        %v1038 = vrot.slane %v1036, 4
        %v1039 = vshll.u32 %v669, 16
        %v1041 = vrot.slane %v1039, 5
        %v1042 = vor.u32 %v1038, %v1041
        %v1043 = vrot.slane %v1042, 4
        %v1045 = vshll.u32 %v670, 16
        %v1047 = vrot.slane %v1045, 5
        %v1048 = vsel %vm674, %v1043, %v1047
        %v1049 = vshrl.u32 %v670, 16
        %v1051 = vrot.slane %v1049, 4
        %v1052 = vor.u32 %v1051, %v1047
        %v1053 = vrot.slane %v1052, 4
        %v1055 = vshll.u32 %v671, 16
        %v1057 = vrot.slane %v1055, 5
        %v1058 = vsel %vm674, %v1053, %v1057
        %s1059 = scalar_lea.vmem %s233, 64
        %v1060 = vld [vmem:[%s1059] sm:$0xf]
        %v1061 = vld [vmem:[%s1059 + $0x4] sm:$0xf]
        %v1062 = vld [vmem:[%s1059 + $0x8] sm:$0xf]
        %v1063 = vld [vmem:[%s1059 + $0xc] sm:$0xf]
        %v1064 = vld [vmem:[%s1059 + $0x10] sm:$0xf]
        %v1065 = vld [vmem:[%s1059 + $0x14] sm:$0xf]
        %v1066 = vld [vmem:[%s1059 + $0x18] sm:$0xf]
        %v1067 = vld [vmem:[%s1059 + $0x1c] sm:$0xf]
        %v1068 = vld [vmem:[%s1059 + $0x20] sm:$0xf]
        %v1069 = vld [vmem:[%s1059 + $0x24] sm:$0xf]
        %v1070 = vld [vmem:[%s1059 + $0x28] sm:$0xf]
        %v1071 = vld [vmem:[%s1059 + $0x2c] sm:$0xf]
        %v1072 = vld [vmem:[%s1059 + $0x30] sm:$0xf]
        %v1073 = vld [vmem:[%s1059 + $0x34] sm:$0xf]
        %v1074 = vld [vmem:[%s1059 + $0x38] sm:$0xf]
        %v1075 = vld [vmem:[%s1059 + $0x3c] sm:$0xf]
        %v1076 = vunpack.c.l.b16 %v688
        %v1077 = vunpack.c.l.b16 %v698
        %v1078 = vunpack.c.l.b16 %v712
        %v1079 = vunpack.c.l.b16 %v722
        %v1080 = vunpack.c.l.b16 %v736
        %v1081 = vunpack.c.l.b16 %v746
        %v1082 = vunpack.c.l.b16 %v760
        %v1083 = vunpack.c.l.b16 %v770
        %v1084 = vunpack.c.l.b16 %v784
        %v1085 = vunpack.c.l.b16 %v794
        %v1086 = vunpack.c.l.b16 %v808
        %v1087 = vunpack.c.l.b16 %v818
        %v1088 = vunpack.c.l.b16 %v832
        %v1089 = vunpack.c.l.b16 %v842
        %v1090 = vunpack.c.l.b16 %v856
        %v1091 = vunpack.c.l.b16 %v866
        %v1092 = vunpack.c.l.b16 %v880
        %v1093 = vunpack.c.l.b16 %v890
        %v1094 = vunpack.c.l.b16 %v904
        %v1095 = vunpack.c.l.b16 %v914
        %v1096 = vunpack.c.l.b16 %v928
        %v1097 = vunpack.c.l.b16 %v938
        %v1098 = vunpack.c.l.b16 %v952
        %v1099 = vunpack.c.l.b16 %v962
        %v1100 = vunpack.c.l.b16 %v976
        %v1101 = vunpack.c.l.b16 %v986
        %v1102 = vunpack.c.l.b16 %v1000
        %v1103 = vunpack.c.l.b16 %v1010
        %v1104 = vunpack.c.l.b16 %v1024
        %v1105 = vunpack.c.l.b16 %v1034
        %v1106 = vunpack.c.l.b16 %v1048
        %v1107 = vunpack.c.l.b16 %v1058
        %v1108 = vpack.c.b16 %v1077, %v1076
        %v1109 = vpack.c.b16 %v1079, %v1078
        %v1110 = vpack.c.b16 %v1081, %v1080
        %v1111 = vpack.c.b16 %v1083, %v1082
        %v1112 = vpack.c.b16 %v1085, %v1084
        %v1113 = vpack.c.b16 %v1087, %v1086
        %v1114 = vpack.c.b16 %v1089, %v1088
        %v1115 = vpack.c.b16 %v1091, %v1090
        %v1116 = vpack.c.b16 %v1093, %v1092
        %v1117 = vpack.c.b16 %v1095, %v1094
        %v1118 = vpack.c.b16 %v1097, %v1096
        %v1119 = vpack.c.b16 %v1099, %v1098
        %v1120 = vpack.c.b16 %v1101, %v1100
        %v1121 = vpack.c.b16 %v1103, %v1102
        %v1122 = vpack.c.b16 %v1105, %v1104
        %v1123 = vpack.c.b16 %v1107, %v1106
        %v1156 = vunpack.c.l.b16 %v1060
        %v1157 = vunpack.c.l.b16 %v1061
        %v1158 = vunpack.c.l.b16 %v1062
        %v1159 = vunpack.c.l.b16 %v1063
        %v1160 = vunpack.c.l.b16 %v1064
        %v1161 = vunpack.c.l.b16 %v1065
        %v1162 = vunpack.c.l.b16 %v1066
        %v1163 = vunpack.c.l.b16 %v1067
        %v1164 = vunpack.c.l.b16 %v1068
        %v1165 = vunpack.c.l.b16 %v1069
        %v1166 = vunpack.c.l.b16 %v1070
        %v1167 = vunpack.c.l.b16 %v1071
        %v1168 = vunpack.c.l.b16 %v1072
        %v1169 = vunpack.c.l.b16 %v1073
        %v1170 = vunpack.c.l.b16 %v1074
        %v1171 = vunpack.c.l.b16 %v1075
        %v1172 = vpack.c.b16 %v1157, %v1156
        %v1173 = vpack.c.b16 %v1159, %v1158
        %v1174 = vpack.c.b16 %v1161, %v1160
        %v1175 = vpack.c.b16 %v1163, %v1162
        %v1176 = vpack.c.b16 %v1165, %v1164
        %v1177 = vpack.c.b16 %v1167, %v1166
        %v1178 = vpack.c.b16 %v1169, %v1168
        %v1179 = vpack.c.b16 %v1171, %v1170
        %1188 = vmatprep.subr.bf16.mxu0 0
        %1189 = vmatpush1.bf16.msra.mxu0 %v1172
        %1190 = vmatprep.subr.bf16.mxu0 0
        %1191 = vmatpush1.bf16.msra.mxu0 %v1173
        %1192 = vmatprep.subr.bf16.mxu0 0
        %1193 = vmatpush1.bf16.msra.mxu0 %v1174
        %1194 = vmatprep.subr.bf16.mxu0 0
        %1195 = vmatpush1.bf16.msra.mxu0 %v1175
        %1196 = vmatprep.subr.bf16.mxu0 0
        %1197 = vmatpush1.bf16.msra.mxu0 %v1176
        %1198 = vmatprep.subr.bf16.mxu0 0
        %1199 = vmatpush1.bf16.msra.mxu0 %v1177
        %1200 = vmatprep.subr.bf16.mxu0 0
        %1201 = vmatpush1.bf16.msra.mxu0 %v1178
        %1202 = vmatprep.subr.bf16.mxu0 0
        %1203 = vmatpush1.bf16.msra.mxu0 %v1179
        %1204 = vmatprep.subr.bf16.mxu0 0
        %1205 = vmatpush1.bf16.msra.mxu0 0
        %1206 = vmatprep.subr.bf16.mxu0 0
        %1207 = vmatpush1.bf16.msra.mxu0 0
        %1208 = vmatprep.subr.bf16.mxu0 0
        %1209 = vmatpush1.bf16.msra.mxu0 0
        %1210 = vmatprep.subr.bf16.mxu0 0
        %1211 = vmatpush1.bf16.msra.mxu0 0
        %1212 = vmatprep.subr.bf16.mxu0 0
        %1213 = vmatpush1.bf16.msra.mxu0 0
        %1214 = vmatprep.subr.bf16.mxu0 0
        %1215 = vmatpush1.bf16.msra.mxu0 0
        %1216 = vmatprep.subr.bf16.mxu0 0
        %1217 = vmatpush1.bf16.msra.mxu0 0
        %1218 = vmatprep.subr.bf16.mxu0 0
        %1219 = vmatpush1.bf16.msra.mxu0 0
        %1220 = vmatprep.mubr.bf16.mxu0 0
        %1221 = vmatmul.mubr.bf16.gmra.mrb[0].mxu0 %v1108
        %v1222 = vpop.f32.mrb[0].mxu0
        %v1223 = vadd.f32 0.0, %v1222
        %v1224 = vpop.f32.mrb[0].mxu0
        %v1225 = vpop.f32.mrb[0].mxu0
        %v1226 = vadd.f32 0.0, %v1225
        %v1227 = vpop.f32.mrb[0].mxu0
        %1228 = vmatprep.mubr.bf16.mxu0 0
        %1229 = vmatmul.mubr.bf16.gmra.mrb[0].mxu0 %v1109
        %v1230 = vpop.f32.mrb[0].mxu0
        %v1231 = vadd.f32 0.0, %v1230
        %v1232 = vpop.f32.mrb[0].mxu0
        %v1233 = vpop.f32.mrb[0].mxu0
        %v1234 = vadd.f32 0.0, %v1233
        %v1235 = vpop.f32.mrb[0].mxu0
        %1236 = vmatprep.mubr.bf16.mxu0 0
        %1237 = vmatmul.mubr.bf16.gmra.mrb[0].mxu0 %v1110
        %v1238 = vpop.f32.mrb[0].mxu0
        %v1239 = vadd.f32 0.0, %v1238
        %v1240 = vpop.f32.mrb[0].mxu0
        %v1241 = vpop.f32.mrb[0].mxu0
        %v1242 = vadd.f32 0.0, %v1241
        %v1243 = vpop.f32.mrb[0].mxu0
        %1244 = vmatprep.mubr.bf16.mxu0 0
        %1245 = vmatmul.mubr.bf16.gmra.mrb[0].mxu0 %v1111
        %v1246 = vpop.f32.mrb[0].mxu0
        %v1247 = vadd.f32 0.0, %v1246
        %v1248 = vpop.f32.mrb[0].mxu0
        %v1249 = vpop.f32.mrb[0].mxu0
        %v1250 = vadd.f32 0.0, %v1249
        %v1251 = vpop.f32.mrb[0].mxu0
        %1252 = vmatprep.mubr.bf16.mxu0 0
        %1253 = vmatmul.mubr.bf16.gmra.mrb[0].mxu0 %v1112
        %v1254 = vpop.f32.mrb[0].mxu0
        %v1255 = vadd.f32 0.0, %v1254
        %v1256 = vpop.f32.mrb[0].mxu0
        %v1257 = vpop.f32.mrb[0].mxu0
        %v1258 = vadd.f32 0.0, %v1257
        %v1259 = vpop.f32.mrb[0].mxu0
        %1260 = vmatprep.mubr.bf16.mxu0 0
        %1261 = vmatmul.mubr.bf16.gmra.mrb[0].mxu0 %v1113
        %v1262 = vpop.f32.mrb[0].mxu0
        %v1263 = vadd.f32 0.0, %v1262
        %v1264 = vpop.f32.mrb[0].mxu0
        %v1265 = vpop.f32.mrb[0].mxu0
        %v1266 = vadd.f32 0.0, %v1265
        %v1267 = vpop.f32.mrb[0].mxu0
        %1268 = vmatprep.mubr.bf16.mxu0 0
        %1269 = vmatmul.mubr.bf16.gmra.mrb[0].mxu0 %v1114
        %v1270 = vpop.f32.mrb[0].mxu0
        %v1271 = vadd.f32 0.0, %v1270
        %v1272 = vpop.f32.mrb[0].mxu0
        %v1273 = vpop.f32.mrb[0].mxu0
        %v1274 = vadd.f32 0.0, %v1273
        %v1275 = vpop.f32.mrb[0].mxu0
        %1276 = vmatprep.mubr.bf16.mxu0 0
        %1277 = vmatmul.mubr.bf16.gmra.mrb[0].mxu0 %v1115
        %v1278 = vpop.f32.mrb[0].mxu0
        %v1279 = vadd.f32 0.0, %v1278
        %v1280 = vpop.f32.mrb[0].mxu0
        %v1281 = vpop.f32.mrb[0].mxu0
        %v1282 = vadd.f32 0.0, %v1281
        %v1283 = vpop.f32.mrb[0].mxu0
        %1284 = vmatprep.mubr.bf16.mxu0 0
        %1285 = vmatmul.mubr.bf16.gmra.mrb[0].mxu0 %v1116
        %v1286 = vpop.f32.mrb[0].mxu0
        %v1287 = vadd.f32 0.0, %v1286
        %v1288 = vpop.f32.mrb[0].mxu0
        %v1289 = vpop.f32.mrb[0].mxu0
        %v1290 = vadd.f32 0.0, %v1289
        %v1291 = vpop.f32.mrb[0].mxu0
        %1292 = vmatprep.mubr.bf16.mxu0 0
        %1293 = vmatmul.mubr.bf16.gmra.mrb[0].mxu0 %v1117
        %v1294 = vpop.f32.mrb[0].mxu0
        %v1295 = vadd.f32 0.0, %v1294
        %v1296 = vpop.f32.mrb[0].mxu0
        %v1297 = vpop.f32.mrb[0].mxu0
        %v1298 = vadd.f32 0.0, %v1297
        %v1299 = vpop.f32.mrb[0].mxu0
        %1300 = vmatprep.mubr.bf16.mxu0 0
        %1301 = vmatmul.mubr.bf16.gmra.mrb[0].mxu0 %v1118
        %v1302 = vpop.f32.mrb[0].mxu0
        %v1303 = vadd.f32 0.0, %v1302
        %v1304 = vpop.f32.mrb[0].mxu0
        %v1305 = vpop.f32.mrb[0].mxu0
        %v1306 = vadd.f32 0.0, %v1305
        %v1307 = vpop.f32.mrb[0].mxu0
        %1308 = vmatprep.mubr.bf16.mxu0 0
        %1309 = vmatmul.mubr.bf16.gmra.mrb[0].mxu0 %v1119
        %v1310 = vpop.f32.mrb[0].mxu0
        %v1311 = vadd.f32 0.0, %v1310
        %v1312 = vpop.f32.mrb[0].mxu0
        %v1313 = vpop.f32.mrb[0].mxu0
        %v1314 = vadd.f32 0.0, %v1313
        %v1315 = vpop.f32.mrb[0].mxu0
        %1316 = vmatprep.mubr.bf16.mxu0 0
        %1317 = vmatmul.mubr.bf16.gmra.mrb[0].mxu0 %v1120
        %v1318 = vpop.f32.mrb[0].mxu0
        %v1319 = vadd.f32 0.0, %v1318
        %v1320 = vpop.f32.mrb[0].mxu0
        %v1321 = vpop.f32.mrb[0].mxu0
        %v1322 = vadd.f32 0.0, %v1321
        %v1323 = vpop.f32.mrb[0].mxu0
        %1324 = vmatprep.mubr.bf16.mxu0 0
        %1325 = vmatmul.mubr.bf16.gmra.mrb[0].mxu0 %v1121
        %v1326 = vpop.f32.mrb[0].mxu0
        %v1327 = vadd.f32 0.0, %v1326
        %v1328 = vpop.f32.mrb[0].mxu0
        %v1329 = vpop.f32.mrb[0].mxu0
        %v1330 = vadd.f32 0.0, %v1329
        %v1331 = vpop.f32.mrb[0].mxu0
        %1332 = vmatprep.mubr.bf16.mxu0 0
        %1333 = vmatmul.mubr.bf16.gmra.mrb[0].mxu0 %v1122
        %v1334 = vpop.f32.mrb[0].mxu0
        %v1335 = vadd.f32 0.0, %v1334
        %v1336 = vpop.f32.mrb[0].mxu0
        %v1337 = vpop.f32.mrb[0].mxu0
        %v1338 = vadd.f32 0.0, %v1337
        %v1339 = vpop.f32.mrb[0].mxu0
        %1340 = vmatprep.mubr.bf16.mxu0 0
        %1341 = vmatmul.mubr.bf16.gmra.mrb[0].mxu0 %v1123
        %v1342 = vpop.f32.mrb[0].mxu0
        %v1343 = vadd.f32 0.0, %v1342
        %v1344 = vpop.f32.mrb[0].mxu0
        %v1345 = vpop.f32.mrb[0].mxu0
        %v1346 = vadd.f32 0.0, %v1345
        %v1347 = vpop.f32.mrb[0].mxu0
        %1348 = vdwg.mxu0
        %v1349 = vld [vmem:[#allocation2] sm:$0xff]
        %v1350 = vld [vmem:[#allocation2 + $0x8] sm:$0xff]
        %v1351 = vld [vmem:[#allocation2 + $0x10] sm:$0xff]
        %v1352 = vld [vmem:[#allocation2 + $0x18] sm:$0xff]
        %v1353 = vld [vmem:[#allocation2 + $0x20] sm:$0xff]
        %v1354 = vld [vmem:[#allocation2 + $0x28] sm:$0xff]
        %v1355 = vld [vmem:[#allocation2 + $0x30] sm:$0xff]
        %v1356 = vld [vmem:[#allocation2 + $0x38] sm:$0xff]
        %v1357 = vld [vmem:[#allocation2 + $0x40] sm:$0xff]
        %v1358 = vld [vmem:[#allocation2 + $0x48] sm:$0xff]
        %v1359 = vld [vmem:[#allocation2 + $0x50] sm:$0xff]
        %v1360 = vld [vmem:[#allocation2 + $0x58] sm:$0xff]
        %v1361 = vld [vmem:[#allocation2 + $0x60] sm:$0xff]
        %v1362 = vld [vmem:[#allocation2 + $0x68] sm:$0xff]
        %v1363 = vld [vmem:[#allocation2 + $0x70] sm:$0xff]
        %v1364 = vld [vmem:[#allocation2 + $0x78] sm:$0xff]
        %v1365 = vld [vmem:[#allocation2 + $0x80] sm:$0xff]
        %v1366 = vld [vmem:[#allocation2 + $0x88] sm:$0xff]
        %v1367 = vld [vmem:[#allocation2 + $0x90] sm:$0xff]
        %v1368 = vld [vmem:[#allocation2 + $0x98] sm:$0xff]
        %v1369 = vld [vmem:[#allocation2 + $0xa0] sm:$0xff]
        %v1370 = vld [vmem:[#allocation2 + $0xa8] sm:$0xff]
        %v1371 = vld [vmem:[#allocation2 + $0xb0] sm:$0xff]
        %v1372 = vld [vmem:[#allocation2 + $0xb8] sm:$0xff]
        %v1373 = vld [vmem:[#allocation2 + $0xc0] sm:$0xff]
        %v1374 = vld [vmem:[#allocation2 + $0xc8] sm:$0xff]
        %v1375 = vld [vmem:[#allocation2 + $0xd0] sm:$0xff]
        %v1376 = vld [vmem:[#allocation2 + $0xd8] sm:$0xff]
        %v1377 = vld [vmem:[#allocation2 + $0xe0] sm:$0xff]
        %v1378 = vld [vmem:[#allocation2 + $0xe8] sm:$0xff]
        %v1379 = vld [vmem:[#allocation2 + $0xf0] sm:$0xff]
        %v1380 = vld [vmem:[#allocation2 + $0xf8] sm:$0xff]
        %v1381 = vadd.f32 %v1349, %v1223
        %v1382 = vadd.f32 %v1350, %v1226
        %v1383 = vadd.f32 %v1351, %v1231
        %v1384 = vadd.f32 %v1352, %v1234
        %v1385 = vadd.f32 %v1353, %v1239
        %v1386 = vadd.f32 %v1354, %v1242
        %v1387 = vadd.f32 %v1355, %v1247
        %v1388 = vadd.f32 %v1356, %v1250
        %v1389 = vadd.f32 %v1357, %v1255
        %v1390 = vadd.f32 %v1358, %v1258
        %v1391 = vadd.f32 %v1359, %v1263
        %v1392 = vadd.f32 %v1360, %v1266
        %v1393 = vadd.f32 %v1361, %v1271
        %v1394 = vadd.f32 %v1362, %v1274
        %v1395 = vadd.f32 %v1363, %v1279
        %v1396 = vadd.f32 %v1364, %v1282
        %v1397 = vadd.f32 %v1365, %v1287
        %v1398 = vadd.f32 %v1366, %v1290
        %v1399 = vadd.f32 %v1367, %v1295
        %v1400 = vadd.f32 %v1368, %v1298
        %v1401 = vadd.f32 %v1369, %v1303
        %v1402 = vadd.f32 %v1370, %v1306
        %v1403 = vadd.f32 %v1371, %v1311
        %v1404 = vadd.f32 %v1372, %v1314
        %v1405 = vadd.f32 %v1373, %v1319
        %v1406 = vadd.f32 %v1374, %v1322
        %v1407 = vadd.f32 %v1375, %v1327
        %v1408 = vadd.f32 %v1376, %v1330
        %v1409 = vadd.f32 %v1377, %v1335
        %v1410 = vadd.f32 %v1378, %v1338
        %v1411 = vadd.f32 %v1379, %v1343
        %v1412 = vadd.f32 %v1380, %v1346
        %1413 = vst [vmem:[#allocation2] sm:$0xff] %v1381
        %1414 = vst [vmem:[#allocation2 + $0x8] sm:$0xff] %v1382
        %1415 = vst [vmem:[#allocation2 + $0x10] sm:$0xff] %v1383
        %1416 = vst [vmem:[#allocation2 + $0x18] sm:$0xff] %v1384
        %1417 = vst [vmem:[#allocation2 + $0x20] sm:$0xff] %v1385
        %1418 = vst [vmem:[#allocation2 + $0x28] sm:$0xff] %v1386
        %1419 = vst [vmem:[#allocation2 + $0x30] sm:$0xff] %v1387
        %1420 = vst [vmem:[#allocation2 + $0x38] sm:$0xff] %v1388
        %1421 = vst [vmem:[#allocation2 + $0x40] sm:$0xff] %v1389
        %1422 = vst [vmem:[#allocation2 + $0x48] sm:$0xff] %v1390
        %1423 = vst [vmem:[#allocation2 + $0x50] sm:$0xff] %v1391
        %1424 = vst [vmem:[#allocation2 + $0x58] sm:$0xff] %v1392
        %1425 = vst [vmem:[#allocation2 + $0x60] sm:$0xff] %v1393
        %1426 = vst [vmem:[#allocation2 + $0x68] sm:$0xff] %v1394
        %1427 = vst [vmem:[#allocation2 + $0x70] sm:$0xff] %v1395
        %1428 = vst [vmem:[#allocation2 + $0x78] sm:$0xff] %v1396
        %1429 = vst [vmem:[#allocation2 + $0x80] sm:$0xff] %v1397
        %1430 = vst [vmem:[#allocation2 + $0x88] sm:$0xff] %v1398
        %1431 = vst [vmem:[#allocation2 + $0x90] sm:$0xff] %v1399
        %1432 = vst [vmem:[#allocation2 + $0x98] sm:$0xff] %v1400
        %1433 = vst [vmem:[#allocation2 + $0xa0] sm:$0xff] %v1401
        %1434 = vst [vmem:[#allocation2 + $0xa8] sm:$0xff] %v1402
        %1435 = vst [vmem:[#allocation2 + $0xb0] sm:$0xff] %v1403
        %1436 = vst [vmem:[#allocation2 + $0xb8] sm:$0xff] %v1404
        %1437 = vst [vmem:[#allocation2 + $0xc0] sm:$0xff] %v1405
        %1438 = vst [vmem:[#allocation2 + $0xc8] sm:$0xff] %v1406
        %1439 = vst [vmem:[#allocation2 + $0xd0] sm:$0xff] %v1407
        %1440 = vst [vmem:[#allocation2 + $0xd8] sm:$0xff] %v1408
        %1441 = vst [vmem:[#allocation2 + $0xe0] sm:$0xff] %v1409
        %1442 = vst [vmem:[#allocation2 + $0xe8] sm:$0xff] %v1410
        %1443 = vst [vmem:[#allocation2 + $0xf0] sm:$0xff] %v1411
        %1444 = vst [vmem:[#allocation2 + $0xf8] sm:$0xff] %v1412
        %v1445 = vld [vmem:[%s229] sm:$0xe]
        %v1446 = vld [vmem:[%s229 + $0x4] sm:$0xf]
        %v1447 = vld [vmem:[%s229 + $0x8] sm:$0x1]
        %v1448 = vld [vmem:[%s229 + $0xc] sm:$0xe]
        %v1449 = vld [vmem:[%s229 + $0x10] sm:$0xf]
        %v1450 = vld [vmem:[%s229 + $0x14] sm:$0x1]
        %v1451 = vld [vmem:[%s229 + $0x18] sm:$0xe]
        %v1452 = vld [vmem:[%s229 + $0x1c] sm:$0xf]
        %v1453 = vld [vmem:[%s229 + $0x20] sm:$0x1]
        %v1454 = vld [vmem:[%s229 + $0x24] sm:$0xe]
        %v1455 = vld [vmem:[%s229 + $0x28] sm:$0xf]
        %v1456 = vld [vmem:[%s229 + $0x2c] sm:$0x1]
        %v1457 = vld [vmem:[%s229 + $0x30] sm:$0xe]
        %v1458 = vld [vmem:[%s229 + $0x34] sm:$0xf]
        %v1459 = vld [vmem:[%s229 + $0x38] sm:$0x1]
        %v1460 = vld [vmem:[%s229 + $0x3c] sm:$0xe]
        %v1461 = vld [vmem:[%s229 + $0x40] sm:$0xf]
        %v1462 = vld [vmem:[%s229 + $0x44] sm:$0x1]
        %v1463 = vld [vmem:[%s229 + $0x48] sm:$0xe]
        %v1464 = vld [vmem:[%s229 + $0x4c] sm:$0xf]
        %v1465 = vld [vmem:[%s229 + $0x50] sm:$0x1]
        %v1466 = vld [vmem:[%s229 + $0x54] sm:$0xe]
        %v1467 = vld [vmem:[%s229 + $0x58] sm:$0xf]
        %v1468 = vld [vmem:[%s229 + $0x5c] sm:$0x1]
        %v1469 = vld [vmem:[%s229 + $0x60] sm:$0xe]
        %v1470 = vld [vmem:[%s229 + $0x64] sm:$0xf]
        %v1471 = vld [vmem:[%s229 + $0x68] sm:$0x1]
        %v1472 = vld [vmem:[%s229 + $0x6c] sm:$0xe]
        %v1473 = vld [vmem:[%s229 + $0x70] sm:$0xf]
        %v1474 = vld [vmem:[%s229 + $0x74] sm:$0x1]
        %v1475 = vld [vmem:[%s229 + $0x78] sm:$0xe]
        %v1476 = vld [vmem:[%s229 + $0x7c] sm:$0xf]
        %v1477 = vld [vmem:[%s229 + $0x80] sm:$0x1]
        %v1478 = vld [vmem:[%s229 + $0x84] sm:$0xe]
        %v1479 = vld [vmem:[%s229 + $0x88] sm:$0xf]
        %v1480 = vld [vmem:[%s229 + $0x8c] sm:$0x1]
        %v1481 = vld [vmem:[%s229 + $0x90] sm:$0xe]
        %v1482 = vld [vmem:[%s229 + $0x94] sm:$0xf]
        %v1483 = vld [vmem:[%s229 + $0x98] sm:$0x1]
        %v1484 = vld [vmem:[%s229 + $0x9c] sm:$0xe]
        %v1485 = vld [vmem:[%s229 + $0xa0] sm:$0xf]
        %v1486 = vld [vmem:[%s229 + $0xa4] sm:$0x1]
        %v1487 = vld [vmem:[%s229 + $0xa8] sm:$0xe]
        %v1488 = vld [vmem:[%s229 + $0xac] sm:$0xf]
        %v1489 = vld [vmem:[%s229 + $0xb0] sm:$0x1]
        %v1490 = vld [vmem:[%s229 + $0xb4] sm:$0xe]
        %v1491 = vld [vmem:[%s229 + $0xb8] sm:$0xf]
        %v1492 = vld [vmem:[%s229 + $0xbc] sm:$0x1]
        %vm1541 = vcmask 1042432
        %vm1542 = vcmask 1046532
        %vm1543 = vmor %vm1541, %vm1542
        %v1544 = vrot.slane %v1445, 5
        %v1545 = vrot.slane %v1544, 4
        %v1546 = vrot.slane %v1446, 5
        %v1547 = vsel %vm1543, %v1545, %v1546
        %v1548 = vrot.slane %v1546, 4
        %v1549 = vrot.slane %v1447, 5
        %v1550 = vsel %vm1543, %v1548, %v1549
        %v1551 = vrot.slane %v1448, 5
        %v1552 = vrot.slane %v1551, 4
        %v1553 = vrot.slane %v1449, 5
        %v1554 = vsel %vm1543, %v1552, %v1553
        %v1555 = vrot.slane %v1553, 4
        %v1556 = vrot.slane %v1450, 5
        %v1557 = vsel %vm1543, %v1555, %v1556
        %v1558 = vrot.slane %v1451, 5
        %v1559 = vrot.slane %v1558, 4
        %v1560 = vrot.slane %v1452, 5
        %v1561 = vsel %vm1543, %v1559, %v1560
        %v1562 = vrot.slane %v1560, 4
        %v1563 = vrot.slane %v1453, 5
        %v1564 = vsel %vm1543, %v1562, %v1563
        %v1565 = vrot.slane %v1454, 5
        %v1566 = vrot.slane %v1565, 4
        %v1567 = vrot.slane %v1455, 5
        %v1568 = vsel %vm1543, %v1566, %v1567
        %v1569 = vrot.slane %v1567, 4
        %v1570 = vrot.slane %v1456, 5
        %v1571 = vsel %vm1543, %v1569, %v1570
        %v1572 = vrot.slane %v1457, 5
        %v1573 = vrot.slane %v1572, 4
        %v1574 = vrot.slane %v1458, 5
        %v1575 = vsel %vm1543, %v1573, %v1574
        %v1576 = vrot.slane %v1574, 4
        %v1577 = vrot.slane %v1459, 5
        %v1578 = vsel %vm1543, %v1576, %v1577
        %v1579 = vrot.slane %v1460, 5
        %v1580 = vrot.slane %v1579, 4
        %v1581 = vrot.slane %v1461, 5
        %v1582 = vsel %vm1543, %v1580, %v1581
        %v1583 = vrot.slane %v1581, 4
        %v1584 = vrot.slane %v1462, 5
        %v1585 = vsel %vm1543, %v1583, %v1584
        %v1586 = vrot.slane %v1463, 5
        %v1587 = vrot.slane %v1586, 4
        %v1588 = vrot.slane %v1464, 5
        %v1589 = vsel %vm1543, %v1587, %v1588
        %v1590 = vrot.slane %v1588, 4
        %v1591 = vrot.slane %v1465, 5
        %v1592 = vsel %vm1543, %v1590, %v1591
        %v1593 = vrot.slane %v1466, 5
        %v1594 = vrot.slane %v1593, 4
        %v1595 = vrot.slane %v1467, 5
        %v1596 = vsel %vm1543, %v1594, %v1595
        %v1597 = vrot.slane %v1595, 4
        %v1598 = vrot.slane %v1468, 5
        %v1599 = vsel %vm1543, %v1597, %v1598
        %v1600 = vrot.slane %v1469, 5
        %v1601 = vrot.slane %v1600, 4
        %v1602 = vrot.slane %v1470, 5
        %v1603 = vsel %vm1543, %v1601, %v1602
        %v1604 = vrot.slane %v1602, 4
        %v1605 = vrot.slane %v1471, 5
        %v1606 = vsel %vm1543, %v1604, %v1605
        %v1607 = vrot.slane %v1472, 5
        %v1608 = vrot.slane %v1607, 4
        %v1609 = vrot.slane %v1473, 5
        %v1610 = vsel %vm1543, %v1608, %v1609
        %v1611 = vrot.slane %v1609, 4
        %v1612 = vrot.slane %v1474, 5
        %v1613 = vsel %vm1543, %v1611, %v1612
        %v1614 = vrot.slane %v1475, 5
        %v1615 = vrot.slane %v1614, 4
        %v1616 = vrot.slane %v1476, 5
        %v1617 = vsel %vm1543, %v1615, %v1616
        %v1618 = vrot.slane %v1616, 4
        %v1619 = vrot.slane %v1477, 5
        %v1620 = vsel %vm1543, %v1618, %v1619
        %v1621 = vrot.slane %v1478, 5
        %v1622 = vrot.slane %v1621, 4
        %v1623 = vrot.slane %v1479, 5
        %v1624 = vsel %vm1543, %v1622, %v1623
        %v1625 = vrot.slane %v1623, 4
        %v1626 = vrot.slane %v1480, 5
        %v1627 = vsel %vm1543, %v1625, %v1626
        %v1628 = vrot.slane %v1481, 5
        %v1629 = vrot.slane %v1628, 4
        %v1630 = vrot.slane %v1482, 5
        %v1631 = vsel %vm1543, %v1629, %v1630
        %v1632 = vrot.slane %v1630, 4
        %v1633 = vrot.slane %v1483, 5
        %v1634 = vsel %vm1543, %v1632, %v1633
        %v1635 = vrot.slane %v1484, 5
        %v1636 = vrot.slane %v1635, 4
        %v1637 = vrot.slane %v1485, 5
        %v1638 = vsel %vm1543, %v1636, %v1637
        %v1639 = vrot.slane %v1637, 4
        %v1640 = vrot.slane %v1486, 5
        %v1641 = vsel %vm1543, %v1639, %v1640
        %v1642 = vrot.slane %v1487, 5
        %v1643 = vrot.slane %v1642, 4
        %v1644 = vrot.slane %v1488, 5
        %v1645 = vsel %vm1543, %v1643, %v1644
        %v1646 = vrot.slane %v1644, 4
        %v1647 = vrot.slane %v1489, 5
        %v1648 = vsel %vm1543, %v1646, %v1647
        %v1649 = vrot.slane %v1490, 5
        %v1650 = vrot.slane %v1649, 4
        %v1651 = vrot.slane %v1491, 5
        %v1652 = vsel %vm1543, %v1650, %v1651
        %v1653 = vrot.slane %v1651, 4
        %v1654 = vrot.slane %v1492, 5
        %v1655 = vsel %vm1543, %v1653, %v1654
        %s1656 = scalar_lea.vmem %s233, 128
        %v1657 = vld [vmem:[%s1656] sm:$0xf]
        %v1658 = vld [vmem:[%s1656 + $0x4] sm:$0xf]
        %v1659 = vld [vmem:[%s1656 + $0x8] sm:$0xf]
        %v1660 = vld [vmem:[%s1656 + $0xc] sm:$0xf]
        %v1661 = vld [vmem:[%s1656 + $0x10] sm:$0xf]
        %v1662 = vld [vmem:[%s1656 + $0x14] sm:$0xf]
        %v1663 = vld [vmem:[%s1656 + $0x18] sm:$0xf]
        %v1664 = vld [vmem:[%s1656 + $0x1c] sm:$0xf]
        %v1665 = vld [vmem:[%s1656 + $0x20] sm:$0xf]
        %v1666 = vld [vmem:[%s1656 + $0x24] sm:$0xf]
        %v1667 = vld [vmem:[%s1656 + $0x28] sm:$0xf]
        %v1668 = vld [vmem:[%s1656 + $0x2c] sm:$0xf]
        %v1669 = vld [vmem:[%s1656 + $0x30] sm:$0xf]
        %v1670 = vld [vmem:[%s1656 + $0x34] sm:$0xf]
        %v1671 = vld [vmem:[%s1656 + $0x38] sm:$0xf]
        %v1672 = vld [vmem:[%s1656 + $0x3c] sm:$0xf]
        %v1673 = vunpack.c.l.b16 %v1547
        %v1674 = vunpack.c.l.b16 %v1550
        %v1675 = vunpack.c.l.b16 %v1554
        %v1676 = vunpack.c.l.b16 %v1557
        %v1677 = vunpack.c.l.b16 %v1561
        %v1678 = vunpack.c.l.b16 %v1564
        %v1679 = vunpack.c.l.b16 %v1568
        %v1680 = vunpack.c.l.b16 %v1571
        %v1681 = vunpack.c.l.b16 %v1575
        %v1682 = vunpack.c.l.b16 %v1578
        %v1683 = vunpack.c.l.b16 %v1582
        %v1684 = vunpack.c.l.b16 %v1585
        %v1685 = vunpack.c.l.b16 %v1589
        %v1686 = vunpack.c.l.b16 %v1592
        %v1687 = vunpack.c.l.b16 %v1596
        %v1688 = vunpack.c.l.b16 %v1599
        %v1689 = vunpack.c.l.b16 %v1603
        %v1690 = vunpack.c.l.b16 %v1606
        %v1691 = vunpack.c.l.b16 %v1610
        %v1692 = vunpack.c.l.b16 %v1613
        %v1693 = vunpack.c.l.b16 %v1617
        %v1694 = vunpack.c.l.b16 %v1620
        %v1695 = vunpack.c.l.b16 %v1624
        %v1696 = vunpack.c.l.b16 %v1627
        %v1697 = vunpack.c.l.b16 %v1631
        %v1698 = vunpack.c.l.b16 %v1634
        %v1699 = vunpack.c.l.b16 %v1638
        %v1700 = vunpack.c.l.b16 %v1641
        %v1701 = vunpack.c.l.b16 %v1645
        %v1702 = vunpack.c.l.b16 %v1648
        %v1703 = vunpack.c.l.b16 %v1652
        %v1704 = vunpack.c.l.b16 %v1655
        %v1705 = vpack.c.b16 %v1674, %v1673
        %v1706 = vpack.c.b16 %v1676, %v1675
        %v1707 = vpack.c.b16 %v1678, %v1677
        %v1708 = vpack.c.b16 %v1680, %v1679
        %v1709 = vpack.c.b16 %v1682, %v1681
        %v1710 = vpack.c.b16 %v1684, %v1683
        %v1711 = vpack.c.b16 %v1686, %v1685
        %v1712 = vpack.c.b16 %v1688, %v1687
        %v1713 = vpack.c.b16 %v1690, %v1689
        %v1714 = vpack.c.b16 %v1692, %v1691
        %v1715 = vpack.c.b16 %v1694, %v1693
        %v1716 = vpack.c.b16 %v1696, %v1695
        %v1717 = vpack.c.b16 %v1698, %v1697
        %v1718 = vpack.c.b16 %v1700, %v1699
        %v1719 = vpack.c.b16 %v1702, %v1701
        %v1720 = vpack.c.b16 %v1704, %v1703
        %v1753 = vunpack.c.l.b16 %v1657
        %v1754 = vunpack.c.l.b16 %v1658
        %v1755 = vunpack.c.l.b16 %v1659
        %v1756 = vunpack.c.l.b16 %v1660
        %v1757 = vunpack.c.l.b16 %v1661
        %v1758 = vunpack.c.l.b16 %v1662
        %v1759 = vunpack.c.l.b16 %v1663
        %v1760 = vunpack.c.l.b16 %v1664
        %v1761 = vunpack.c.l.b16 %v1665
        %v1762 = vunpack.c.l.b16 %v1666
        %v1763 = vunpack.c.l.b16 %v1667
        %v1764 = vunpack.c.l.b16 %v1668
        %v1765 = vunpack.c.l.b16 %v1669
        %v1766 = vunpack.c.l.b16 %v1670
        %v1767 = vunpack.c.l.b16 %v1671
        %v1768 = vunpack.c.l.b16 %v1672
        %v1769 = vpack.c.b16 %v1754, %v1753
        %v1770 = vpack.c.b16 %v1756, %v1755
        %v1771 = vpack.c.b16 %v1758, %v1757
        %v1772 = vpack.c.b16 %v1760, %v1759
        %v1773 = vpack.c.b16 %v1762, %v1761
        %v1774 = vpack.c.b16 %v1764, %v1763
        %v1775 = vpack.c.b16 %v1766, %v1765
        %v1776 = vpack.c.b16 %v1768, %v1767
        %1785 = vmatprep.subr.bf16.mxu0 0
        %1786 = vmatpush1.bf16.msra.mxu0 %v1769
        %1787 = vmatprep.subr.bf16.mxu0 0
        %1788 = vmatpush1.bf16.msra.mxu0 %v1770
        %1789 = vmatprep.subr.bf16.mxu0 0
        %1790 = vmatpush1.bf16.msra.mxu0 %v1771
        %1791 = vmatprep.subr.bf16.mxu0 0
        %1792 = vmatpush1.bf16.msra.mxu0 %v1772
        %1793 = vmatprep.subr.bf16.mxu0 0
        %1794 = vmatpush1.bf16.msra.mxu0 %v1773
        %1795 = vmatprep.subr.bf16.mxu0 0
        %1796 = vmatpush1.bf16.msra.mxu0 %v1774
        %1797 = vmatprep.subr.bf16.mxu0 0
        %1798 = vmatpush1.bf16.msra.mxu0 %v1775
        %1799 = vmatprep.subr.bf16.mxu0 0
        %1800 = vmatpush1.bf16.msra.mxu0 %v1776
        %1801 = vmatprep.subr.bf16.mxu0 0
        %1802 = vmatpush1.bf16.msra.mxu0 0
        %1803 = vmatprep.subr.bf16.mxu0 0
        %1804 = vmatpush1.bf16.msra.mxu0 0
        %1805 = vmatprep.subr.bf16.mxu0 0
        %1806 = vmatpush1.bf16.msra.mxu0 0
        %1807 = vmatprep.subr.bf16.mxu0 0
        %1808 = vmatpush1.bf16.msra.mxu0 0
        %1809 = vmatprep.subr.bf16.mxu0 0
        %1810 = vmatpush1.bf16.msra.mxu0 0
        %1811 = vmatprep.subr.bf16.mxu0 0
        %1812 = vmatpush1.bf16.msra.mxu0 0
        %1813 = vmatprep.subr.bf16.mxu0 0
        %1814 = vmatpush1.bf16.msra.mxu0 0
        %1815 = vmatprep.subr.bf16.mxu0 0
        %1816 = vmatpush1.bf16.msra.mxu0 0
        %1817 = vmatprep.mubr.bf16.mxu0 0
        %1818 = vmatmul.mubr.bf16.gmra.mrb[0].mxu0 %v1705
        %v1819 = vpop.f32.mrb[0].mxu0
        %v1820 = vadd.f32 0.0, %v1819
        %v1821 = vpop.f32.mrb[0].mxu0
        %v1822 = vpop.f32.mrb[0].mxu0
        %v1823 = vadd.f32 0.0, %v1822
        %v1824 = vpop.f32.mrb[0].mxu0
        %1825 = vmatprep.mubr.bf16.mxu0 0
        %1826 = vmatmul.mubr.bf16.gmra.mrb[0].mxu0 %v1706
        %v1827 = vpop.f32.mrb[0].mxu0
        %v1828 = vadd.f32 0.0, %v1827
        %v1829 = vpop.f32.mrb[0].mxu0
        %v1830 = vpop.f32.mrb[0].mxu0
        %v1831 = vadd.f32 0.0, %v1830
        %v1832 = vpop.f32.mrb[0].mxu0
        %1833 = vmatprep.mubr.bf16.mxu0 0
        %1834 = vmatmul.mubr.bf16.gmra.mrb[0].mxu0 %v1707
        %v1835 = vpop.f32.mrb[0].mxu0
        %v1836 = vadd.f32 0.0, %v1835
        %v1837 = vpop.f32.mrb[0].mxu0
        %v1838 = vpop.f32.mrb[0].mxu0
        %v1839 = vadd.f32 0.0, %v1838
        %v1840 = vpop.f32.mrb[0].mxu0
        %1841 = vmatprep.mubr.bf16.mxu0 0
        %1842 = vmatmul.mubr.bf16.gmra.mrb[0].mxu0 %v1708
        %v1843 = vpop.f32.mrb[0].mxu0
        %v1844 = vadd.f32 0.0, %v1843
        %v1845 = vpop.f32.mrb[0].mxu0
        %v1846 = vpop.f32.mrb[0].mxu0
        %v1847 = vadd.f32 0.0, %v1846
        %v1848 = vpop.f32.mrb[0].mxu0
        %1849 = vmatprep.mubr.bf16.mxu0 0
        %1850 = vmatmul.mubr.bf16.gmra.mrb[0].mxu0 %v1709
        %v1851 = vpop.f32.mrb[0].mxu0
        %v1852 = vadd.f32 0.0, %v1851
        %v1853 = vpop.f32.mrb[0].mxu0
        %v1854 = vpop.f32.mrb[0].mxu0
        %v1855 = vadd.f32 0.0, %v1854
        %v1856 = vpop.f32.mrb[0].mxu0
        %1857 = vmatprep.mubr.bf16.mxu0 0
        %1858 = vmatmul.mubr.bf16.gmra.mrb[0].mxu0 %v1710
        %v1859 = vpop.f32.mrb[0].mxu0
        %v1860 = vadd.f32 0.0, %v1859
        %v1861 = vpop.f32.mrb[0].mxu0
        %v1862 = vpop.f32.mrb[0].mxu0
        %v1863 = vadd.f32 0.0, %v1862
        %v1864 = vpop.f32.mrb[0].mxu0
        %1865 = vmatprep.mubr.bf16.mxu0 0
        %1866 = vmatmul.mubr.bf16.gmra.mrb[0].mxu0 %v1711
        %v1867 = vpop.f32.mrb[0].mxu0
        %v1868 = vadd.f32 0.0, %v1867
        %v1869 = vpop.f32.mrb[0].mxu0
        %v1870 = vpop.f32.mrb[0].mxu0
        %v1871 = vadd.f32 0.0, %v1870
        %v1872 = vpop.f32.mrb[0].mxu0
        %1873 = vmatprep.mubr.bf16.mxu0 0
        %1874 = vmatmul.mubr.bf16.gmra.mrb[0].mxu0 %v1712
        %v1875 = vpop.f32.mrb[0].mxu0
        %v1876 = vadd.f32 0.0, %v1875
        %v1877 = vpop.f32.mrb[0].mxu0
        %v1878 = vpop.f32.mrb[0].mxu0
        %v1879 = vadd.f32 0.0, %v1878
        %v1880 = vpop.f32.mrb[0].mxu0
        %1881 = vmatprep.mubr.bf16.mxu0 0
        %1882 = vmatmul.mubr.bf16.gmra.mrb[0].mxu0 %v1713
        %v1883 = vpop.f32.mrb[0].mxu0
        %v1884 = vadd.f32 0.0, %v1883
        %v1885 = vpop.f32.mrb[0].mxu0
        %v1886 = vpop.f32.mrb[0].mxu0
        %v1887 = vadd.f32 0.0, %v1886
        %v1888 = vpop.f32.mrb[0].mxu0
        %1889 = vmatprep.mubr.bf16.mxu0 0
        %1890 = vmatmul.mubr.bf16.gmra.mrb[0].mxu0 %v1714
        %v1891 = vpop.f32.mrb[0].mxu0
        %v1892 = vadd.f32 0.0, %v1891
        %v1893 = vpop.f32.mrb[0].mxu0
        %v1894 = vpop.f32.mrb[0].mxu0
        %v1895 = vadd.f32 0.0, %v1894
        %v1896 = vpop.f32.mrb[0].mxu0
        %1897 = vmatprep.mubr.bf16.mxu0 0
        %1898 = vmatmul.mubr.bf16.gmra.mrb[0].mxu0 %v1715
        %v1899 = vpop.f32.mrb[0].mxu0
        %v1900 = vadd.f32 0.0, %v1899
        %v1901 = vpop.f32.mrb[0].mxu0
        %v1902 = vpop.f32.mrb[0].mxu0
        %v1903 = vadd.f32 0.0, %v1902
        %v1904 = vpop.f32.mrb[0].mxu0
        %1905 = vmatprep.mubr.bf16.mxu0 0
        %1906 = vmatmul.mubr.bf16.gmra.mrb[0].mxu0 %v1716
        %v1907 = vpop.f32.mrb[0].mxu0
        %v1908 = vadd.f32 0.0, %v1907
        %v1909 = vpop.f32.mrb[0].mxu0
        %v1910 = vpop.f32.mrb[0].mxu0
        %v1911 = vadd.f32 0.0, %v1910
        %v1912 = vpop.f32.mrb[0].mxu0
        %1913 = vmatprep.mubr.bf16.mxu0 0
        %1914 = vmatmul.mubr.bf16.gmra.mrb[0].mxu0 %v1717
        %v1915 = vpop.f32.mrb[0].mxu0
        %v1916 = vadd.f32 0.0, %v1915
        %v1917 = vpop.f32.mrb[0].mxu0
        %v1918 = vpop.f32.mrb[0].mxu0
        %v1919 = vadd.f32 0.0, %v1918
        %v1920 = vpop.f32.mrb[0].mxu0
        %1921 = vmatprep.mubr.bf16.mxu0 0
        %1922 = vmatmul.mubr.bf16.gmra.mrb[0].mxu0 %v1718
        %v1923 = vpop.f32.mrb[0].mxu0
        %v1924 = vadd.f32 0.0, %v1923
        %v1925 = vpop.f32.mrb[0].mxu0
        %v1926 = vpop.f32.mrb[0].mxu0
        %v1927 = vadd.f32 0.0, %v1926
        %v1928 = vpop.f32.mrb[0].mxu0
        %1929 = vmatprep.mubr.bf16.mxu0 0
        %1930 = vmatmul.mubr.bf16.gmra.mrb[0].mxu0 %v1719
        %v1931 = vpop.f32.mrb[0].mxu0
        %v1932 = vadd.f32 0.0, %v1931
        %v1933 = vpop.f32.mrb[0].mxu0
        %v1934 = vpop.f32.mrb[0].mxu0
        %v1935 = vadd.f32 0.0, %v1934
        %v1936 = vpop.f32.mrb[0].mxu0
        %1937 = vmatprep.mubr.bf16.mxu0 0
        %1938 = vmatmul.mubr.bf16.gmra.mrb[0].mxu0 %v1720
        %v1939 = vpop.f32.mrb[0].mxu0
        %v1940 = vadd.f32 0.0, %v1939
        %v1941 = vpop.f32.mrb[0].mxu0
        %v1942 = vpop.f32.mrb[0].mxu0
        %v1943 = vadd.f32 0.0, %v1942
        %v1944 = vpop.f32.mrb[0].mxu0
        %1945 = vdwg.mxu0
        %v1946 = vld [vmem:[#allocation2] sm:$0xff]
        %v1947 = vld [vmem:[#allocation2 + $0x8] sm:$0xff]
        %v1948 = vld [vmem:[#allocation2 + $0x10] sm:$0xff]
        %v1949 = vld [vmem:[#allocation2 + $0x18] sm:$0xff]
        %v1950 = vld [vmem:[#allocation2 + $0x20] sm:$0xff]
        %v1951 = vld [vmem:[#allocation2 + $0x28] sm:$0xff]
        %v1952 = vld [vmem:[#allocation2 + $0x30] sm:$0xff]
        %v1953 = vld [vmem:[#allocation2 + $0x38] sm:$0xff]
        %v1954 = vld [vmem:[#allocation2 + $0x40] sm:$0xff]
        %v1955 = vld [vmem:[#allocation2 + $0x48] sm:$0xff]
        %v1956 = vld [vmem:[#allocation2 + $0x50] sm:$0xff]
        %v1957 = vld [vmem:[#allocation2 + $0x58] sm:$0xff]
        %v1958 = vld [vmem:[#allocation2 + $0x60] sm:$0xff]
        %v1959 = vld [vmem:[#allocation2 + $0x68] sm:$0xff]
        %v1960 = vld [vmem:[#allocation2 + $0x70] sm:$0xff]
        %v1961 = vld [vmem:[#allocation2 + $0x78] sm:$0xff]
        %v1962 = vld [vmem:[#allocation2 + $0x80] sm:$0xff]
        %v1963 = vld [vmem:[#allocation2 + $0x88] sm:$0xff]
        %v1964 = vld [vmem:[#allocation2 + $0x90] sm:$0xff]
        %v1965 = vld [vmem:[#allocation2 + $0x98] sm:$0xff]
        %v1966 = vld [vmem:[#allocation2 + $0xa0] sm:$0xff]
        %v1967 = vld [vmem:[#allocation2 + $0xa8] sm:$0xff]
        %v1968 = vld [vmem:[#allocation2 + $0xb0] sm:$0xff]
        %v1969 = vld [vmem:[#allocation2 + $0xb8] sm:$0xff]
        %v1970 = vld [vmem:[#allocation2 + $0xc0] sm:$0xff]
        %v1971 = vld [vmem:[#allocation2 + $0xc8] sm:$0xff]
        %v1972 = vld [vmem:[#allocation2 + $0xd0] sm:$0xff]
        %v1973 = vld [vmem:[#allocation2 + $0xd8] sm:$0xff]
        %v1974 = vld [vmem:[#allocation2 + $0xe0] sm:$0xff]
        %v1975 = vld [vmem:[#allocation2 + $0xe8] sm:$0xff]
        %v1976 = vld [vmem:[#allocation2 + $0xf0] sm:$0xff]
        %v1977 = vld [vmem:[#allocation2 + $0xf8] sm:$0xff]
        %v1978 = vadd.f32 %v1946, %v1820
        %v1979 = vadd.f32 %v1947, %v1823
        %v1980 = vadd.f32 %v1948, %v1828
        %v1981 = vadd.f32 %v1949, %v1831
        %v1982 = vadd.f32 %v1950, %v1836
        %v1983 = vadd.f32 %v1951, %v1839
        %v1984 = vadd.f32 %v1952, %v1844
        %v1985 = vadd.f32 %v1953, %v1847
        %v1986 = vadd.f32 %v1954, %v1852
        %v1987 = vadd.f32 %v1955, %v1855
        %v1988 = vadd.f32 %v1956, %v1860
        %v1989 = vadd.f32 %v1957, %v1863
        %v1990 = vadd.f32 %v1958, %v1868
        %v1991 = vadd.f32 %v1959, %v1871
        %v1992 = vadd.f32 %v1960, %v1876
        %v1993 = vadd.f32 %v1961, %v1879
        %v1994 = vadd.f32 %v1962, %v1884
        %v1995 = vadd.f32 %v1963, %v1887
        %v1996 = vadd.f32 %v1964, %v1892
        %v1997 = vadd.f32 %v1965, %v1895
        %v1998 = vadd.f32 %v1966, %v1900
        %v1999 = vadd.f32 %v1967, %v1903
        %v2000 = vadd.f32 %v1968, %v1908
        %v2001 = vadd.f32 %v1969, %v1911
        %v2002 = vadd.f32 %v1970, %v1916
        %v2003 = vadd.f32 %v1971, %v1919
        %v2004 = vadd.f32 %v1972, %v1924
        %v2005 = vadd.f32 %v1973, %v1927
        %v2006 = vadd.f32 %v1974, %v1932
        %v2007 = vadd.f32 %v1975, %v1935
        %v2008 = vadd.f32 %v1976, %v1940
        %v2009 = vadd.f32 %v1977, %v1943
        %2010 = vst [vmem:[#allocation2] sm:$0xff] %v1978
        %2011 = vst [vmem:[#allocation2 + $0x8] sm:$0xff] %v1979
        %2012 = vst [vmem:[#allocation2 + $0x10] sm:$0xff] %v1980
        %2013 = vst [vmem:[#allocation2 + $0x18] sm:$0xff] %v1981
        %2014 = vst [vmem:[#allocation2 + $0x20] sm:$0xff] %v1982
        %2015 = vst [vmem:[#allocation2 + $0x28] sm:$0xff] %v1983
        %2016 = vst [vmem:[#allocation2 + $0x30] sm:$0xff] %v1984
        %2017 = vst [vmem:[#allocation2 + $0x38] sm:$0xff] %v1985
        %2018 = vst [vmem:[#allocation2 + $0x40] sm:$0xff] %v1986
        %2019 = vst [vmem:[#allocation2 + $0x48] sm:$0xff] %v1987
        %2020 = vst [vmem:[#allocation2 + $0x50] sm:$0xff] %v1988
        %2021 = vst [vmem:[#allocation2 + $0x58] sm:$0xff] %v1989
        %2022 = vst [vmem:[#allocation2 + $0x60] sm:$0xff] %v1990
        %2023 = vst [vmem:[#allocation2 + $0x68] sm:$0xff] %v1991
        %2024 = vst [vmem:[#allocation2 + $0x70] sm:$0xff] %v1992
        %2025 = vst [vmem:[#allocation2 + $0x78] sm:$0xff] %v1993
        %2026 = vst [vmem:[#allocation2 + $0x80] sm:$0xff] %v1994
        %2027 = vst [vmem:[#allocation2 + $0x88] sm:$0xff] %v1995
        %2028 = vst [vmem:[#allocation2 + $0x90] sm:$0xff] %v1996
        %2029 = vst [vmem:[#allocation2 + $0x98] sm:$0xff] %v1997
        %2030 = vst [vmem:[#allocation2 + $0xa0] sm:$0xff] %v1998
        %2031 = vst [vmem:[#allocation2 + $0xa8] sm:$0xff] %v1999
        %2032 = vst [vmem:[#allocation2 + $0xb0] sm:$0xff] %v2000
        %2033 = vst [vmem:[#allocation2 + $0xb8] sm:$0xff] %v2001
        %2034 = vst [vmem:[#allocation2 + $0xc0] sm:$0xff] %v2002
        %2035 = vst [vmem:[#allocation2 + $0xc8] sm:$0xff] %v2003
        %2036 = vst [vmem:[#allocation2 + $0xd0] sm:$0xff] %v2004
        %2037 = vst [vmem:[#allocation2 + $0xd8] sm:$0xff] %v2005
        %2038 = vst [vmem:[#allocation2 + $0xe0] sm:$0xff] %v2006
        %2039 = vst [vmem:[#allocation2 + $0xe8] sm:$0xff] %v2007
        %2040 = vst [vmem:[#allocation2 + $0xf0] sm:$0xff] %v2008
        %2041 = vst [vmem:[#allocation2 + $0xf8] sm:$0xff] %v2009
        %s2042 = scalar_lea.vmem %s229, 12
        %v2043 = vld [vmem:[%s2042] sm:$0xf]
        %v2044 = vld [vmem:[%s2042 + $0x4] sm:$0xf]
        %v2045 = vld [vmem:[%s2042 + $0xc] sm:$0xf]
        %v2046 = vld [vmem:[%s2042 + $0x10] sm:$0xf]
        %v2047 = vld [vmem:[%s2042 + $0x18] sm:$0xf]
        %v2048 = vld [vmem:[%s2042 + $0x1c] sm:$0xf]
        %v2049 = vld [vmem:[%s2042 + $0x24] sm:$0xf]
        %v2050 = vld [vmem:[%s2042 + $0x28] sm:$0xf]
        %v2051 = vld [vmem:[%s2042 + $0x30] sm:$0xf]
        %v2052 = vld [vmem:[%s2042 + $0x34] sm:$0xf]
        %v2053 = vld [vmem:[%s2042 + $0x3c] sm:$0xf]
        %v2054 = vld [vmem:[%s2042 + $0x40] sm:$0xf]
        %v2055 = vld [vmem:[%s2042 + $0x48] sm:$0xf]
        %v2056 = vld [vmem:[%s2042 + $0x4c] sm:$0xf]
        %v2057 = vld [vmem:[%s2042 + $0x54] sm:$0xf]
        %v2058 = vld [vmem:[%s2042 + $0x58] sm:$0xf]
        %v2059 = vld [vmem:[%s2042 + $0x60] sm:$0xf]
        %v2060 = vld [vmem:[%s2042 + $0x64] sm:$0xf]
        %v2061 = vld [vmem:[%s2042 + $0x6c] sm:$0xf]
        %v2062 = vld [vmem:[%s2042 + $0x70] sm:$0xf]
        %v2063 = vld [vmem:[%s2042 + $0x78] sm:$0xf]
        %v2064 = vld [vmem:[%s2042 + $0x7c] sm:$0xf]
        %v2065 = vld [vmem:[%s2042 + $0x84] sm:$0xf]
        %v2066 = vld [vmem:[%s2042 + $0x88] sm:$0xf]
        %v2067 = vld [vmem:[%s2042 + $0x90] sm:$0xf]
        %v2068 = vld [vmem:[%s2042 + $0x94] sm:$0xf]
        %v2069 = vld [vmem:[%s2042 + $0x9c] sm:$0xf]
        %v2070 = vld [vmem:[%s2042 + $0xa0] sm:$0xf]
        %v2071 = vld [vmem:[%s2042 + $0xa8] sm:$0xf]
        %v2072 = vld [vmem:[%s2042 + $0xac] sm:$0xf]
        %v2073 = vld [vmem:[%s2042 + $0xb4] sm:$0xf]
        %v2074 = vld [vmem:[%s2042 + $0xb8] sm:$0xf]
        %s2075 = scalar_lea.vmem %s233, 192
        %v2076 = vld [vmem:[%s2075] sm:$0xf]
        %v2077 = vld [vmem:[%s2075 + $0x4] sm:$0xf]
        %v2078 = vld [vmem:[%s2075 + $0x8] sm:$0xf]
        %v2079 = vld [vmem:[%s2075 + $0xc] sm:$0xf]
        %v2080 = vld [vmem:[%s2075 + $0x10] sm:$0xf]
        %v2081 = vld [vmem:[%s2075 + $0x14] sm:$0xf]
        %v2082 = vld [vmem:[%s2075 + $0x18] sm:$0xf]
        %v2083 = vld [vmem:[%s2075 + $0x1c] sm:$0xf]
        %v2084 = vld [vmem:[%s2075 + $0x20] sm:$0xf]
        %v2085 = vld [vmem:[%s2075 + $0x24] sm:$0xf]
        %v2086 = vld [vmem:[%s2075 + $0x28] sm:$0xf]
        %v2087 = vld [vmem:[%s2075 + $0x2c] sm:$0xf]
        %v2088 = vld [vmem:[%s2075 + $0x30] sm:$0xf]
        %v2089 = vld [vmem:[%s2075 + $0x34] sm:$0xf]
        %v2090 = vld [vmem:[%s2075 + $0x38] sm:$0xf]
        %v2091 = vld [vmem:[%s2075 + $0x3c] sm:$0xf]
        %v2124 = vunpack.c.l.b16 %v2043
        %v2125 = vunpack.c.l.b16 %v2044
        %v2126 = vunpack.c.l.b16 %v2045
        %v2127 = vunpack.c.l.b16 %v2046
        %v2128 = vunpack.c.l.b16 %v2047
        %v2129 = vunpack.c.l.b16 %v2048
        %v2130 = vunpack.c.l.b16 %v2049
        %v2131 = vunpack.c.l.b16 %v2050
        %v2132 = vunpack.c.l.b16 %v2051
        %v2133 = vunpack.c.l.b16 %v2052
        %v2134 = vunpack.c.l.b16 %v2053
        %v2135 = vunpack.c.l.b16 %v2054
        %v2136 = vunpack.c.l.b16 %v2055
        %v2137 = vunpack.c.l.b16 %v2056
        %v2138 = vunpack.c.l.b16 %v2057
        %v2139 = vunpack.c.l.b16 %v2058
        %v2140 = vunpack.c.l.b16 %v2059
        %v2141 = vunpack.c.l.b16 %v2060
        %v2142 = vunpack.c.l.b16 %v2061
        %v2143 = vunpack.c.l.b16 %v2062
        %v2144 = vunpack.c.l.b16 %v2063
        %v2145 = vunpack.c.l.b16 %v2064
        %v2146 = vunpack.c.l.b16 %v2065
        %v2147 = vunpack.c.l.b16 %v2066
        %v2148 = vunpack.c.l.b16 %v2067
        %v2149 = vunpack.c.l.b16 %v2068
        %v2150 = vunpack.c.l.b16 %v2069
        %v2151 = vunpack.c.l.b16 %v2070
        %v2152 = vunpack.c.l.b16 %v2071
        %v2153 = vunpack.c.l.b16 %v2072
        %v2154 = vunpack.c.l.b16 %v2073
        %v2155 = vunpack.c.l.b16 %v2074
        %v2156 = vpack.c.b16 %v2125, %v2124
        %v2157 = vpack.c.b16 %v2127, %v2126
        %v2158 = vpack.c.b16 %v2129, %v2128
        %v2159 = vpack.c.b16 %v2131, %v2130
        %v2160 = vpack.c.b16 %v2133, %v2132
        %v2161 = vpack.c.b16 %v2135, %v2134
        %v2162 = vpack.c.b16 %v2137, %v2136
        %v2163 = vpack.c.b16 %v2139, %v2138
        %v2164 = vpack.c.b16 %v2141, %v2140
        %v2165 = vpack.c.b16 %v2143, %v2142
        %v2166 = vpack.c.b16 %v2145, %v2144
        %v2167 = vpack.c.b16 %v2147, %v2146
        %v2168 = vpack.c.b16 %v2149, %v2148
        %v2169 = vpack.c.b16 %v2151, %v2150
        %v2170 = vpack.c.b16 %v2153, %v2152
        %v2171 = vpack.c.b16 %v2155, %v2154
        %v2204 = vunpack.c.l.b16 %v2076
        %v2205 = vunpack.c.l.b16 %v2077
        %v2206 = vunpack.c.l.b16 %v2078
        %v2207 = vunpack.c.l.b16 %v2079
        %v2208 = vunpack.c.l.b16 %v2080
        %v2209 = vunpack.c.l.b16 %v2081
        %v2210 = vunpack.c.l.b16 %v2082
        %v2211 = vunpack.c.l.b16 %v2083
        %v2212 = vunpack.c.l.b16 %v2084
        %v2213 = vunpack.c.l.b16 %v2085
        %v2214 = vunpack.c.l.b16 %v2086
        %v2215 = vunpack.c.l.b16 %v2087
        %v2216 = vunpack.c.l.b16 %v2088
        %v2217 = vunpack.c.l.b16 %v2089
        %v2218 = vunpack.c.l.b16 %v2090
        %v2219 = vunpack.c.l.b16 %v2091
        %v2220 = vpack.c.b16 %v2205, %v2204
        %v2221 = vpack.c.b16 %v2207, %v2206
        %v2222 = vpack.c.b16 %v2209, %v2208
        %v2223 = vpack.c.b16 %v2211, %v2210
        %v2224 = vpack.c.b16 %v2213, %v2212
        %v2225 = vpack.c.b16 %v2215, %v2214
        %v2226 = vpack.c.b16 %v2217, %v2216
        %v2227 = vpack.c.b16 %v2219, %v2218
        %2236 = vmatprep.subr.bf16.mxu0 0
        %2237 = vmatpush1.bf16.msra.mxu0 %v2220
        %2238 = vmatprep.subr.bf16.mxu0 0
        %2239 = vmatpush1.bf16.msra.mxu0 %v2221
        %2240 = vmatprep.subr.bf16.mxu0 0
        %2241 = vmatpush1.bf16.msra.mxu0 %v2222
        %2242 = vmatprep.subr.bf16.mxu0 0
        %2243 = vmatpush1.bf16.msra.mxu0 %v2223
        %2244 = vmatprep.subr.bf16.mxu0 0
        %2245 = vmatpush1.bf16.msra.mxu0 %v2224
        %2246 = vmatprep.subr.bf16.mxu0 0
        %2247 = vmatpush1.bf16.msra.mxu0 %v2225
        %2248 = vmatprep.subr.bf16.mxu0 0
        %2249 = vmatpush1.bf16.msra.mxu0 %v2226
        %2250 = vmatprep.subr.bf16.mxu0 0
        %2251 = vmatpush1.bf16.msra.mxu0 %v2227
        %2252 = vmatprep.subr.bf16.mxu0 0
        %2253 = vmatpush1.bf16.msra.mxu0 0
        %2254 = vmatprep.subr.bf16.mxu0 0
        %2255 = vmatpush1.bf16.msra.mxu0 0
        %2256 = vmatprep.subr.bf16.mxu0 0
        %2257 = vmatpush1.bf16.msra.mxu0 0
        %2258 = vmatprep.subr.bf16.mxu0 0
        %2259 = vmatpush1.bf16.msra.mxu0 0
        %2260 = vmatprep.subr.bf16.mxu0 0
        %2261 = vmatpush1.bf16.msra.mxu0 0
        %2262 = vmatprep.subr.bf16.mxu0 0
        %2263 = vmatpush1.bf16.msra.mxu0 0
        %2264 = vmatprep.subr.bf16.mxu0 0
        %2265 = vmatpush1.bf16.msra.mxu0 0
        %2266 = vmatprep.subr.bf16.mxu0 0
        %2267 = vmatpush1.bf16.msra.mxu0 0
        %2268 = vmatprep.mubr.bf16.mxu0 0
        %2269 = vmatmul.mubr.bf16.gmra.mrb[0].mxu0 %v2156
        %v2270 = vpop.f32.mrb[0].mxu0
        %v2271 = vadd.f32 0.0, %v2270
        %v2272 = vpop.f32.mrb[0].mxu0
        %v2273 = vpop.f32.mrb[0].mxu0
        %v2274 = vadd.f32 0.0, %v2273
        %v2275 = vpop.f32.mrb[0].mxu0
        %2276 = vmatprep.mubr.bf16.mxu0 0
        %2277 = vmatmul.mubr.bf16.gmra.mrb[0].mxu0 %v2157
        %v2278 = vpop.f32.mrb[0].mxu0
        %v2279 = vadd.f32 0.0, %v2278
        %v2280 = vpop.f32.mrb[0].mxu0
        %v2281 = vpop.f32.mrb[0].mxu0
        %v2282 = vadd.f32 0.0, %v2281
        %v2283 = vpop.f32.mrb[0].mxu0
        %2284 = vmatprep.mubr.bf16.mxu0 0
        %2285 = vmatmul.mubr.bf16.gmra.mrb[0].mxu0 %v2158
        %v2286 = vpop.f32.mrb[0].mxu0
        %v2287 = vadd.f32 0.0, %v2286
        %v2288 = vpop.f32.mrb[0].mxu0
        %v2289 = vpop.f32.mrb[0].mxu0
        %v2290 = vadd.f32 0.0, %v2289
        %v2291 = vpop.f32.mrb[0].mxu0
        %2292 = vmatprep.mubr.bf16.mxu0 0
        %2293 = vmatmul.mubr.bf16.gmra.mrb[0].mxu0 %v2159
        %v2294 = vpop.f32.mrb[0].mxu0
        %v2295 = vadd.f32 0.0, %v2294
        %v2296 = vpop.f32.mrb[0].mxu0
        %v2297 = vpop.f32.mrb[0].mxu0
        %v2298 = vadd.f32 0.0, %v2297
        %v2299 = vpop.f32.mrb[0].mxu0
        %2300 = vmatprep.mubr.bf16.mxu0 0
        %2301 = vmatmul.mubr.bf16.gmra.mrb[0].mxu0 %v2160
        %v2302 = vpop.f32.mrb[0].mxu0
        %v2303 = vadd.f32 0.0, %v2302
        %v2304 = vpop.f32.mrb[0].mxu0
        %v2305 = vpop.f32.mrb[0].mxu0
        %v2306 = vadd.f32 0.0, %v2305
        %v2307 = vpop.f32.mrb[0].mxu0
        %2308 = vmatprep.mubr.bf16.mxu0 0
        %2309 = vmatmul.mubr.bf16.gmra.mrb[0].mxu0 %v2161
        %v2310 = vpop.f32.mrb[0].mxu0
        %v2311 = vadd.f32 0.0, %v2310
        %v2312 = vpop.f32.mrb[0].mxu0
        %v2313 = vpop.f32.mrb[0].mxu0
        %v2314 = vadd.f32 0.0, %v2313
        %v2315 = vpop.f32.mrb[0].mxu0
        %2316 = vmatprep.mubr.bf16.mxu0 0
        %2317 = vmatmul.mubr.bf16.gmra.mrb[0].mxu0 %v2162
        %v2318 = vpop.f32.mrb[0].mxu0
        %v2319 = vadd.f32 0.0, %v2318
        %v2320 = vpop.f32.mrb[0].mxu0
        %v2321 = vpop.f32.mrb[0].mxu0
        %v2322 = vadd.f32 0.0, %v2321
        %v2323 = vpop.f32.mrb[0].mxu0
        %2324 = vmatprep.mubr.bf16.mxu0 0
        %2325 = vmatmul.mubr.bf16.gmra.mrb[0].mxu0 %v2163
        %v2326 = vpop.f32.mrb[0].mxu0
        %v2327 = vadd.f32 0.0, %v2326
        %v2328 = vpop.f32.mrb[0].mxu0
        %v2329 = vpop.f32.mrb[0].mxu0
        %v2330 = vadd.f32 0.0, %v2329
        %v2331 = vpop.f32.mrb[0].mxu0
        %2332 = vmatprep.mubr.bf16.mxu0 0
        %2333 = vmatmul.mubr.bf16.gmra.mrb[0].mxu0 %v2164
        %v2334 = vpop.f32.mrb[0].mxu0
        %v2335 = vadd.f32 0.0, %v2334
        %v2336 = vpop.f32.mrb[0].mxu0
        %v2337 = vpop.f32.mrb[0].mxu0
        %v2338 = vadd.f32 0.0, %v2337
        %v2339 = vpop.f32.mrb[0].mxu0
        %2340 = vmatprep.mubr.bf16.mxu0 0
        %2341 = vmatmul.mubr.bf16.gmra.mrb[0].mxu0 %v2165
        %v2342 = vpop.f32.mrb[0].mxu0
        %v2343 = vadd.f32 0.0, %v2342
        %v2344 = vpop.f32.mrb[0].mxu0
        %v2345 = vpop.f32.mrb[0].mxu0
        %v2346 = vadd.f32 0.0, %v2345
        %v2347 = vpop.f32.mrb[0].mxu0
        %2348 = vmatprep.mubr.bf16.mxu0 0
        %2349 = vmatmul.mubr.bf16.gmra.mrb[0].mxu0 %v2166
        %v2350 = vpop.f32.mrb[0].mxu0
        %v2351 = vadd.f32 0.0, %v2350
        %v2352 = vpop.f32.mrb[0].mxu0
        %v2353 = vpop.f32.mrb[0].mxu0
        %v2354 = vadd.f32 0.0, %v2353
        %v2355 = vpop.f32.mrb[0].mxu0
        %2356 = vmatprep.mubr.bf16.mxu0 0
        %2357 = vmatmul.mubr.bf16.gmra.mrb[0].mxu0 %v2167
        %v2358 = vpop.f32.mrb[0].mxu0
        %v2359 = vadd.f32 0.0, %v2358
        %v2360 = vpop.f32.mrb[0].mxu0
        %v2361 = vpop.f32.mrb[0].mxu0
        %v2362 = vadd.f32 0.0, %v2361
        %v2363 = vpop.f32.mrb[0].mxu0
        %2364 = vmatprep.mubr.bf16.mxu0 0
        %2365 = vmatmul.mubr.bf16.gmra.mrb[0].mxu0 %v2168
        %v2366 = vpop.f32.mrb[0].mxu0
        %v2367 = vadd.f32 0.0, %v2366
        %v2368 = vpop.f32.mrb[0].mxu0
        %v2369 = vpop.f32.mrb[0].mxu0
        %v2370 = vadd.f32 0.0, %v2369
        %v2371 = vpop.f32.mrb[0].mxu0
        %2372 = vmatprep.mubr.bf16.mxu0 0
        %2373 = vmatmul.mubr.bf16.gmra.mrb[0].mxu0 %v2169
        %v2374 = vpop.f32.mrb[0].mxu0
        %v2375 = vadd.f32 0.0, %v2374
        %v2376 = vpop.f32.mrb[0].mxu0
        %v2377 = vpop.f32.mrb[0].mxu0
        %v2378 = vadd.f32 0.0, %v2377
        %v2379 = vpop.f32.mrb[0].mxu0
        %2380 = vmatprep.mubr.bf16.mxu0 0
        %2381 = vmatmul.mubr.bf16.gmra.mrb[0].mxu0 %v2170
        %v2382 = vpop.f32.mrb[0].mxu0
        %v2383 = vadd.f32 0.0, %v2382
        %v2384 = vpop.f32.mrb[0].mxu0
        %v2385 = vpop.f32.mrb[0].mxu0
        %v2386 = vadd.f32 0.0, %v2385
        %v2387 = vpop.f32.mrb[0].mxu0
        %2388 = vmatprep.mubr.bf16.mxu0 0
        %2389 = vmatmul.mubr.bf16.gmra.mrb[0].mxu0 %v2171
        %v2390 = vpop.f32.mrb[0].mxu0
        %v2391 = vadd.f32 0.0, %v2390
        %v2392 = vpop.f32.mrb[0].mxu0
        %v2393 = vpop.f32.mrb[0].mxu0
        %v2394 = vadd.f32 0.0, %v2393
        %v2395 = vpop.f32.mrb[0].mxu0
        %2396 = vdwg.mxu0
        %v2397 = vld [vmem:[#allocation2] sm:$0xff]
        %v2398 = vld [vmem:[#allocation2 + $0x8] sm:$0xff]
        %v2399 = vld [vmem:[#allocation2 + $0x10] sm:$0xff]
        %v2400 = vld [vmem:[#allocation2 + $0x18] sm:$0xff]
        %v2401 = vld [vmem:[#allocation2 + $0x20] sm:$0xff]
        %v2402 = vld [vmem:[#allocation2 + $0x28] sm:$0xff]
        %v2403 = vld [vmem:[#allocation2 + $0x30] sm:$0xff]
        %v2404 = vld [vmem:[#allocation2 + $0x38] sm:$0xff]
        %v2405 = vld [vmem:[#allocation2 + $0x40] sm:$0xff]
        %v2406 = vld [vmem:[#allocation2 + $0x48] sm:$0xff]
        %v2407 = vld [vmem:[#allocation2 + $0x50] sm:$0xff]
        %v2408 = vld [vmem:[#allocation2 + $0x58] sm:$0xff]
        %v2409 = vld [vmem:[#allocation2 + $0x60] sm:$0xff]
        %v2410 = vld [vmem:[#allocation2 + $0x68] sm:$0xff]
        %v2411 = vld [vmem:[#allocation2 + $0x70] sm:$0xff]
        %v2412 = vld [vmem:[#allocation2 + $0x78] sm:$0xff]
        %v2413 = vld [vmem:[#allocation2 + $0x80] sm:$0xff]
        %v2414 = vld [vmem:[#allocation2 + $0x88] sm:$0xff]
        %v2415 = vld [vmem:[#allocation2 + $0x90] sm:$0xff]
        %v2416 = vld [vmem:[#allocation2 + $0x98] sm:$0xff]
        %v2417 = vld [vmem:[#allocation2 + $0xa0] sm:$0xff]
        %v2418 = vld [vmem:[#allocation2 + $0xa8] sm:$0xff]
        %v2419 = vld [vmem:[#allocation2 + $0xb0] sm:$0xff]
        %v2420 = vld [vmem:[#allocation2 + $0xb8] sm:$0xff]
        %v2421 = vld [vmem:[#allocation2 + $0xc0] sm:$0xff]
        %v2422 = vld [vmem:[#allocation2 + $0xc8] sm:$0xff]
        %v2423 = vld [vmem:[#allocation2 + $0xd0] sm:$0xff]
        %v2424 = vld [vmem:[#allocation2 + $0xd8] sm:$0xff]
        %v2425 = vld [vmem:[#allocation2 + $0xe0] sm:$0xff]
        %v2426 = vld [vmem:[#allocation2 + $0xe8] sm:$0xff]
        %v2427 = vld [vmem:[#allocation2 + $0xf0] sm:$0xff]
        %v2428 = vld [vmem:[#allocation2 + $0xf8] sm:$0xff]
        %v2429 = vadd.f32 %v2397, %v2271
        %v2430 = vadd.f32 %v2398, %v2274
        %v2431 = vadd.f32 %v2399, %v2279
        %v2432 = vadd.f32 %v2400, %v2282
        %v2433 = vadd.f32 %v2401, %v2287
        %v2434 = vadd.f32 %v2402, %v2290
        %v2435 = vadd.f32 %v2403, %v2295
        %v2436 = vadd.f32 %v2404, %v2298
        %v2437 = vadd.f32 %v2405, %v2303
        %v2438 = vadd.f32 %v2406, %v2306
        %v2439 = vadd.f32 %v2407, %v2311
        %v2440 = vadd.f32 %v2408, %v2314
        %v2441 = vadd.f32 %v2409, %v2319
        %v2442 = vadd.f32 %v2410, %v2322
        %v2443 = vadd.f32 %v2411, %v2327
        %v2444 = vadd.f32 %v2412, %v2330
        %v2445 = vadd.f32 %v2413, %v2335
        %v2446 = vadd.f32 %v2414, %v2338
        %v2447 = vadd.f32 %v2415, %v2343
        %v2448 = vadd.f32 %v2416, %v2346
        %v2449 = vadd.f32 %v2417, %v2351
        %v2450 = vadd.f32 %v2418, %v2354
        %v2451 = vadd.f32 %v2419, %v2359
        %v2452 = vadd.f32 %v2420, %v2362
        %v2453 = vadd.f32 %v2421, %v2367
        %v2454 = vadd.f32 %v2422, %v2370
        %v2455 = vadd.f32 %v2423, %v2375
        %v2456 = vadd.f32 %v2424, %v2378
        %v2457 = vadd.f32 %v2425, %v2383
        %v2458 = vadd.f32 %v2426, %v2386
        %v2459 = vadd.f32 %v2427, %v2391
        %v2460 = vadd.f32 %v2428, %v2394
        %2461 = vst [vmem:[#allocation2] sm:$0xff] %v2429
        %2462 = vst [vmem:[#allocation2 + $0x8] sm:$0xff] %v2430
        %2463 = vst [vmem:[#allocation2 + $0x10] sm:$0xff] %v2431
        %2464 = vst [vmem:[#allocation2 + $0x18] sm:$0xff] %v2432
        %2465 = vst [vmem:[#allocation2 + $0x20] sm:$0xff] %v2433
        %2466 = vst [vmem:[#allocation2 + $0x28] sm:$0xff] %v2434
        %2467 = vst [vmem:[#allocation2 + $0x30] sm:$0xff] %v2435
        %2468 = vst [vmem:[#allocation2 + $0x38] sm:$0xff] %v2436
        %2469 = vst [vmem:[#allocation2 + $0x40] sm:$0xff] %v2437
        %2470 = vst [vmem:[#allocation2 + $0x48] sm:$0xff] %v2438
        %2471 = vst [vmem:[#allocation2 + $0x50] sm:$0xff] %v2439
        %2472 = vst [vmem:[#allocation2 + $0x58] sm:$0xff] %v2440
        %2473 = vst [vmem:[#allocation2 + $0x60] sm:$0xff] %v2441
        %2474 = vst [vmem:[#allocation2 + $0x68] sm:$0xff] %v2442
        %2475 = vst [vmem:[#allocation2 + $0x70] sm:$0xff] %v2443
        %2476 = vst [vmem:[#allocation2 + $0x78] sm:$0xff] %v2444
        %2477 = vst [vmem:[#allocation2 + $0x80] sm:$0xff] %v2445
        %2478 = vst [vmem:[#allocation2 + $0x88] sm:$0xff] %v2446
        %2479 = vst [vmem:[#allocation2 + $0x90] sm:$0xff] %v2447
        %2480 = vst [vmem:[#allocation2 + $0x98] sm:$0xff] %v2448
        %2481 = vst [vmem:[#allocation2 + $0xa0] sm:$0xff] %v2449
        %2482 = vst [vmem:[#allocation2 + $0xa8] sm:$0xff] %v2450
        %2483 = vst [vmem:[#allocation2 + $0xb0] sm:$0xff] %v2451
        %2484 = vst [vmem:[#allocation2 + $0xb8] sm:$0xff] %v2452
        %2485 = vst [vmem:[#allocation2 + $0xc0] sm:$0xff] %v2453
        %2486 = vst [vmem:[#allocation2 + $0xc8] sm:$0xff] %v2454
        %2487 = vst [vmem:[#allocation2 + $0xd0] sm:$0xff] %v2455
        %2488 = vst [vmem:[#allocation2 + $0xd8] sm:$0xff] %v2456
        %2489 = vst [vmem:[#allocation2 + $0xe0] sm:$0xff] %v2457
        %2490 = vst [vmem:[#allocation2 + $0xe8] sm:$0xff] %v2458
        %2491 = vst [vmem:[#allocation2 + $0xf0] sm:$0xff] %v2459
        %2492 = vst [vmem:[#allocation2 + $0xf8] sm:$0xff] %v2460
        %v2493 = vld [vmem:[%s2042] sm:$0xf]
        %v2494 = vld [vmem:[%s2042 + $0x4] sm:$0xf]
        %v2495 = vld [vmem:[%s2042 + $0x8] sm:$0x1]
        %v2496 = vld [vmem:[%s2042 + $0xc] sm:$0xf]
        %v2497 = vld [vmem:[%s2042 + $0x10] sm:$0xf]
        %v2498 = vld [vmem:[%s2042 + $0x14] sm:$0x1]
        %v2499 = vld [vmem:[%s2042 + $0x18] sm:$0xf]
        %v2500 = vld [vmem:[%s2042 + $0x1c] sm:$0xf]
        %v2501 = vld [vmem:[%s2042 + $0x20] sm:$0x1]
        %v2502 = vld [vmem:[%s2042 + $0x24] sm:$0xf]
        %v2503 = vld [vmem:[%s2042 + $0x28] sm:$0xf]
        %v2504 = vld [vmem:[%s2042 + $0x2c] sm:$0x1]
        %v2505 = vld [vmem:[%s2042 + $0x30] sm:$0xf]
        %v2506 = vld [vmem:[%s2042 + $0x34] sm:$0xf]
        %v2507 = vld [vmem:[%s2042 + $0x38] sm:$0x1]
        %v2508 = vld [vmem:[%s2042 + $0x3c] sm:$0xf]
        %v2509 = vld [vmem:[%s2042 + $0x40] sm:$0xf]
        %v2510 = vld [vmem:[%s2042 + $0x44] sm:$0x1]
        %v2511 = vld [vmem:[%s2042 + $0x48] sm:$0xf]
        %v2512 = vld [vmem:[%s2042 + $0x4c] sm:$0xf]
        %v2513 = vld [vmem:[%s2042 + $0x50] sm:$0x1]
        %v2514 = vld [vmem:[%s2042 + $0x54] sm:$0xf]
        %v2515 = vld [vmem:[%s2042 + $0x58] sm:$0xf]
        %v2516 = vld [vmem:[%s2042 + $0x5c] sm:$0x1]
        %v2517 = vld [vmem:[%s2042 + $0x60] sm:$0xf]
        %v2518 = vld [vmem:[%s2042 + $0x64] sm:$0xf]
        %v2519 = vld [vmem:[%s2042 + $0x68] sm:$0x1]
        %v2520 = vld [vmem:[%s2042 + $0x6c] sm:$0xf]
        %v2521 = vld [vmem:[%s2042 + $0x70] sm:$0xf]
        %v2522 = vld [vmem:[%s2042 + $0x74] sm:$0x1]
        %v2523 = vld [vmem:[%s2042 + $0x78] sm:$0xf]
        %v2524 = vld [vmem:[%s2042 + $0x7c] sm:$0xf]
        %v2525 = vld [vmem:[%s2042 + $0x80] sm:$0x1]
        %v2526 = vld [vmem:[%s2042 + $0x84] sm:$0xf]
        %v2527 = vld [vmem:[%s2042 + $0x88] sm:$0xf]
        %v2528 = vld [vmem:[%s2042 + $0x8c] sm:$0x1]
        %v2529 = vld [vmem:[%s2042 + $0x90] sm:$0xf]
        %v2530 = vld [vmem:[%s2042 + $0x94] sm:$0xf]
        %v2531 = vld [vmem:[%s2042 + $0x98] sm:$0x1]
        %v2532 = vld [vmem:[%s2042 + $0x9c] sm:$0xf]
        %v2533 = vld [vmem:[%s2042 + $0xa0] sm:$0xf]
        %v2534 = vld [vmem:[%s2042 + $0xa4] sm:$0x1]
        %v2535 = vld [vmem:[%s2042 + $0xa8] sm:$0xf]
        %v2536 = vld [vmem:[%s2042 + $0xac] sm:$0xf]
        %v2537 = vld [vmem:[%s2042 + $0xb0] sm:$0x1]
        %v2538 = vld [vmem:[%s2042 + $0xb4] sm:$0xf]
        %v2539 = vld [vmem:[%s2042 + $0xb8] sm:$0xf]
        %v2540 = vld [vmem:[%s2042 + $0xbc] sm:$0x1]
        %v2542 = vshrl.u32 %v2493, 16
        %v2544 = vrot.slane %v2542, 4
        %v2545 = vshll.u32 %v2493, 16
        %v2547 = vrot.slane %v2545, 5
        %v2548 = vor.u32 %v2544, %v2547
        %v2549 = vrot.slane %v2548, 4
        %v2551 = vshll.u32 %v2494, 16
        %v2553 = vrot.slane %v2551, 5
        %v2554 = vsel %vm674, %v2549, %v2553
        %v2555 = vshrl.u32 %v2494, 16
        %v2557 = vrot.slane %v2555, 4
        %v2558 = vor.u32 %v2557, %v2553
        %v2559 = vrot.slane %v2558, 4
        %v2561 = vshll.u32 %v2495, 16
        %v2563 = vrot.slane %v2561, 5
        %v2564 = vsel %vm674, %v2559, %v2563
        %v2566 = vshrl.u32 %v2496, 16
        %v2568 = vrot.slane %v2566, 4
        %v2569 = vshll.u32 %v2496, 16
        %v2571 = vrot.slane %v2569, 5
        %v2572 = vor.u32 %v2568, %v2571
        %v2573 = vrot.slane %v2572, 4
        %v2575 = vshll.u32 %v2497, 16
        %v2577 = vrot.slane %v2575, 5
        %v2578 = vsel %vm674, %v2573, %v2577
        %v2579 = vshrl.u32 %v2497, 16
        %v2581 = vrot.slane %v2579, 4
        %v2582 = vor.u32 %v2581, %v2577
        %v2583 = vrot.slane %v2582, 4
        %v2585 = vshll.u32 %v2498, 16
        %v2587 = vrot.slane %v2585, 5
        %v2588 = vsel %vm674, %v2583, %v2587
        %v2590 = vshrl.u32 %v2499, 16
        %v2592 = vrot.slane %v2590, 4
        %v2593 = vshll.u32 %v2499, 16
        %v2595 = vrot.slane %v2593, 5
        %v2596 = vor.u32 %v2592, %v2595
        %v2597 = vrot.slane %v2596, 4
        %v2599 = vshll.u32 %v2500, 16
        %v2601 = vrot.slane %v2599, 5
        %v2602 = vsel %vm674, %v2597, %v2601
        %v2603 = vshrl.u32 %v2500, 16
        %v2605 = vrot.slane %v2603, 4
        %v2606 = vor.u32 %v2605, %v2601
        %v2607 = vrot.slane %v2606, 4
        %v2609 = vshll.u32 %v2501, 16
        %v2611 = vrot.slane %v2609, 5
        %v2612 = vsel %vm674, %v2607, %v2611
        %v2614 = vshrl.u32 %v2502, 16
        %v2616 = vrot.slane %v2614, 4
        %v2617 = vshll.u32 %v2502, 16
        %v2619 = vrot.slane %v2617, 5
        %v2620 = vor.u32 %v2616, %v2619
        %v2621 = vrot.slane %v2620, 4
        %v2623 = vshll.u32 %v2503, 16
        %v2625 = vrot.slane %v2623, 5
        %v2626 = vsel %vm674, %v2621, %v2625
        %v2627 = vshrl.u32 %v2503, 16
        %v2629 = vrot.slane %v2627, 4
        %v2630 = vor.u32 %v2629, %v2625
        %v2631 = vrot.slane %v2630, 4
        %v2633 = vshll.u32 %v2504, 16
        %v2635 = vrot.slane %v2633, 5
        %v2636 = vsel %vm674, %v2631, %v2635
        %v2638 = vshrl.u32 %v2505, 16
        %v2640 = vrot.slane %v2638, 4
        %v2641 = vshll.u32 %v2505, 16
        %v2643 = vrot.slane %v2641, 5
        %v2644 = vor.u32 %v2640, %v2643
        %v2645 = vrot.slane %v2644, 4
        %v2647 = vshll.u32 %v2506, 16
        %v2649 = vrot.slane %v2647, 5
        %v2650 = vsel %vm674, %v2645, %v2649
        %v2651 = vshrl.u32 %v2506, 16
        %v2653 = vrot.slane %v2651, 4
        %v2654 = vor.u32 %v2653, %v2649
        %v2655 = vrot.slane %v2654, 4
        %v2657 = vshll.u32 %v2507, 16
        %v2659 = vrot.slane %v2657, 5
        %v2660 = vsel %vm674, %v2655, %v2659
        %v2662 = vshrl.u32 %v2508, 16
        %v2664 = vrot.slane %v2662, 4
        %v2665 = vshll.u32 %v2508, 16
        %v2667 = vrot.slane %v2665, 5
        %v2668 = vor.u32 %v2664, %v2667
        %v2669 = vrot.slane %v2668, 4
        %v2671 = vshll.u32 %v2509, 16
        %v2673 = vrot.slane %v2671, 5
        %v2674 = vsel %vm674, %v2669, %v2673
        %v2675 = vshrl.u32 %v2509, 16
        %v2677 = vrot.slane %v2675, 4
        %v2678 = vor.u32 %v2677, %v2673
        %v2679 = vrot.slane %v2678, 4
        %v2681 = vshll.u32 %v2510, 16
        %v2683 = vrot.slane %v2681, 5
        %v2684 = vsel %vm674, %v2679, %v2683
        %v2686 = vshrl.u32 %v2511, 16
        %v2688 = vrot.slane %v2686, 4
        %v2689 = vshll.u32 %v2511, 16
        %v2691 = vrot.slane %v2689, 5
        %v2692 = vor.u32 %v2688, %v2691
        %v2693 = vrot.slane %v2692, 4
        %v2695 = vshll.u32 %v2512, 16
        %v2697 = vrot.slane %v2695, 5
        %v2698 = vsel %vm674, %v2693, %v2697
        %v2699 = vshrl.u32 %v2512, 16
        %v2701 = vrot.slane %v2699, 4
        %v2702 = vor.u32 %v2701, %v2697
        %v2703 = vrot.slane %v2702, 4
        %v2705 = vshll.u32 %v2513, 16
        %v2707 = vrot.slane %v2705, 5
        %v2708 = vsel %vm674, %v2703, %v2707
        %v2710 = vshrl.u32 %v2514, 16
        %v2712 = vrot.slane %v2710, 4
        %v2713 = vshll.u32 %v2514, 16
        %v2715 = vrot.slane %v2713, 5
        %v2716 = vor.u32 %v2712, %v2715
        %v2717 = vrot.slane %v2716, 4
        %v2719 = vshll.u32 %v2515, 16
        %v2721 = vrot.slane %v2719, 5
        %v2722 = vsel %vm674, %v2717, %v2721
        %v2723 = vshrl.u32 %v2515, 16
        %v2725 = vrot.slane %v2723, 4
        %v2726 = vor.u32 %v2725, %v2721
        %v2727 = vrot.slane %v2726, 4
        %v2729 = vshll.u32 %v2516, 16
        %v2731 = vrot.slane %v2729, 5
        %v2732 = vsel %vm674, %v2727, %v2731
        %v2734 = vshrl.u32 %v2517, 16
        %v2736 = vrot.slane %v2734, 4
        %v2737 = vshll.u32 %v2517, 16
        %v2739 = vrot.slane %v2737, 5
        %v2740 = vor.u32 %v2736, %v2739
        %v2741 = vrot.slane %v2740, 4
        %v2743 = vshll.u32 %v2518, 16
        %v2745 = vrot.slane %v2743, 5
        %v2746 = vsel %vm674, %v2741, %v2745
        %v2747 = vshrl.u32 %v2518, 16
        %v2749 = vrot.slane %v2747, 4
        %v2750 = vor.u32 %v2749, %v2745
        %v2751 = vrot.slane %v2750, 4
        %v2753 = vshll.u32 %v2519, 16
        %v2755 = vrot.slane %v2753, 5
        %v2756 = vsel %vm674, %v2751, %v2755
        %v2758 = vshrl.u32 %v2520, 16
        %v2760 = vrot.slane %v2758, 4
        %v2761 = vshll.u32 %v2520, 16
        %v2763 = vrot.slane %v2761, 5
        %v2764 = vor.u32 %v2760, %v2763
        %v2765 = vrot.slane %v2764, 4
        %v2767 = vshll.u32 %v2521, 16
        %v2769 = vrot.slane %v2767, 5
        %v2770 = vsel %vm674, %v2765, %v2769
        %v2771 = vshrl.u32 %v2521, 16
        %v2773 = vrot.slane %v2771, 4
        %v2774 = vor.u32 %v2773, %v2769
        %v2775 = vrot.slane %v2774, 4
        %v2777 = vshll.u32 %v2522, 16
        %v2779 = vrot.slane %v2777, 5
        %v2780 = vsel %vm674, %v2775, %v2779
        %v2782 = vshrl.u32 %v2523, 16
        %v2784 = vrot.slane %v2782, 4
        %v2785 = vshll.u32 %v2523, 16
        %v2787 = vrot.slane %v2785, 5
        %v2788 = vor.u32 %v2784, %v2787
        %v2789 = vrot.slane %v2788, 4
        %v2791 = vshll.u32 %v2524, 16
        %v2793 = vrot.slane %v2791, 5
        %v2794 = vsel %vm674, %v2789, %v2793
        %v2795 = vshrl.u32 %v2524, 16
        %v2797 = vrot.slane %v2795, 4
        %v2798 = vor.u32 %v2797, %v2793
        %v2799 = vrot.slane %v2798, 4
        %v2801 = vshll.u32 %v2525, 16
        %v2803 = vrot.slane %v2801, 5
        %v2804 = vsel %vm674, %v2799, %v2803
        %v2806 = vshrl.u32 %v2526, 16
        %v2808 = vrot.slane %v2806, 4
        %v2809 = vshll.u32 %v2526, 16
        %v2811 = vrot.slane %v2809, 5
        %v2812 = vor.u32 %v2808, %v2811
        %v2813 = vrot.slane %v2812, 4
        %v2815 = vshll.u32 %v2527, 16
        %v2817 = vrot.slane %v2815, 5
        %v2818 = vsel %vm674, %v2813, %v2817
        %v2819 = vshrl.u32 %v2527, 16
        %v2821 = vrot.slane %v2819, 4
        %v2822 = vor.u32 %v2821, %v2817
        %v2823 = vrot.slane %v2822, 4
        %v2825 = vshll.u32 %v2528, 16
        %v2827 = vrot.slane %v2825, 5
        %v2828 = vsel %vm674, %v2823, %v2827
        %v2830 = vshrl.u32 %v2529, 16
        %v2832 = vrot.slane %v2830, 4
        %v2833 = vshll.u32 %v2529, 16
        %v2835 = vrot.slane %v2833, 5
        %v2836 = vor.u32 %v2832, %v2835
        %v2837 = vrot.slane %v2836, 4
        %v2839 = vshll.u32 %v2530, 16
        %v2841 = vrot.slane %v2839, 5
        %v2842 = vsel %vm674, %v2837, %v2841
        %v2843 = vshrl.u32 %v2530, 16
        %v2845 = vrot.slane %v2843, 4
        %v2846 = vor.u32 %v2845, %v2841
        %v2847 = vrot.slane %v2846, 4
        %v2849 = vshll.u32 %v2531, 16
        %v2851 = vrot.slane %v2849, 5
        %v2852 = vsel %vm674, %v2847, %v2851
        %v2854 = vshrl.u32 %v2532, 16
        %v2856 = vrot.slane %v2854, 4
        %v2857 = vshll.u32 %v2532, 16
        %v2859 = vrot.slane %v2857, 5
        %v2860 = vor.u32 %v2856, %v2859
        %v2861 = vrot.slane %v2860, 4
        %v2863 = vshll.u32 %v2533, 16
        %v2865 = vrot.slane %v2863, 5
        %v2866 = vsel %vm674, %v2861, %v2865
        %v2867 = vshrl.u32 %v2533, 16
        %v2869 = vrot.slane %v2867, 4
        %v2870 = vor.u32 %v2869, %v2865
        %v2871 = vrot.slane %v2870, 4
        %v2873 = vshll.u32 %v2534, 16
        %v2875 = vrot.slane %v2873, 5
        %v2876 = vsel %vm674, %v2871, %v2875
        %v2878 = vshrl.u32 %v2535, 16
        %v2880 = vrot.slane %v2878, 4
        %v2881 = vshll.u32 %v2535, 16
        %v2883 = vrot.slane %v2881, 5
        %v2884 = vor.u32 %v2880, %v2883
        %v2885 = vrot.slane %v2884, 4
        %v2887 = vshll.u32 %v2536, 16
        %v2889 = vrot.slane %v2887, 5
        %v2890 = vsel %vm674, %v2885, %v2889
        %v2891 = vshrl.u32 %v2536, 16
        %v2893 = vrot.slane %v2891, 4
        %v2894 = vor.u32 %v2893, %v2889
        %v2895 = vrot.slane %v2894, 4
        %v2897 = vshll.u32 %v2537, 16
        %v2899 = vrot.slane %v2897, 5
        %v2900 = vsel %vm674, %v2895, %v2899
        %v2902 = vshrl.u32 %v2538, 16
        %v2904 = vrot.slane %v2902, 4
        %v2905 = vshll.u32 %v2538, 16
        %v2907 = vrot.slane %v2905, 5
        %v2908 = vor.u32 %v2904, %v2907
        %v2909 = vrot.slane %v2908, 4
        %v2911 = vshll.u32 %v2539, 16
        %v2913 = vrot.slane %v2911, 5
        %v2914 = vsel %vm674, %v2909, %v2913
        %v2915 = vshrl.u32 %v2539, 16
        %v2917 = vrot.slane %v2915, 4
        %v2918 = vor.u32 %v2917, %v2913
        %v2919 = vrot.slane %v2918, 4
        %v2921 = vshll.u32 %v2540, 16
        %v2923 = vrot.slane %v2921, 5
        %v2924 = vsel %vm674, %v2919, %v2923
        %s2925 = scalar_lea.vmem %s233, 256
        %v2926 = vld [vmem:[%s2925] sm:$0xf]
        %v2927 = vld [vmem:[%s2925 + $0x4] sm:$0xf]
        %v2928 = vld [vmem:[%s2925 + $0x8] sm:$0xf]
        %v2929 = vld [vmem:[%s2925 + $0xc] sm:$0xf]
        %v2930 = vld [vmem:[%s2925 + $0x10] sm:$0xf]
        %v2931 = vld [vmem:[%s2925 + $0x14] sm:$0xf]
        %v2932 = vld [vmem:[%s2925 + $0x18] sm:$0xf]
        %v2933 = vld [vmem:[%s2925 + $0x1c] sm:$0xf]
        %v2934 = vld [vmem:[%s2925 + $0x20] sm:$0xf]
        %v2935 = vld [vmem:[%s2925 + $0x24] sm:$0xf]
        %v2936 = vld [vmem:[%s2925 + $0x28] sm:$0xf]
        %v2937 = vld [vmem:[%s2925 + $0x2c] sm:$0xf]
        %v2938 = vld [vmem:[%s2925 + $0x30] sm:$0xf]
        %v2939 = vld [vmem:[%s2925 + $0x34] sm:$0xf]
        %v2940 = vld [vmem:[%s2925 + $0x38] sm:$0xf]
        %v2941 = vld [vmem:[%s2925 + $0x3c] sm:$0xf]
        %v2942 = vunpack.c.l.b16 %v2554
        %v2943 = vunpack.c.l.b16 %v2564
        %v2944 = vunpack.c.l.b16 %v2578
        %v2945 = vunpack.c.l.b16 %v2588
        %v2946 = vunpack.c.l.b16 %v2602
        %v2947 = vunpack.c.l.b16 %v2612
        %v2948 = vunpack.c.l.b16 %v2626
        %v2949 = vunpack.c.l.b16 %v2636
        %v2950 = vunpack.c.l.b16 %v2650
        %v2951 = vunpack.c.l.b16 %v2660
        %v2952 = vunpack.c.l.b16 %v2674
        %v2953 = vunpack.c.l.b16 %v2684
        %v2954 = vunpack.c.l.b16 %v2698
        %v2955 = vunpack.c.l.b16 %v2708
        %v2956 = vunpack.c.l.b16 %v2722
        %v2957 = vunpack.c.l.b16 %v2732
        %v2958 = vunpack.c.l.b16 %v2746
        %v2959 = vunpack.c.l.b16 %v2756
        %v2960 = vunpack.c.l.b16 %v2770
        %v2961 = vunpack.c.l.b16 %v2780
        %v2962 = vunpack.c.l.b16 %v2794
        %v2963 = vunpack.c.l.b16 %v2804
        %v2964 = vunpack.c.l.b16 %v2818
        %v2965 = vunpack.c.l.b16 %v2828
        %v2966 = vunpack.c.l.b16 %v2842
        %v2967 = vunpack.c.l.b16 %v2852
        %v2968 = vunpack.c.l.b16 %v2866
        %v2969 = vunpack.c.l.b16 %v2876
        %v2970 = vunpack.c.l.b16 %v2890
        %v2971 = vunpack.c.l.b16 %v2900
        %v2972 = vunpack.c.l.b16 %v2914
        %v2973 = vunpack.c.l.b16 %v2924
        %v2974 = vpack.c.b16 %v2943, %v2942
        %v2975 = vpack.c.b16 %v2945, %v2944
        %v2976 = vpack.c.b16 %v2947, %v2946
        %v2977 = vpack.c.b16 %v2949, %v2948
        %v2978 = vpack.c.b16 %v2951, %v2950
        %v2979 = vpack.c.b16 %v2953, %v2952
        %v2980 = vpack.c.b16 %v2955, %v2954
        %v2981 = vpack.c.b16 %v2957, %v2956
        %v2982 = vpack.c.b16 %v2959, %v2958
        %v2983 = vpack.c.b16 %v2961, %v2960
        %v2984 = vpack.c.b16 %v2963, %v2962
        %v2985 = vpack.c.b16 %v2965, %v2964
        %v2986 = vpack.c.b16 %v2967, %v2966
        %v2987 = vpack.c.b16 %v2969, %v2968
        %v2988 = vpack.c.b16 %v2971, %v2970
        %v2989 = vpack.c.b16 %v2973, %v2972
        %v3022 = vunpack.c.l.b16 %v2926
        %v3023 = vunpack.c.l.b16 %v2927
        %v3024 = vunpack.c.l.b16 %v2928
        %v3025 = vunpack.c.l.b16 %v2929
        %v3026 = vunpack.c.l.b16 %v2930
        %v3027 = vunpack.c.l.b16 %v2931
        %v3028 = vunpack.c.l.b16 %v2932
        %v3029 = vunpack.c.l.b16 %v2933
        %v3030 = vunpack.c.l.b16 %v2934
        %v3031 = vunpack.c.l.b16 %v2935
        %v3032 = vunpack.c.l.b16 %v2936
        %v3033 = vunpack.c.l.b16 %v2937
        %v3034 = vunpack.c.l.b16 %v2938
        %v3035 = vunpack.c.l.b16 %v2939
        %v3036 = vunpack.c.l.b16 %v2940
        %v3037 = vunpack.c.l.b16 %v2941
        %v3038 = vpack.c.b16 %v3023, %v3022
        %v3039 = vpack.c.b16 %v3025, %v3024
        %v3040 = vpack.c.b16 %v3027, %v3026
        %v3041 = vpack.c.b16 %v3029, %v3028
        %v3042 = vpack.c.b16 %v3031, %v3030
        %v3043 = vpack.c.b16 %v3033, %v3032
        %v3044 = vpack.c.b16 %v3035, %v3034
        %v3045 = vpack.c.b16 %v3037, %v3036
        %3054 = vmatprep.subr.bf16.mxu0 0
        %3055 = vmatpush1.bf16.msra.mxu0 %v3038
        %3056 = vmatprep.subr.bf16.mxu0 0
        %3057 = vmatpush1.bf16.msra.mxu0 %v3039
        %3058 = vmatprep.subr.bf16.mxu0 0
        %3059 = vmatpush1.bf16.msra.mxu0 %v3040
        %3060 = vmatprep.subr.bf16.mxu0 0
        %3061 = vmatpush1.bf16.msra.mxu0 %v3041
        %3062 = vmatprep.subr.bf16.mxu0 0
        %3063 = vmatpush1.bf16.msra.mxu0 %v3042
        %3064 = vmatprep.subr.bf16.mxu0 0
        %3065 = vmatpush1.bf16.msra.mxu0 %v3043
        %3066 = vmatprep.subr.bf16.mxu0 0
        %3067 = vmatpush1.bf16.msra.mxu0 %v3044
        %3068 = vmatprep.subr.bf16.mxu0 0
        %3069 = vmatpush1.bf16.msra.mxu0 %v3045
        %3070 = vmatprep.subr.bf16.mxu0 0
        %3071 = vmatpush1.bf16.msra.mxu0 0
        %3072 = vmatprep.subr.bf16.mxu0 0
        %3073 = vmatpush1.bf16.msra.mxu0 0
        %3074 = vmatprep.subr.bf16.mxu0 0
        %3075 = vmatpush1.bf16.msra.mxu0 0
        %3076 = vmatprep.subr.bf16.mxu0 0
        %3077 = vmatpush1.bf16.msra.mxu0 0
        %3078 = vmatprep.subr.bf16.mxu0 0
        %3079 = vmatpush1.bf16.msra.mxu0 0
        %3080 = vmatprep.subr.bf16.mxu0 0
        %3081 = vmatpush1.bf16.msra.mxu0 0
        %3082 = vmatprep.subr.bf16.mxu0 0
        %3083 = vmatpush1.bf16.msra.mxu0 0
        %3084 = vmatprep.subr.bf16.mxu0 0
        %3085 = vmatpush1.bf16.msra.mxu0 0
        %3086 = vmatprep.mubr.bf16.mxu0 0
        %3087 = vmatmul.mubr.bf16.gmra.mrb[0].mxu0 %v2974
        %v3088 = vpop.f32.mrb[0].mxu0
        %v3089 = vadd.f32 0.0, %v3088
        %v3090 = vpop.f32.mrb[0].mxu0
        %v3091 = vpop.f32.mrb[0].mxu0
        %v3092 = vadd.f32 0.0, %v3091
        %v3093 = vpop.f32.mrb[0].mxu0
        %3094 = vmatprep.mubr.bf16.mxu0 0
        %3095 = vmatmul.mubr.bf16.gmra.mrb[0].mxu0 %v2975
        %v3096 = vpop.f32.mrb[0].mxu0
        %v3097 = vadd.f32 0.0, %v3096
        %v3098 = vpop.f32.mrb[0].mxu0
        %v3099 = vpop.f32.mrb[0].mxu0
        %v3100 = vadd.f32 0.0, %v3099
        %v3101 = vpop.f32.mrb[0].mxu0
        %3102 = vmatprep.mubr.bf16.mxu0 0
        %3103 = vmatmul.mubr.bf16.gmra.mrb[0].mxu0 %v2976
        %v3104 = vpop.f32.mrb[0].mxu0
        %v3105 = vadd.f32 0.0, %v3104
        %v3106 = vpop.f32.mrb[0].mxu0
        %v3107 = vpop.f32.mrb[0].mxu0
        %v3108 = vadd.f32 0.0, %v3107
        %v3109 = vpop.f32.mrb[0].mxu0
        %3110 = vmatprep.mubr.bf16.mxu0 0
        %3111 = vmatmul.mubr.bf16.gmra.mrb[0].mxu0 %v2977
        %v3112 = vpop.f32.mrb[0].mxu0
        %v3113 = vadd.f32 0.0, %v3112
        %v3114 = vpop.f32.mrb[0].mxu0
        %v3115 = vpop.f32.mrb[0].mxu0
        %v3116 = vadd.f32 0.0, %v3115
        %v3117 = vpop.f32.mrb[0].mxu0
        %3118 = vmatprep.mubr.bf16.mxu0 0
        %3119 = vmatmul.mubr.bf16.gmra.mrb[0].mxu0 %v2978
        %v3120 = vpop.f32.mrb[0].mxu0
        %v3121 = vadd.f32 0.0, %v3120
        %v3122 = vpop.f32.mrb[0].mxu0
        %v3123 = vpop.f32.mrb[0].mxu0
        %v3124 = vadd.f32 0.0, %v3123
        %v3125 = vpop.f32.mrb[0].mxu0
        %3126 = vmatprep.mubr.bf16.mxu0 0
        %3127 = vmatmul.mubr.bf16.gmra.mrb[0].mxu0 %v2979
        %v3128 = vpop.f32.mrb[0].mxu0
        %v3129 = vadd.f32 0.0, %v3128
        %v3130 = vpop.f32.mrb[0].mxu0
        %v3131 = vpop.f32.mrb[0].mxu0
        %v3132 = vadd.f32 0.0, %v3131
        %v3133 = vpop.f32.mrb[0].mxu0
        %3134 = vmatprep.mubr.bf16.mxu0 0
        %3135 = vmatmul.mubr.bf16.gmra.mrb[0].mxu0 %v2980
        %v3136 = vpop.f32.mrb[0].mxu0
        %v3137 = vadd.f32 0.0, %v3136
        %v3138 = vpop.f32.mrb[0].mxu0
        %v3139 = vpop.f32.mrb[0].mxu0
        %v3140 = vadd.f32 0.0, %v3139
        %v3141 = vpop.f32.mrb[0].mxu0
        %3142 = vmatprep.mubr.bf16.mxu0 0
        %3143 = vmatmul.mubr.bf16.gmra.mrb[0].mxu0 %v2981
        %v3144 = vpop.f32.mrb[0].mxu0
        %v3145 = vadd.f32 0.0, %v3144
        %v3146 = vpop.f32.mrb[0].mxu0
        %v3147 = vpop.f32.mrb[0].mxu0
        %v3148 = vadd.f32 0.0, %v3147
        %v3149 = vpop.f32.mrb[0].mxu0
        %3150 = vmatprep.mubr.bf16.mxu0 0
        %3151 = vmatmul.mubr.bf16.gmra.mrb[0].mxu0 %v2982
        %v3152 = vpop.f32.mrb[0].mxu0
        %v3153 = vadd.f32 0.0, %v3152
        %v3154 = vpop.f32.mrb[0].mxu0
        %v3155 = vpop.f32.mrb[0].mxu0
        %v3156 = vadd.f32 0.0, %v3155
        %v3157 = vpop.f32.mrb[0].mxu0
        %3158 = vmatprep.mubr.bf16.mxu0 0
        %3159 = vmatmul.mubr.bf16.gmra.mrb[0].mxu0 %v2983
        %v3160 = vpop.f32.mrb[0].mxu0
        %v3161 = vadd.f32 0.0, %v3160
        %v3162 = vpop.f32.mrb[0].mxu0
        %v3163 = vpop.f32.mrb[0].mxu0
        %v3164 = vadd.f32 0.0, %v3163
        %v3165 = vpop.f32.mrb[0].mxu0
        %3166 = vmatprep.mubr.bf16.mxu0 0
        %3167 = vmatmul.mubr.bf16.gmra.mrb[0].mxu0 %v2984
        %v3168 = vpop.f32.mrb[0].mxu0
        %v3169 = vadd.f32 0.0, %v3168
        %v3170 = vpop.f32.mrb[0].mxu0
        %v3171 = vpop.f32.mrb[0].mxu0
        %v3172 = vadd.f32 0.0, %v3171
        %v3173 = vpop.f32.mrb[0].mxu0
        %3174 = vmatprep.mubr.bf16.mxu0 0
        %3175 = vmatmul.mubr.bf16.gmra.mrb[0].mxu0 %v2985
        %v3176 = vpop.f32.mrb[0].mxu0
        %v3177 = vadd.f32 0.0, %v3176
        %v3178 = vpop.f32.mrb[0].mxu0
        %v3179 = vpop.f32.mrb[0].mxu0
        %v3180 = vadd.f32 0.0, %v3179
        %v3181 = vpop.f32.mrb[0].mxu0
        %3182 = vmatprep.mubr.bf16.mxu0 0
        %3183 = vmatmul.mubr.bf16.gmra.mrb[0].mxu0 %v2986
        %v3184 = vpop.f32.mrb[0].mxu0
        %v3185 = vadd.f32 0.0, %v3184
        %v3186 = vpop.f32.mrb[0].mxu0
        %v3187 = vpop.f32.mrb[0].mxu0
        %v3188 = vadd.f32 0.0, %v3187
        %v3189 = vpop.f32.mrb[0].mxu0
        %3190 = vmatprep.mubr.bf16.mxu0 0
        %3191 = vmatmul.mubr.bf16.gmra.mrb[0].mxu0 %v2987
        %v3192 = vpop.f32.mrb[0].mxu0
        %v3193 = vadd.f32 0.0, %v3192
        %v3194 = vpop.f32.mrb[0].mxu0
        %v3195 = vpop.f32.mrb[0].mxu0
        %v3196 = vadd.f32 0.0, %v3195
        %v3197 = vpop.f32.mrb[0].mxu0
        %3198 = vmatprep.mubr.bf16.mxu0 0
        %3199 = vmatmul.mubr.bf16.gmra.mrb[0].mxu0 %v2988
        %v3200 = vpop.f32.mrb[0].mxu0
        %v3201 = vadd.f32 0.0, %v3200
        %v3202 = vpop.f32.mrb[0].mxu0
        %v3203 = vpop.f32.mrb[0].mxu0
        %v3204 = vadd.f32 0.0, %v3203
        %v3205 = vpop.f32.mrb[0].mxu0
        %3206 = vmatprep.mubr.bf16.mxu0 0
        %3207 = vmatmul.mubr.bf16.gmra.mrb[0].mxu0 %v2989
        %v3208 = vpop.f32.mrb[0].mxu0
        %v3209 = vadd.f32 0.0, %v3208
        %v3210 = vpop.f32.mrb[0].mxu0
        %v3211 = vpop.f32.mrb[0].mxu0
        %v3212 = vadd.f32 0.0, %v3211
        %v3213 = vpop.f32.mrb[0].mxu0
        %3214 = vdwg.mxu0
        %v3215 = vld [vmem:[#allocation2] sm:$0xff]
        %v3216 = vld [vmem:[#allocation2 + $0x8] sm:$0xff]
        %v3217 = vld [vmem:[#allocation2 + $0x10] sm:$0xff]
        %v3218 = vld [vmem:[#allocation2 + $0x18] sm:$0xff]
        %v3219 = vld [vmem:[#allocation2 + $0x20] sm:$0xff]
        %v3220 = vld [vmem:[#allocation2 + $0x28] sm:$0xff]
        %v3221 = vld [vmem:[#allocation2 + $0x30] sm:$0xff]
        %v3222 = vld [vmem:[#allocation2 + $0x38] sm:$0xff]
        %v3223 = vld [vmem:[#allocation2 + $0x40] sm:$0xff]
        %v3224 = vld [vmem:[#allocation2 + $0x48] sm:$0xff]
        %v3225 = vld [vmem:[#allocation2 + $0x50] sm:$0xff]
        %v3226 = vld [vmem:[#allocation2 + $0x58] sm:$0xff]
        %v3227 = vld [vmem:[#allocation2 + $0x60] sm:$0xff]
        %v3228 = vld [vmem:[#allocation2 + $0x68] sm:$0xff]
        %v3229 = vld [vmem:[#allocation2 + $0x70] sm:$0xff]
        %v3230 = vld [vmem:[#allocation2 + $0x78] sm:$0xff]
        %v3231 = vld [vmem:[#allocation2 + $0x80] sm:$0xff]
        %v3232 = vld [vmem:[#allocation2 + $0x88] sm:$0xff]
        %v3233 = vld [vmem:[#allocation2 + $0x90] sm:$0xff]
        %v3234 = vld [vmem:[#allocation2 + $0x98] sm:$0xff]
        %v3235 = vld [vmem:[#allocation2 + $0xa0] sm:$0xff]
        %v3236 = vld [vmem:[#allocation2 + $0xa8] sm:$0xff]
        %v3237 = vld [vmem:[#allocation2 + $0xb0] sm:$0xff]
        %v3238 = vld [vmem:[#allocation2 + $0xb8] sm:$0xff]
        %v3239 = vld [vmem:[#allocation2 + $0xc0] sm:$0xff]
        %v3240 = vld [vmem:[#allocation2 + $0xc8] sm:$0xff]
        %v3241 = vld [vmem:[#allocation2 + $0xd0] sm:$0xff]
        %v3242 = vld [vmem:[#allocation2 + $0xd8] sm:$0xff]
        %v3243 = vld [vmem:[#allocation2 + $0xe0] sm:$0xff]
        %v3244 = vld [vmem:[#allocation2 + $0xe8] sm:$0xff]
        %v3245 = vld [vmem:[#allocation2 + $0xf0] sm:$0xff]
        %v3246 = vld [vmem:[#allocation2 + $0xf8] sm:$0xff]
        %v3247 = vadd.f32 %v3215, %v3089
        %v3248 = vadd.f32 %v3216, %v3092
        %v3249 = vadd.f32 %v3217, %v3097
        %v3250 = vadd.f32 %v3218, %v3100
        %v3251 = vadd.f32 %v3219, %v3105
        %v3252 = vadd.f32 %v3220, %v3108
        %v3253 = vadd.f32 %v3221, %v3113
        %v3254 = vadd.f32 %v3222, %v3116
        %v3255 = vadd.f32 %v3223, %v3121
        %v3256 = vadd.f32 %v3224, %v3124
        %v3257 = vadd.f32 %v3225, %v3129
        %v3258 = vadd.f32 %v3226, %v3132
        %v3259 = vadd.f32 %v3227, %v3137
        %v3260 = vadd.f32 %v3228, %v3140
        %v3261 = vadd.f32 %v3229, %v3145
        %v3262 = vadd.f32 %v3230, %v3148
        %v3263 = vadd.f32 %v3231, %v3153
        %v3264 = vadd.f32 %v3232, %v3156
        %v3265 = vadd.f32 %v3233, %v3161
        %v3266 = vadd.f32 %v3234, %v3164
        %v3267 = vadd.f32 %v3235, %v3169
        %v3268 = vadd.f32 %v3236, %v3172
        %v3269 = vadd.f32 %v3237, %v3177
        %v3270 = vadd.f32 %v3238, %v3180
        %v3271 = vadd.f32 %v3239, %v3185
        %v3272 = vadd.f32 %v3240, %v3188
        %v3273 = vadd.f32 %v3241, %v3193
        %v3274 = vadd.f32 %v3242, %v3196
        %v3275 = vadd.f32 %v3243, %v3201
        %v3276 = vadd.f32 %v3244, %v3204
        %v3277 = vadd.f32 %v3245, %v3209
        %v3278 = vadd.f32 %v3246, %v3212
        %3279 = vst [vmem:[#allocation2] sm:$0xff] %v3247
        %3280 = vst [vmem:[#allocation2 + $0x8] sm:$0xff] %v3248
        %3281 = vst [vmem:[#allocation2 + $0x10] sm:$0xff] %v3249
        %3282 = vst [vmem:[#allocation2 + $0x18] sm:$0xff] %v3250
        %3283 = vst [vmem:[#allocation2 + $0x20] sm:$0xff] %v3251
        %3284 = vst [vmem:[#allocation2 + $0x28] sm:$0xff] %v3252
        %3285 = vst [vmem:[#allocation2 + $0x30] sm:$0xff] %v3253
        %3286 = vst [vmem:[#allocation2 + $0x38] sm:$0xff] %v3254
        %3287 = vst [vmem:[#allocation2 + $0x40] sm:$0xff] %v3255
        %3288 = vst [vmem:[#allocation2 + $0x48] sm:$0xff] %v3256
        %3289 = vst [vmem:[#allocation2 + $0x50] sm:$0xff] %v3257
        %3290 = vst [vmem:[#allocation2 + $0x58] sm:$0xff] %v3258
        %3291 = vst [vmem:[#allocation2 + $0x60] sm:$0xff] %v3259
        %3292 = vst [vmem:[#allocation2 + $0x68] sm:$0xff] %v3260
        %3293 = vst [vmem:[#allocation2 + $0x70] sm:$0xff] %v3261
        %3294 = vst [vmem:[#allocation2 + $0x78] sm:$0xff] %v3262
        %3295 = vst [vmem:[#allocation2 + $0x80] sm:$0xff] %v3263
        %3296 = vst [vmem:[#allocation2 + $0x88] sm:$0xff] %v3264
        %3297 = vst [vmem:[#allocation2 + $0x90] sm:$0xff] %v3265
        %3298 = vst [vmem:[#allocation2 + $0x98] sm:$0xff] %v3266
        %3299 = vst [vmem:[#allocation2 + $0xa0] sm:$0xff] %v3267
        %3300 = vst [vmem:[#allocation2 + $0xa8] sm:$0xff] %v3268
        %3301 = vst [vmem:[#allocation2 + $0xb0] sm:$0xff] %v3269
        %3302 = vst [vmem:[#allocation2 + $0xb8] sm:$0xff] %v3270
        %3303 = vst [vmem:[#allocation2 + $0xc0] sm:$0xff] %v3271
        %3304 = vst [vmem:[#allocation2 + $0xc8] sm:$0xff] %v3272
        %3305 = vst [vmem:[#allocation2 + $0xd0] sm:$0xff] %v3273
        %3306 = vst [vmem:[#allocation2 + $0xd8] sm:$0xff] %v3274
        %3307 = vst [vmem:[#allocation2 + $0xe0] sm:$0xff] %v3275
        %3308 = vst [vmem:[#allocation2 + $0xe8] sm:$0xff] %v3276
        %3309 = vst [vmem:[#allocation2 + $0xf0] sm:$0xff] %v3277
        %3310 = vst [vmem:[#allocation2 + $0xf8] sm:$0xff] %v3278
        %v3311 = vld [vmem:[%s2042] sm:$0xe]
        %v3312 = vld [vmem:[%s2042 + $0x4] sm:$0xf]
        %v3313 = vld [vmem:[%s2042 + $0x8] sm:$0x1]
        %v3314 = vld [vmem:[%s2042 + $0xc] sm:$0xe]
        %v3315 = vld [vmem:[%s2042 + $0x10] sm:$0xf]
        %v3316 = vld [vmem:[%s2042 + $0x14] sm:$0x1]
        %v3317 = vld [vmem:[%s2042 + $0x18] sm:$0xe]
        %v3318 = vld [vmem:[%s2042 + $0x1c] sm:$0xf]
        %v3319 = vld [vmem:[%s2042 + $0x20] sm:$0x1]
        %v3320 = vld [vmem:[%s2042 + $0x24] sm:$0xe]
        %v3321 = vld [vmem:[%s2042 + $0x28] sm:$0xf]
        %v3322 = vld [vmem:[%s2042 + $0x2c] sm:$0x1]
        %v3323 = vld [vmem:[%s2042 + $0x30] sm:$0xe]
        %v3324 = vld [vmem:[%s2042 + $0x34] sm:$0xf]
        %v3325 = vld [vmem:[%s2042 + $0x38] sm:$0x1]
        %v3326 = vld [vmem:[%s2042 + $0x3c] sm:$0xe]
        %v3327 = vld [vmem:[%s2042 + $0x40] sm:$0xf]
        %v3328 = vld [vmem:[%s2042 + $0x44] sm:$0x1]
        %v3329 = vld [vmem:[%s2042 + $0x48] sm:$0xe]
        %v3330 = vld [vmem:[%s2042 + $0x4c] sm:$0xf]
        %v3331 = vld [vmem:[%s2042 + $0x50] sm:$0x1]
        %v3332 = vld [vmem:[%s2042 + $0x54] sm:$0xe]
        %v3333 = vld [vmem:[%s2042 + $0x58] sm:$0xf]
        %v3334 = vld [vmem:[%s2042 + $0x5c] sm:$0x1]
        %v3335 = vld [vmem:[%s2042 + $0x60] sm:$0xe]
        %v3336 = vld [vmem:[%s2042 + $0x64] sm:$0xf]
        %v3337 = vld [vmem:[%s2042 + $0x68] sm:$0x1]
        %v3338 = vld [vmem:[%s2042 + $0x6c] sm:$0xe]
        %v3339 = vld [vmem:[%s2042 + $0x70] sm:$0xf]
        %v3340 = vld [vmem:[%s2042 + $0x74] sm:$0x1]
        %v3341 = vld [vmem:[%s2042 + $0x78] sm:$0xe]
        %v3342 = vld [vmem:[%s2042 + $0x7c] sm:$0xf]
        %v3343 = vld [vmem:[%s2042 + $0x80] sm:$0x1]
        %v3344 = vld [vmem:[%s2042 + $0x84] sm:$0xe]
        %v3345 = vld [vmem:[%s2042 + $0x88] sm:$0xf]
        %v3346 = vld [vmem:[%s2042 + $0x8c] sm:$0x1]
        %v3347 = vld [vmem:[%s2042 + $0x90] sm:$0xe]
        %v3348 = vld [vmem:[%s2042 + $0x94] sm:$0xf]
        %v3349 = vld [vmem:[%s2042 + $0x98] sm:$0x1]
        %v3350 = vld [vmem:[%s2042 + $0x9c] sm:$0xe]
        %v3351 = vld [vmem:[%s2042 + $0xa0] sm:$0xf]
        %v3352 = vld [vmem:[%s2042 + $0xa4] sm:$0x1]
        %v3353 = vld [vmem:[%s2042 + $0xa8] sm:$0xe]
        %v3354 = vld [vmem:[%s2042 + $0xac] sm:$0xf]
        %v3355 = vld [vmem:[%s2042 + $0xb0] sm:$0x1]
        %v3356 = vld [vmem:[%s2042 + $0xb4] sm:$0xe]
        %v3357 = vld [vmem:[%s2042 + $0xb8] sm:$0xf]
        %v3358 = vld [vmem:[%s2042 + $0xbc] sm:$0x1]
        %v3407 = vrot.slane %v3311, 5
        %v3408 = vrot.slane %v3407, 4
        %v3409 = vrot.slane %v3312, 5
        %v3410 = vsel %vm1543, %v3408, %v3409
        %v3411 = vrot.slane %v3409, 4
        %v3412 = vrot.slane %v3313, 5
        %v3413 = vsel %vm1543, %v3411, %v3412
        %v3414 = vrot.slane %v3314, 5
        %v3415 = vrot.slane %v3414, 4
        %v3416 = vrot.slane %v3315, 5
        %v3417 = vsel %vm1543, %v3415, %v3416
        %v3418 = vrot.slane %v3416, 4
        %v3419 = vrot.slane %v3316, 5
        %v3420 = vsel %vm1543, %v3418, %v3419
        %v3421 = vrot.slane %v3317, 5
        %v3422 = vrot.slane %v3421, 4
        %v3423 = vrot.slane %v3318, 5
        %v3424 = vsel %vm1543, %v3422, %v3423
        %v3425 = vrot.slane %v3423, 4
        %v3426 = vrot.slane %v3319, 5
        %v3427 = vsel %vm1543, %v3425, %v3426
        %v3428 = vrot.slane %v3320, 5
        %v3429 = vrot.slane %v3428, 4
        %v3430 = vrot.slane %v3321, 5
        %v3431 = vsel %vm1543, %v3429, %v3430
        %v3432 = vrot.slane %v3430, 4
        %v3433 = vrot.slane %v3322, 5
        %v3434 = vsel %vm1543, %v3432, %v3433
        %v3435 = vrot.slane %v3323, 5
        %v3436 = vrot.slane %v3435, 4
        %v3437 = vrot.slane %v3324, 5
        %v3438 = vsel %vm1543, %v3436, %v3437
        %v3439 = vrot.slane %v3437, 4
        %v3440 = vrot.slane %v3325, 5
        %v3441 = vsel %vm1543, %v3439, %v3440
        %v3442 = vrot.slane %v3326, 5
        %v3443 = vrot.slane %v3442, 4
        %v3444 = vrot.slane %v3327, 5
        %v3445 = vsel %vm1543, %v3443, %v3444
        %v3446 = vrot.slane %v3444, 4
        %v3447 = vrot.slane %v3328, 5
        %v3448 = vsel %vm1543, %v3446, %v3447
        %v3449 = vrot.slane %v3329, 5
        %v3450 = vrot.slane %v3449, 4
        %v3451 = vrot.slane %v3330, 5
        %v3452 = vsel %vm1543, %v3450, %v3451
        %v3453 = vrot.slane %v3451, 4
        %v3454 = vrot.slane %v3331, 5
        %v3455 = vsel %vm1543, %v3453, %v3454
        %v3456 = vrot.slane %v3332, 5
        %v3457 = vrot.slane %v3456, 4
        %v3458 = vrot.slane %v3333, 5
        %v3459 = vsel %vm1543, %v3457, %v3458
        %v3460 = vrot.slane %v3458, 4
        %v3461 = vrot.slane %v3334, 5
        %v3462 = vsel %vm1543, %v3460, %v3461
        %v3463 = vrot.slane %v3335, 5
        %v3464 = vrot.slane %v3463, 4
        %v3465 = vrot.slane %v3336, 5
        %v3466 = vsel %vm1543, %v3464, %v3465
        %v3467 = vrot.slane %v3465, 4
        %v3468 = vrot.slane %v3337, 5
        %v3469 = vsel %vm1543, %v3467, %v3468
        %v3470 = vrot.slane %v3338, 5
        %v3471 = vrot.slane %v3470, 4
        %v3472 = vrot.slane %v3339, 5
        %v3473 = vsel %vm1543, %v3471, %v3472
        %v3474 = vrot.slane %v3472, 4
        %v3475 = vrot.slane %v3340, 5
        %v3476 = vsel %vm1543, %v3474, %v3475
        %v3477 = vrot.slane %v3341, 5
        %v3478 = vrot.slane %v3477, 4
        %v3479 = vrot.slane %v3342, 5
        %v3480 = vsel %vm1543, %v3478, %v3479
        %v3481 = vrot.slane %v3479, 4
        %v3482 = vrot.slane %v3343, 5
        %v3483 = vsel %vm1543, %v3481, %v3482
        %v3484 = vrot.slane %v3344, 5
        %v3485 = vrot.slane %v3484, 4
        %v3486 = vrot.slane %v3345, 5
        %v3487 = vsel %vm1543, %v3485, %v3486
        %v3488 = vrot.slane %v3486, 4
        %v3489 = vrot.slane %v3346, 5
        %v3490 = vsel %vm1543, %v3488, %v3489
        %v3491 = vrot.slane %v3347, 5
        %v3492 = vrot.slane %v3491, 4
        %v3493 = vrot.slane %v3348, 5
        %v3494 = vsel %vm1543, %v3492, %v3493
        %v3495 = vrot.slane %v3493, 4
        %v3496 = vrot.slane %v3349, 5
        %v3497 = vsel %vm1543, %v3495, %v3496
        %v3498 = vrot.slane %v3350, 5
        %v3499 = vrot.slane %v3498, 4
        %v3500 = vrot.slane %v3351, 5
        %v3501 = vsel %vm1543, %v3499, %v3500
        %v3502 = vrot.slane %v3500, 4
        %v3503 = vrot.slane %v3352, 5
        %v3504 = vsel %vm1543, %v3502, %v3503
        %v3505 = vrot.slane %v3353, 5
        %v3506 = vrot.slane %v3505, 4
        %v3507 = vrot.slane %v3354, 5
        %v3508 = vsel %vm1543, %v3506, %v3507
        %v3509 = vrot.slane %v3507, 4
        %v3510 = vrot.slane %v3355, 5
        %v3511 = vsel %vm1543, %v3509, %v3510
        %v3512 = vrot.slane %v3356, 5
        %v3513 = vrot.slane %v3512, 4
        %v3514 = vrot.slane %v3357, 5
        %v3515 = vsel %vm1543, %v3513, %v3514
        %v3516 = vrot.slane %v3514, 4
        %v3517 = vrot.slane %v3358, 5
        %v3518 = vsel %vm1543, %v3516, %v3517
        %s3519 = scalar_lea.vmem %s233, 320
        %v3520 = vld [vmem:[%s3519] sm:$0xf]
        %v3521 = vld [vmem:[%s3519 + $0x4] sm:$0xf]
        %v3522 = vld [vmem:[%s3519 + $0x8] sm:$0xf]
        %v3523 = vld [vmem:[%s3519 + $0xc] sm:$0xf]
        %v3524 = vld [vmem:[%s3519 + $0x10] sm:$0xf]
        %v3525 = vld [vmem:[%s3519 + $0x14] sm:$0xf]
        %v3526 = vld [vmem:[%s3519 + $0x18] sm:$0xf]
        %v3527 = vld [vmem:[%s3519 + $0x1c] sm:$0xf]
        %v3528 = vld [vmem:[%s3519 + $0x20] sm:$0xf]
        %v3529 = vld [vmem:[%s3519 + $0x24] sm:$0xf]
        %v3530 = vld [vmem:[%s3519 + $0x28] sm:$0xf]
        %v3531 = vld [vmem:[%s3519 + $0x2c] sm:$0xf]
        %v3532 = vld [vmem:[%s3519 + $0x30] sm:$0xf]
        %v3533 = vld [vmem:[%s3519 + $0x34] sm:$0xf]
        %v3534 = vld [vmem:[%s3519 + $0x38] sm:$0xf]
        %v3535 = vld [vmem:[%s3519 + $0x3c] sm:$0xf]
        %v3536 = vunpack.c.l.b16 %v3410
        %v3537 = vunpack.c.l.b16 %v3413
        %v3538 = vunpack.c.l.b16 %v3417
        %v3539 = vunpack.c.l.b16 %v3420
        %v3540 = vunpack.c.l.b16 %v3424
        %v3541 = vunpack.c.l.b16 %v3427
        %v3542 = vunpack.c.l.b16 %v3431
        %v3543 = vunpack.c.l.b16 %v3434
        %v3544 = vunpack.c.l.b16 %v3438
        %v3545 = vunpack.c.l.b16 %v3441
        %v3546 = vunpack.c.l.b16 %v3445
        %v3547 = vunpack.c.l.b16 %v3448
        %v3548 = vunpack.c.l.b16 %v3452
        %v3549 = vunpack.c.l.b16 %v3455
        %v3550 = vunpack.c.l.b16 %v3459
        %v3551 = vunpack.c.l.b16 %v3462
        %v3552 = vunpack.c.l.b16 %v3466
        %v3553 = vunpack.c.l.b16 %v3469
        %v3554 = vunpack.c.l.b16 %v3473
        %v3555 = vunpack.c.l.b16 %v3476
        %v3556 = vunpack.c.l.b16 %v3480
        %v3557 = vunpack.c.l.b16 %v3483
        %v3558 = vunpack.c.l.b16 %v3487
        %v3559 = vunpack.c.l.b16 %v3490
        %v3560 = vunpack.c.l.b16 %v3494
        %v3561 = vunpack.c.l.b16 %v3497
        %v3562 = vunpack.c.l.b16 %v3501
        %v3563 = vunpack.c.l.b16 %v3504
        %v3564 = vunpack.c.l.b16 %v3508
        %v3565 = vunpack.c.l.b16 %v3511
        %v3566 = vunpack.c.l.b16 %v3515
        %v3567 = vunpack.c.l.b16 %v3518
        %v3568 = vpack.c.b16 %v3537, %v3536
        %v3569 = vpack.c.b16 %v3539, %v3538
        %v3570 = vpack.c.b16 %v3541, %v3540
        %v3571 = vpack.c.b16 %v3543, %v3542
        %v3572 = vpack.c.b16 %v3545, %v3544
        %v3573 = vpack.c.b16 %v3547, %v3546
        %v3574 = vpack.c.b16 %v3549, %v3548
        %v3575 = vpack.c.b16 %v3551, %v3550
        %v3576 = vpack.c.b16 %v3553, %v3552
        %v3577 = vpack.c.b16 %v3555, %v3554
        %v3578 = vpack.c.b16 %v3557, %v3556
        %v3579 = vpack.c.b16 %v3559, %v3558
        %v3580 = vpack.c.b16 %v3561, %v3560
        %v3581 = vpack.c.b16 %v3563, %v3562
        %v3582 = vpack.c.b16 %v3565, %v3564
        %v3583 = vpack.c.b16 %v3567, %v3566
        %v3616 = vunpack.c.l.b16 %v3520
        %v3617 = vunpack.c.l.b16 %v3521
        %v3618 = vunpack.c.l.b16 %v3522
        %v3619 = vunpack.c.l.b16 %v3523
        %v3620 = vunpack.c.l.b16 %v3524
        %v3621 = vunpack.c.l.b16 %v3525
        %v3622 = vunpack.c.l.b16 %v3526
        %v3623 = vunpack.c.l.b16 %v3527
        %v3624 = vunpack.c.l.b16 %v3528
        %v3625 = vunpack.c.l.b16 %v3529
        %v3626 = vunpack.c.l.b16 %v3530
        %v3627 = vunpack.c.l.b16 %v3531
        %v3628 = vunpack.c.l.b16 %v3532
        %v3629 = vunpack.c.l.b16 %v3533
        %v3630 = vunpack.c.l.b16 %v3534
        %v3631 = vunpack.c.l.b16 %v3535
        %v3632 = vpack.c.b16 %v3617, %v3616
        %v3633 = vpack.c.b16 %v3619, %v3618
        %v3634 = vpack.c.b16 %v3621, %v3620
        %v3635 = vpack.c.b16 %v3623, %v3622
        %v3636 = vpack.c.b16 %v3625, %v3624
        %v3637 = vpack.c.b16 %v3627, %v3626
        %v3638 = vpack.c.b16 %v3629, %v3628
        %v3639 = vpack.c.b16 %v3631, %v3630
        %3648 = vmatprep.subr.bf16.mxu0 0
        %3649 = vmatpush1.bf16.msra.mxu0 %v3632
        %3650 = vmatprep.subr.bf16.mxu0 0
        %3651 = vmatpush1.bf16.msra.mxu0 %v3633
        %3652 = vmatprep.subr.bf16.mxu0 0
        %3653 = vmatpush1.bf16.msra.mxu0 %v3634
        %3654 = vmatprep.subr.bf16.mxu0 0
        %3655 = vmatpush1.bf16.msra.mxu0 %v3635
        %3656 = vmatprep.subr.bf16.mxu0 0
        %3657 = vmatpush1.bf16.msra.mxu0 %v3636
        %3658 = vmatprep.subr.bf16.mxu0 0
        %3659 = vmatpush1.bf16.msra.mxu0 %v3637
        %3660 = vmatprep.subr.bf16.mxu0 0
        %3661 = vmatpush1.bf16.msra.mxu0 %v3638
        %3662 = vmatprep.subr.bf16.mxu0 0
        %3663 = vmatpush1.bf16.msra.mxu0 %v3639
        %3664 = vmatprep.subr.bf16.mxu0 0
        %3665 = vmatpush1.bf16.msra.mxu0 0
        %3666 = vmatprep.subr.bf16.mxu0 0
        %3667 = vmatpush1.bf16.msra.mxu0 0
        %3668 = vmatprep.subr.bf16.mxu0 0
        %3669 = vmatpush1.bf16.msra.mxu0 0
        %3670 = vmatprep.subr.bf16.mxu0 0
        %3671 = vmatpush1.bf16.msra.mxu0 0
        %3672 = vmatprep.subr.bf16.mxu0 0
        %3673 = vmatpush1.bf16.msra.mxu0 0
        %3674 = vmatprep.subr.bf16.mxu0 0
        %3675 = vmatpush1.bf16.msra.mxu0 0
        %3676 = vmatprep.subr.bf16.mxu0 0
        %3677 = vmatpush1.bf16.msra.mxu0 0
        %3678 = vmatprep.subr.bf16.mxu0 0
        %3679 = vmatpush1.bf16.msra.mxu0 0
        %3680 = vmatprep.mubr.bf16.mxu0 0
        %3681 = vmatmul.mubr.bf16.gmra.mrb[0].mxu0 %v3568
        %v3682 = vpop.f32.mrb[0].mxu0
        %v3683 = vadd.f32 0.0, %v3682
        %v3684 = vpop.f32.mrb[0].mxu0
        %v3685 = vpop.f32.mrb[0].mxu0
        %v3686 = vadd.f32 0.0, %v3685
        %v3687 = vpop.f32.mrb[0].mxu0
        %3688 = vmatprep.mubr.bf16.mxu0 0
        %3689 = vmatmul.mubr.bf16.gmra.mrb[0].mxu0 %v3569
        %v3690 = vpop.f32.mrb[0].mxu0
        %v3691 = vadd.f32 0.0, %v3690
        %v3692 = vpop.f32.mrb[0].mxu0
        %v3693 = vpop.f32.mrb[0].mxu0
        %v3694 = vadd.f32 0.0, %v3693
        %v3695 = vpop.f32.mrb[0].mxu0
        %3696 = vmatprep.mubr.bf16.mxu0 0
        %3697 = vmatmul.mubr.bf16.gmra.mrb[0].mxu0 %v3570
        %v3698 = vpop.f32.mrb[0].mxu0
        %v3699 = vadd.f32 0.0, %v3698
        %v3700 = vpop.f32.mrb[0].mxu0
        %v3701 = vpop.f32.mrb[0].mxu0
        %v3702 = vadd.f32 0.0, %v3701
        %v3703 = vpop.f32.mrb[0].mxu0
        %3704 = vmatprep.mubr.bf16.mxu0 0
        %3705 = vmatmul.mubr.bf16.gmra.mrb[0].mxu0 %v3571
        %v3706 = vpop.f32.mrb[0].mxu0
        %v3707 = vadd.f32 0.0, %v3706
        %v3708 = vpop.f32.mrb[0].mxu0
        %v3709 = vpop.f32.mrb[0].mxu0
        %v3710 = vadd.f32 0.0, %v3709
        %v3711 = vpop.f32.mrb[0].mxu0
        %3712 = vmatprep.mubr.bf16.mxu0 0
        %3713 = vmatmul.mubr.bf16.gmra.mrb[0].mxu0 %v3572
        %v3714 = vpop.f32.mrb[0].mxu0
        %v3715 = vadd.f32 0.0, %v3714
        %v3716 = vpop.f32.mrb[0].mxu0
        %v3717 = vpop.f32.mrb[0].mxu0
        %v3718 = vadd.f32 0.0, %v3717
        %v3719 = vpop.f32.mrb[0].mxu0
        %3720 = vmatprep.mubr.bf16.mxu0 0
        %3721 = vmatmul.mubr.bf16.gmra.mrb[0].mxu0 %v3573
        %v3722 = vpop.f32.mrb[0].mxu0
        %v3723 = vadd.f32 0.0, %v3722
        %v3724 = vpop.f32.mrb[0].mxu0
        %v3725 = vpop.f32.mrb[0].mxu0
        %v3726 = vadd.f32 0.0, %v3725
        %v3727 = vpop.f32.mrb[0].mxu0
        %3728 = vmatprep.mubr.bf16.mxu0 0
        %3729 = vmatmul.mubr.bf16.gmra.mrb[0].mxu0 %v3574
        %v3730 = vpop.f32.mrb[0].mxu0
        %v3731 = vadd.f32 0.0, %v3730
        %v3732 = vpop.f32.mrb[0].mxu0
        %v3733 = vpop.f32.mrb[0].mxu0
        %v3734 = vadd.f32 0.0, %v3733
        %v3735 = vpop.f32.mrb[0].mxu0
        %3736 = vmatprep.mubr.bf16.mxu0 0
        %3737 = vmatmul.mubr.bf16.gmra.mrb[0].mxu0 %v3575
        %v3738 = vpop.f32.mrb[0].mxu0
        %v3739 = vadd.f32 0.0, %v3738
        %v3740 = vpop.f32.mrb[0].mxu0
        %v3741 = vpop.f32.mrb[0].mxu0
        %v3742 = vadd.f32 0.0, %v3741
        %v3743 = vpop.f32.mrb[0].mxu0
        %3744 = vmatprep.mubr.bf16.mxu0 0
        %3745 = vmatmul.mubr.bf16.gmra.mrb[0].mxu0 %v3576
        %v3746 = vpop.f32.mrb[0].mxu0
        %v3747 = vadd.f32 0.0, %v3746
        %v3748 = vpop.f32.mrb[0].mxu0
        %v3749 = vpop.f32.mrb[0].mxu0
        %v3750 = vadd.f32 0.0, %v3749
        %v3751 = vpop.f32.mrb[0].mxu0
        %3752 = vmatprep.mubr.bf16.mxu0 0
        %3753 = vmatmul.mubr.bf16.gmra.mrb[0].mxu0 %v3577
        %v3754 = vpop.f32.mrb[0].mxu0
        %v3755 = vadd.f32 0.0, %v3754
        %v3756 = vpop.f32.mrb[0].mxu0
        %v3757 = vpop.f32.mrb[0].mxu0
        %v3758 = vadd.f32 0.0, %v3757
        %v3759 = vpop.f32.mrb[0].mxu0
        %3760 = vmatprep.mubr.bf16.mxu0 0
        %3761 = vmatmul.mubr.bf16.gmra.mrb[0].mxu0 %v3578
        %v3762 = vpop.f32.mrb[0].mxu0
        %v3763 = vadd.f32 0.0, %v3762
        %v3764 = vpop.f32.mrb[0].mxu0
        %v3765 = vpop.f32.mrb[0].mxu0
        %v3766 = vadd.f32 0.0, %v3765
        %v3767 = vpop.f32.mrb[0].mxu0
        %3768 = vmatprep.mubr.bf16.mxu0 0
        %3769 = vmatmul.mubr.bf16.gmra.mrb[0].mxu0 %v3579
        %v3770 = vpop.f32.mrb[0].mxu0
        %v3771 = vadd.f32 0.0, %v3770
        %v3772 = vpop.f32.mrb[0].mxu0
        %v3773 = vpop.f32.mrb[0].mxu0
        %v3774 = vadd.f32 0.0, %v3773
        %v3775 = vpop.f32.mrb[0].mxu0
        %3776 = vmatprep.mubr.bf16.mxu0 0
        %3777 = vmatmul.mubr.bf16.gmra.mrb[0].mxu0 %v3580
        %v3778 = vpop.f32.mrb[0].mxu0
        %v3779 = vadd.f32 0.0, %v3778
        %v3780 = vpop.f32.mrb[0].mxu0
        %v3781 = vpop.f32.mrb[0].mxu0
        %v3782 = vadd.f32 0.0, %v3781
        %v3783 = vpop.f32.mrb[0].mxu0
        %3784 = vmatprep.mubr.bf16.mxu0 0
        %3785 = vmatmul.mubr.bf16.gmra.mrb[0].mxu0 %v3581
        %v3786 = vpop.f32.mrb[0].mxu0
        %v3787 = vadd.f32 0.0, %v3786
        %v3788 = vpop.f32.mrb[0].mxu0
        %v3789 = vpop.f32.mrb[0].mxu0
        %v3790 = vadd.f32 0.0, %v3789
        %v3791 = vpop.f32.mrb[0].mxu0
        %3792 = vmatprep.mubr.bf16.mxu0 0
        %3793 = vmatmul.mubr.bf16.gmra.mrb[0].mxu0 %v3582
        %v3794 = vpop.f32.mrb[0].mxu0
        %v3795 = vadd.f32 0.0, %v3794
        %v3796 = vpop.f32.mrb[0].mxu0
        %v3797 = vpop.f32.mrb[0].mxu0
        %v3798 = vadd.f32 0.0, %v3797
        %v3799 = vpop.f32.mrb[0].mxu0
        %3800 = vmatprep.mubr.bf16.mxu0 0
        %3801 = vmatmul.mubr.bf16.gmra.mrb[0].mxu0 %v3583
        %v3802 = vpop.f32.mrb[0].mxu0
        %v3803 = vadd.f32 0.0, %v3802
        %v3804 = vpop.f32.mrb[0].mxu0
        %v3805 = vpop.f32.mrb[0].mxu0
        %v3806 = vadd.f32 0.0, %v3805
        %v3807 = vpop.f32.mrb[0].mxu0
        %3808 = vdwg.mxu0
        %v3809 = vld [vmem:[#allocation2] sm:$0xff]
        %v3810 = vld [vmem:[#allocation2 + $0x8] sm:$0xff]
        %v3811 = vld [vmem:[#allocation2 + $0x10] sm:$0xff]
        %v3812 = vld [vmem:[#allocation2 + $0x18] sm:$0xff]
        %v3813 = vld [vmem:[#allocation2 + $0x20] sm:$0xff]
        %v3814 = vld [vmem:[#allocation2 + $0x28] sm:$0xff]
        %v3815 = vld [vmem:[#allocation2 + $0x30] sm:$0xff]
        %v3816 = vld [vmem:[#allocation2 + $0x38] sm:$0xff]
        %v3817 = vld [vmem:[#allocation2 + $0x40] sm:$0xff]
        %v3818 = vld [vmem:[#allocation2 + $0x48] sm:$0xff]
        %v3819 = vld [vmem:[#allocation2 + $0x50] sm:$0xff]
        %v3820 = vld [vmem:[#allocation2 + $0x58] sm:$0xff]
        %v3821 = vld [vmem:[#allocation2 + $0x60] sm:$0xff]
        %v3822 = vld [vmem:[#allocation2 + $0x68] sm:$0xff]
        %v3823 = vld [vmem:[#allocation2 + $0x70] sm:$0xff]
        %v3824 = vld [vmem:[#allocation2 + $0x78] sm:$0xff]
        %v3825 = vld [vmem:[#allocation2 + $0x80] sm:$0xff]
        %v3826 = vld [vmem:[#allocation2 + $0x88] sm:$0xff]
        %v3827 = vld [vmem:[#allocation2 + $0x90] sm:$0xff]
        %v3828 = vld [vmem:[#allocation2 + $0x98] sm:$0xff]
        %v3829 = vld [vmem:[#allocation2 + $0xa0] sm:$0xff]
        %v3830 = vld [vmem:[#allocation2 + $0xa8] sm:$0xff]
        %v3831 = vld [vmem:[#allocation2 + $0xb0] sm:$0xff]
        %v3832 = vld [vmem:[#allocation2 + $0xb8] sm:$0xff]
        %v3833 = vld [vmem:[#allocation2 + $0xc0] sm:$0xff]
        %v3834 = vld [vmem:[#allocation2 + $0xc8] sm:$0xff]
        %v3835 = vld [vmem:[#allocation2 + $0xd0] sm:$0xff]
        %v3836 = vld [vmem:[#allocation2 + $0xd8] sm:$0xff]
        %v3837 = vld [vmem:[#allocation2 + $0xe0] sm:$0xff]
        %v3838 = vld [vmem:[#allocation2 + $0xe8] sm:$0xff]
        %v3839 = vld [vmem:[#allocation2 + $0xf0] sm:$0xff]
        %v3840 = vld [vmem:[#allocation2 + $0xf8] sm:$0xff]
        %v3841 = vadd.f32 %v3809, %v3683
        %v3842 = vadd.f32 %v3810, %v3686
        %v3843 = vadd.f32 %v3811, %v3691
        %v3844 = vadd.f32 %v3812, %v3694
        %v3845 = vadd.f32 %v3813, %v3699
        %v3846 = vadd.f32 %v3814, %v3702
        %v3847 = vadd.f32 %v3815, %v3707
        %v3848 = vadd.f32 %v3816, %v3710
        %v3849 = vadd.f32 %v3817, %v3715
        %v3850 = vadd.f32 %v3818, %v3718
        %v3851 = vadd.f32 %v3819, %v3723
        %v3852 = vadd.f32 %v3820, %v3726
        %v3853 = vadd.f32 %v3821, %v3731
        %v3854 = vadd.f32 %v3822, %v3734
        %v3855 = vadd.f32 %v3823, %v3739
        %v3856 = vadd.f32 %v3824, %v3742
        %v3857 = vadd.f32 %v3825, %v3747
        %v3858 = vadd.f32 %v3826, %v3750
        %v3859 = vadd.f32 %v3827, %v3755
        %v3860 = vadd.f32 %v3828, %v3758
        %v3861 = vadd.f32 %v3829, %v3763
        %v3862 = vadd.f32 %v3830, %v3766
        %v3863 = vadd.f32 %v3831, %v3771
        %v3864 = vadd.f32 %v3832, %v3774
        %v3865 = vadd.f32 %v3833, %v3779
        %v3866 = vadd.f32 %v3834, %v3782
        %v3867 = vadd.f32 %v3835, %v3787
        %v3868 = vadd.f32 %v3836, %v3790
        %v3869 = vadd.f32 %v3837, %v3795
        %v3870 = vadd.f32 %v3838, %v3798
        %v3871 = vadd.f32 %v3839, %v3803
        %v3872 = vadd.f32 %v3840, %v3806
        %3873 = vst [vmem:[#allocation2] sm:$0xff] %v3841
        %3874 = vst [vmem:[#allocation2 + $0x8] sm:$0xff] %v3842
        %3875 = vst [vmem:[#allocation2 + $0x10] sm:$0xff] %v3843
        %3876 = vst [vmem:[#allocation2 + $0x18] sm:$0xff] %v3844
        %3877 = vst [vmem:[#allocation2 + $0x20] sm:$0xff] %v3845
        %3878 = vst [vmem:[#allocation2 + $0x28] sm:$0xff] %v3846
        %3879 = vst [vmem:[#allocation2 + $0x30] sm:$0xff] %v3847
        %3880 = vst [vmem:[#allocation2 + $0x38] sm:$0xff] %v3848
        %3881 = vst [vmem:[#allocation2 + $0x40] sm:$0xff] %v3849
        %3882 = vst [vmem:[#allocation2 + $0x48] sm:$0xff] %v3850
        %3883 = vst [vmem:[#allocation2 + $0x50] sm:$0xff] %v3851
        %3884 = vst [vmem:[#allocation2 + $0x58] sm:$0xff] %v3852
        %3885 = vst [vmem:[#allocation2 + $0x60] sm:$0xff] %v3853
        %3886 = vst [vmem:[#allocation2 + $0x68] sm:$0xff] %v3854
        %3887 = vst [vmem:[#allocation2 + $0x70] sm:$0xff] %v3855
        %3888 = vst [vmem:[#allocation2 + $0x78] sm:$0xff] %v3856
        %3889 = vst [vmem:[#allocation2 + $0x80] sm:$0xff] %v3857
        %3890 = vst [vmem:[#allocation2 + $0x88] sm:$0xff] %v3858
        %3891 = vst [vmem:[#allocation2 + $0x90] sm:$0xff] %v3859
        %3892 = vst [vmem:[#allocation2 + $0x98] sm:$0xff] %v3860
        %3893 = vst [vmem:[#allocation2 + $0xa0] sm:$0xff] %v3861
        %3894 = vst [vmem:[#allocation2 + $0xa8] sm:$0xff] %v3862
        %3895 = vst [vmem:[#allocation2 + $0xb0] sm:$0xff] %v3863
        %3896 = vst [vmem:[#allocation2 + $0xb8] sm:$0xff] %v3864
        %3897 = vst [vmem:[#allocation2 + $0xc0] sm:$0xff] %v3865
        %3898 = vst [vmem:[#allocation2 + $0xc8] sm:$0xff] %v3866
        %3899 = vst [vmem:[#allocation2 + $0xd0] sm:$0xff] %v3867
        %3900 = vst [vmem:[#allocation2 + $0xd8] sm:$0xff] %v3868
        %3901 = vst [vmem:[#allocation2 + $0xe0] sm:$0xff] %v3869
        %3902 = vst [vmem:[#allocation2 + $0xe8] sm:$0xff] %v3870
        %3903 = vst [vmem:[#allocation2 + $0xf0] sm:$0xff] %v3871
        %3904 = vst [vmem:[#allocation2 + $0xf8] sm:$0xff] %v3872
        %s3905 = scalar_lea.vmem %s229, 24
        %v3906 = vld [vmem:[%s3905] sm:$0xf]
        %v3907 = vld [vmem:[%s3905 + $0x4] sm:$0xf]
        %v3908 = vld [vmem:[%s3905 + $0xc] sm:$0xf]
        %v3909 = vld [vmem:[%s3905 + $0x10] sm:$0xf]
        %v3910 = vld [vmem:[%s3905 + $0x18] sm:$0xf]
        %v3911 = vld [vmem:[%s3905 + $0x1c] sm:$0xf]
        %v3912 = vld [vmem:[%s3905 + $0x24] sm:$0xf]
        %v3913 = vld [vmem:[%s3905 + $0x28] sm:$0xf]
        %v3914 = vld [vmem:[%s3905 + $0x30] sm:$0xf]
        %v3915 = vld [vmem:[%s3905 + $0x34] sm:$0xf]
        %v3916 = vld [vmem:[%s3905 + $0x3c] sm:$0xf]
        %v3917 = vld [vmem:[%s3905 + $0x40] sm:$0xf]
        %v3918 = vld [vmem:[%s3905 + $0x48] sm:$0xf]
        %v3919 = vld [vmem:[%s3905 + $0x4c] sm:$0xf]
        %v3920 = vld [vmem:[%s3905 + $0x54] sm:$0xf]
        %v3921 = vld [vmem:[%s3905 + $0x58] sm:$0xf]
        %v3922 = vld [vmem:[%s3905 + $0x60] sm:$0xf]
        %v3923 = vld [vmem:[%s3905 + $0x64] sm:$0xf]
        %v3924 = vld [vmem:[%s3905 + $0x6c] sm:$0xf]
        %v3925 = vld [vmem:[%s3905 + $0x70] sm:$0xf]
        %v3926 = vld [vmem:[%s3905 + $0x78] sm:$0xf]
        %v3927 = vld [vmem:[%s3905 + $0x7c] sm:$0xf]
        %v3928 = vld [vmem:[%s3905 + $0x84] sm:$0xf]
        %v3929 = vld [vmem:[%s3905 + $0x88] sm:$0xf]
        %v3930 = vld [vmem:[%s3905 + $0x90] sm:$0xf]
        %v3931 = vld [vmem:[%s3905 + $0x94] sm:$0xf]
        %v3932 = vld [vmem:[%s3905 + $0x9c] sm:$0xf]
        %v3933 = vld [vmem:[%s3905 + $0xa0] sm:$0xf]
        %v3934 = vld [vmem:[%s3905 + $0xa8] sm:$0xf]
        %v3935 = vld [vmem:[%s3905 + $0xac] sm:$0xf]
        %v3936 = vld [vmem:[%s3905 + $0xb4] sm:$0xf]
        %v3937 = vld [vmem:[%s3905 + $0xb8] sm:$0xf]
        %s3938 = scalar_lea.vmem %s233, 384
        %v3939 = vld [vmem:[%s3938] sm:$0xf]
        %v3940 = vld [vmem:[%s3938 + $0x4] sm:$0xf]
        %v3941 = vld [vmem:[%s3938 + $0x8] sm:$0xf]
        %v3942 = vld [vmem:[%s3938 + $0xc] sm:$0xf]
        %v3943 = vld [vmem:[%s3938 + $0x10] sm:$0xf]
        %v3944 = vld [vmem:[%s3938 + $0x14] sm:$0xf]
        %v3945 = vld [vmem:[%s3938 + $0x18] sm:$0xf]
        %v3946 = vld [vmem:[%s3938 + $0x1c] sm:$0xf]
        %v3947 = vld [vmem:[%s3938 + $0x20] sm:$0xf]
        %v3948 = vld [vmem:[%s3938 + $0x24] sm:$0xf]
        %v3949 = vld [vmem:[%s3938 + $0x28] sm:$0xf]
        %v3950 = vld [vmem:[%s3938 + $0x2c] sm:$0xf]
        %v3951 = vld [vmem:[%s3938 + $0x30] sm:$0xf]
        %v3952 = vld [vmem:[%s3938 + $0x34] sm:$0xf]
        %v3953 = vld [vmem:[%s3938 + $0x38] sm:$0xf]
        %v3954 = vld [vmem:[%s3938 + $0x3c] sm:$0xf]
        %v3987 = vunpack.c.l.b16 %v3906
        %v3988 = vunpack.c.l.b16 %v3907
        %v3989 = vunpack.c.l.b16 %v3908
        %v3990 = vunpack.c.l.b16 %v3909
        %v3991 = vunpack.c.l.b16 %v3910
        %v3992 = vunpack.c.l.b16 %v3911
        %v3993 = vunpack.c.l.b16 %v3912
        %v3994 = vunpack.c.l.b16 %v3913
        %v3995 = vunpack.c.l.b16 %v3914
        %v3996 = vunpack.c.l.b16 %v3915
        %v3997 = vunpack.c.l.b16 %v3916
        %v3998 = vunpack.c.l.b16 %v3917
        %v3999 = vunpack.c.l.b16 %v3918
        %v4000 = vunpack.c.l.b16 %v3919
        %v4001 = vunpack.c.l.b16 %v3920
        %v4002 = vunpack.c.l.b16 %v3921
        %v4003 = vunpack.c.l.b16 %v3922
        %v4004 = vunpack.c.l.b16 %v3923
        %v4005 = vunpack.c.l.b16 %v3924
        %v4006 = vunpack.c.l.b16 %v3925
        %v4007 = vunpack.c.l.b16 %v3926
        %v4008 = vunpack.c.l.b16 %v3927
        %v4009 = vunpack.c.l.b16 %v3928
        %v4010 = vunpack.c.l.b16 %v3929
        %v4011 = vunpack.c.l.b16 %v3930
        %v4012 = vunpack.c.l.b16 %v3931
        %v4013 = vunpack.c.l.b16 %v3932
        %v4014 = vunpack.c.l.b16 %v3933
        %v4015 = vunpack.c.l.b16 %v3934
        %v4016 = vunpack.c.l.b16 %v3935
        %v4017 = vunpack.c.l.b16 %v3936
        %v4018 = vunpack.c.l.b16 %v3937
        %v4019 = vpack.c.b16 %v3988, %v3987
        %v4020 = vpack.c.b16 %v3990, %v3989
        %v4021 = vpack.c.b16 %v3992, %v3991
        %v4022 = vpack.c.b16 %v3994, %v3993
        %v4023 = vpack.c.b16 %v3996, %v3995
        %v4024 = vpack.c.b16 %v3998, %v3997
        %v4025 = vpack.c.b16 %v4000, %v3999
        %v4026 = vpack.c.b16 %v4002, %v4001
        %v4027 = vpack.c.b16 %v4004, %v4003
        %v4028 = vpack.c.b16 %v4006, %v4005
        %v4029 = vpack.c.b16 %v4008, %v4007
        %v4030 = vpack.c.b16 %v4010, %v4009
        %v4031 = vpack.c.b16 %v4012, %v4011
        %v4032 = vpack.c.b16 %v4014, %v4013
        %v4033 = vpack.c.b16 %v4016, %v4015
        %v4034 = vpack.c.b16 %v4018, %v4017
        %v4067 = vunpack.c.l.b16 %v3939
        %v4068 = vunpack.c.l.b16 %v3940
        %v4069 = vunpack.c.l.b16 %v3941
        %v4070 = vunpack.c.l.b16 %v3942
        %v4071 = vunpack.c.l.b16 %v3943
        %v4072 = vunpack.c.l.b16 %v3944
        %v4073 = vunpack.c.l.b16 %v3945
        %v4074 = vunpack.c.l.b16 %v3946
        %v4075 = vunpack.c.l.b16 %v3947
        %v4076 = vunpack.c.l.b16 %v3948
        %v4077 = vunpack.c.l.b16 %v3949
        %v4078 = vunpack.c.l.b16 %v3950
        %v4079 = vunpack.c.l.b16 %v3951
        %v4080 = vunpack.c.l.b16 %v3952
        %v4081 = vunpack.c.l.b16 %v3953
        %v4082 = vunpack.c.l.b16 %v3954
        %v4083 = vpack.c.b16 %v4068, %v4067
        %v4084 = vpack.c.b16 %v4070, %v4069
        %v4085 = vpack.c.b16 %v4072, %v4071
        %v4086 = vpack.c.b16 %v4074, %v4073
        %v4087 = vpack.c.b16 %v4076, %v4075
        %v4088 = vpack.c.b16 %v4078, %v4077
        %v4089 = vpack.c.b16 %v4080, %v4079
        %v4090 = vpack.c.b16 %v4082, %v4081
        %4099 = vmatprep.subr.bf16.mxu0 0
        %4100 = vmatpush1.bf16.msra.mxu0 %v4083
        %4101 = vmatprep.subr.bf16.mxu0 0
        %4102 = vmatpush1.bf16.msra.mxu0 %v4084
        %4103 = vmatprep.subr.bf16.mxu0 0
        %4104 = vmatpush1.bf16.msra.mxu0 %v4085
        %4105 = vmatprep.subr.bf16.mxu0 0
        %4106 = vmatpush1.bf16.msra.mxu0 %v4086
        %4107 = vmatprep.subr.bf16.mxu0 0
        %4108 = vmatpush1.bf16.msra.mxu0 %v4087
        %4109 = vmatprep.subr.bf16.mxu0 0
        %4110 = vmatpush1.bf16.msra.mxu0 %v4088
        %4111 = vmatprep.subr.bf16.mxu0 0
        %4112 = vmatpush1.bf16.msra.mxu0 %v4089
        %4113 = vmatprep.subr.bf16.mxu0 0
        %4114 = vmatpush1.bf16.msra.mxu0 %v4090
        %4115 = vmatprep.subr.bf16.mxu0 0
        %4116 = vmatpush1.bf16.msra.mxu0 0
        %4117 = vmatprep.subr.bf16.mxu0 0
        %4118 = vmatpush1.bf16.msra.mxu0 0
        %4119 = vmatprep.subr.bf16.mxu0 0
        %4120 = vmatpush1.bf16.msra.mxu0 0
        %4121 = vmatprep.subr.bf16.mxu0 0
        %4122 = vmatpush1.bf16.msra.mxu0 0
        %4123 = vmatprep.subr.bf16.mxu0 0
        %4124 = vmatpush1.bf16.msra.mxu0 0
        %4125 = vmatprep.subr.bf16.mxu0 0
        %4126 = vmatpush1.bf16.msra.mxu0 0
        %4127 = vmatprep.subr.bf16.mxu0 0
        %4128 = vmatpush1.bf16.msra.mxu0 0
        %4129 = vmatprep.subr.bf16.mxu0 0
        %4130 = vmatpush1.bf16.msra.mxu0 0
        %4131 = vmatprep.mubr.bf16.mxu0 0
        %4132 = vmatmul.mubr.bf16.gmra.mrb[0].mxu0 %v4019
        %v4133 = vpop.f32.mrb[0].mxu0
        %v4134 = vadd.f32 0.0, %v4133
        %v4135 = vpop.f32.mrb[0].mxu0
        %v4136 = vpop.f32.mrb[0].mxu0
        %v4137 = vadd.f32 0.0, %v4136
        %v4138 = vpop.f32.mrb[0].mxu0
        %4139 = vmatprep.mubr.bf16.mxu0 0
        %4140 = vmatmul.mubr.bf16.gmra.mrb[0].mxu0 %v4020
        %v4141 = vpop.f32.mrb[0].mxu0
        %v4142 = vadd.f32 0.0, %v4141
        %v4143 = vpop.f32.mrb[0].mxu0
        %v4144 = vpop.f32.mrb[0].mxu0
        %v4145 = vadd.f32 0.0, %v4144
        %v4146 = vpop.f32.mrb[0].mxu0
        %4147 = vmatprep.mubr.bf16.mxu0 0
        %4148 = vmatmul.mubr.bf16.gmra.mrb[0].mxu0 %v4021
        %v4149 = vpop.f32.mrb[0].mxu0
        %v4150 = vadd.f32 0.0, %v4149
        %v4151 = vpop.f32.mrb[0].mxu0
        %v4152 = vpop.f32.mrb[0].mxu0
        %v4153 = vadd.f32 0.0, %v4152
        %v4154 = vpop.f32.mrb[0].mxu0
        %4155 = vmatprep.mubr.bf16.mxu0 0
        %4156 = vmatmul.mubr.bf16.gmra.mrb[0].mxu0 %v4022
        %v4157 = vpop.f32.mrb[0].mxu0
        %v4158 = vadd.f32 0.0, %v4157
        %v4159 = vpop.f32.mrb[0].mxu0
        %v4160 = vpop.f32.mrb[0].mxu0
        %v4161 = vadd.f32 0.0, %v4160
        %v4162 = vpop.f32.mrb[0].mxu0
        %4163 = vmatprep.mubr.bf16.mxu0 0
        %4164 = vmatmul.mubr.bf16.gmra.mrb[0].mxu0 %v4023
        %v4165 = vpop.f32.mrb[0].mxu0
        %v4166 = vadd.f32 0.0, %v4165
        %v4167 = vpop.f32.mrb[0].mxu0
        %v4168 = vpop.f32.mrb[0].mxu0
        %v4169 = vadd.f32 0.0, %v4168
        %v4170 = vpop.f32.mrb[0].mxu0
        %4171 = vmatprep.mubr.bf16.mxu0 0
        %4172 = vmatmul.mubr.bf16.gmra.mrb[0].mxu0 %v4024
        %v4173 = vpop.f32.mrb[0].mxu0
        %v4174 = vadd.f32 0.0, %v4173
        %v4175 = vpop.f32.mrb[0].mxu0
        %v4176 = vpop.f32.mrb[0].mxu0
        %v4177 = vadd.f32 0.0, %v4176
        %v4178 = vpop.f32.mrb[0].mxu0
        %4179 = vmatprep.mubr.bf16.mxu0 0
        %4180 = vmatmul.mubr.bf16.gmra.mrb[0].mxu0 %v4025
        %v4181 = vpop.f32.mrb[0].mxu0
        %v4182 = vadd.f32 0.0, %v4181
        %v4183 = vpop.f32.mrb[0].mxu0
        %v4184 = vpop.f32.mrb[0].mxu0
        %v4185 = vadd.f32 0.0, %v4184
        %v4186 = vpop.f32.mrb[0].mxu0
        %4187 = vmatprep.mubr.bf16.mxu0 0
        %4188 = vmatmul.mubr.bf16.gmra.mrb[0].mxu0 %v4026
        %v4189 = vpop.f32.mrb[0].mxu0
        %v4190 = vadd.f32 0.0, %v4189
        %v4191 = vpop.f32.mrb[0].mxu0
        %v4192 = vpop.f32.mrb[0].mxu0
        %v4193 = vadd.f32 0.0, %v4192
        %v4194 = vpop.f32.mrb[0].mxu0
        %4195 = vmatprep.mubr.bf16.mxu0 0
        %4196 = vmatmul.mubr.bf16.gmra.mrb[0].mxu0 %v4027
        %v4197 = vpop.f32.mrb[0].mxu0
        %v4198 = vadd.f32 0.0, %v4197
        %v4199 = vpop.f32.mrb[0].mxu0
        %v4200 = vpop.f32.mrb[0].mxu0
        %v4201 = vadd.f32 0.0, %v4200
        %v4202 = vpop.f32.mrb[0].mxu0
        %4203 = vmatprep.mubr.bf16.mxu0 0
        %4204 = vmatmul.mubr.bf16.gmra.mrb[0].mxu0 %v4028
        %v4205 = vpop.f32.mrb[0].mxu0
        %v4206 = vadd.f32 0.0, %v4205
        %v4207 = vpop.f32.mrb[0].mxu0
        %v4208 = vpop.f32.mrb[0].mxu0
        %v4209 = vadd.f32 0.0, %v4208
        %v4210 = vpop.f32.mrb[0].mxu0
        %4211 = vmatprep.mubr.bf16.mxu0 0
        %4212 = vmatmul.mubr.bf16.gmra.mrb[0].mxu0 %v4029
        %v4213 = vpop.f32.mrb[0].mxu0
        %v4214 = vadd.f32 0.0, %v4213
        %v4215 = vpop.f32.mrb[0].mxu0
        %v4216 = vpop.f32.mrb[0].mxu0
        %v4217 = vadd.f32 0.0, %v4216
        %v4218 = vpop.f32.mrb[0].mxu0
        %4219 = vmatprep.mubr.bf16.mxu0 0
        %4220 = vmatmul.mubr.bf16.gmra.mrb[0].mxu0 %v4030
        %v4221 = vpop.f32.mrb[0].mxu0
        %v4222 = vadd.f32 0.0, %v4221
        %v4223 = vpop.f32.mrb[0].mxu0
        %v4224 = vpop.f32.mrb[0].mxu0
        %v4225 = vadd.f32 0.0, %v4224
        %v4226 = vpop.f32.mrb[0].mxu0
        %4227 = vmatprep.mubr.bf16.mxu0 0
        %4228 = vmatmul.mubr.bf16.gmra.mrb[0].mxu0 %v4031
        %v4229 = vpop.f32.mrb[0].mxu0
        %v4230 = vadd.f32 0.0, %v4229
        %v4231 = vpop.f32.mrb[0].mxu0
        %v4232 = vpop.f32.mrb[0].mxu0
        %v4233 = vadd.f32 0.0, %v4232
        %v4234 = vpop.f32.mrb[0].mxu0
        %4235 = vmatprep.mubr.bf16.mxu0 0
        %4236 = vmatmul.mubr.bf16.gmra.mrb[0].mxu0 %v4032
        %v4237 = vpop.f32.mrb[0].mxu0
        %v4238 = vadd.f32 0.0, %v4237
        %v4239 = vpop.f32.mrb[0].mxu0
        %v4240 = vpop.f32.mrb[0].mxu0
        %v4241 = vadd.f32 0.0, %v4240
        %v4242 = vpop.f32.mrb[0].mxu0
        %4243 = vmatprep.mubr.bf16.mxu0 0
        %4244 = vmatmul.mubr.bf16.gmra.mrb[0].mxu0 %v4033
        %v4245 = vpop.f32.mrb[0].mxu0
        %v4246 = vadd.f32 0.0, %v4245
        %v4247 = vpop.f32.mrb[0].mxu0
        %v4248 = vpop.f32.mrb[0].mxu0
        %v4249 = vadd.f32 0.0, %v4248
        %v4250 = vpop.f32.mrb[0].mxu0
        %4251 = vmatprep.mubr.bf16.mxu0 0
        %4252 = vmatmul.mubr.bf16.gmra.mrb[0].mxu0 %v4034
        %v4253 = vpop.f32.mrb[0].mxu0
        %v4254 = vadd.f32 0.0, %v4253
        %v4255 = vpop.f32.mrb[0].mxu0
        %v4256 = vpop.f32.mrb[0].mxu0
        %v4257 = vadd.f32 0.0, %v4256
        %v4258 = vpop.f32.mrb[0].mxu0
        %4259 = vdwg.mxu0
        %v4260 = vld [vmem:[#allocation2] sm:$0xff]
        %v4261 = vld [vmem:[#allocation2 + $0x8] sm:$0xff]
        %v4262 = vld [vmem:[#allocation2 + $0x10] sm:$0xff]
        %v4263 = vld [vmem:[#allocation2 + $0x18] sm:$0xff]
        %v4264 = vld [vmem:[#allocation2 + $0x20] sm:$0xff]
        %v4265 = vld [vmem:[#allocation2 + $0x28] sm:$0xff]
        %v4266 = vld [vmem:[#allocation2 + $0x30] sm:$0xff]
        %v4267 = vld [vmem:[#allocation2 + $0x38] sm:$0xff]
        %v4268 = vld [vmem:[#allocation2 + $0x40] sm:$0xff]
        %v4269 = vld [vmem:[#allocation2 + $0x48] sm:$0xff]
        %v4270 = vld [vmem:[#allocation2 + $0x50] sm:$0xff]
        %v4271 = vld [vmem:[#allocation2 + $0x58] sm:$0xff]
        %v4272 = vld [vmem:[#allocation2 + $0x60] sm:$0xff]
        %v4273 = vld [vmem:[#allocation2 + $0x68] sm:$0xff]
        %v4274 = vld [vmem:[#allocation2 + $0x70] sm:$0xff]
        %v4275 = vld [vmem:[#allocation2 + $0x78] sm:$0xff]
        %v4276 = vld [vmem:[#allocation2 + $0x80] sm:$0xff]
        %v4277 = vld [vmem:[#allocation2 + $0x88] sm:$0xff]
        %v4278 = vld [vmem:[#allocation2 + $0x90] sm:$0xff]
        %v4279 = vld [vmem:[#allocation2 + $0x98] sm:$0xff]
        %v4280 = vld [vmem:[#allocation2 + $0xa0] sm:$0xff]
        %v4281 = vld [vmem:[#allocation2 + $0xa8] sm:$0xff]
        %v4282 = vld [vmem:[#allocation2 + $0xb0] sm:$0xff]
        %v4283 = vld [vmem:[#allocation2 + $0xb8] sm:$0xff]
        %v4284 = vld [vmem:[#allocation2 + $0xc0] sm:$0xff]
        %v4285 = vld [vmem:[#allocation2 + $0xc8] sm:$0xff]
        %v4286 = vld [vmem:[#allocation2 + $0xd0] sm:$0xff]
        %v4287 = vld [vmem:[#allocation2 + $0xd8] sm:$0xff]
        %v4288 = vld [vmem:[#allocation2 + $0xe0] sm:$0xff]
        %v4289 = vld [vmem:[#allocation2 + $0xe8] sm:$0xff]
        %v4290 = vld [vmem:[#allocation2 + $0xf0] sm:$0xff]
        %v4291 = vld [vmem:[#allocation2 + $0xf8] sm:$0xff]
        %v4292 = vadd.f32 %v4260, %v4134
        %v4293 = vadd.f32 %v4261, %v4137
        %v4294 = vadd.f32 %v4262, %v4142
        %v4295 = vadd.f32 %v4263, %v4145
        %v4296 = vadd.f32 %v4264, %v4150
        %v4297 = vadd.f32 %v4265, %v4153
        %v4298 = vadd.f32 %v4266, %v4158
        %v4299 = vadd.f32 %v4267, %v4161
        %v4300 = vadd.f32 %v4268, %v4166
        %v4301 = vadd.f32 %v4269, %v4169
        %v4302 = vadd.f32 %v4270, %v4174
        %v4303 = vadd.f32 %v4271, %v4177
        %v4304 = vadd.f32 %v4272, %v4182
        %v4305 = vadd.f32 %v4273, %v4185
        %v4306 = vadd.f32 %v4274, %v4190
        %v4307 = vadd.f32 %v4275, %v4193
        %v4308 = vadd.f32 %v4276, %v4198
        %v4309 = vadd.f32 %v4277, %v4201
        %v4310 = vadd.f32 %v4278, %v4206
        %v4311 = vadd.f32 %v4279, %v4209
        %v4312 = vadd.f32 %v4280, %v4214
        %v4313 = vadd.f32 %v4281, %v4217
        %v4314 = vadd.f32 %v4282, %v4222
        %v4315 = vadd.f32 %v4283, %v4225
        %v4316 = vadd.f32 %v4284, %v4230
        %v4317 = vadd.f32 %v4285, %v4233
        %v4318 = vadd.f32 %v4286, %v4238
        %v4319 = vadd.f32 %v4287, %v4241
        %v4320 = vadd.f32 %v4288, %v4246
        %v4321 = vadd.f32 %v4289, %v4249
        %v4322 = vadd.f32 %v4290, %v4254
        %v4323 = vadd.f32 %v4291, %v4257
        %4324 = vst [vmem:[#allocation2] sm:$0xff] %v4292
        %4325 = vst [vmem:[#allocation2 + $0x8] sm:$0xff] %v4293
        %4326 = vst [vmem:[#allocation2 + $0x10] sm:$0xff] %v4294
        %4327 = vst [vmem:[#allocation2 + $0x18] sm:$0xff] %v4295
        %4328 = vst [vmem:[#allocation2 + $0x20] sm:$0xff] %v4296
        %4329 = vst [vmem:[#allocation2 + $0x28] sm:$0xff] %v4297
        %4330 = vst [vmem:[#allocation2 + $0x30] sm:$0xff] %v4298
        %4331 = vst [vmem:[#allocation2 + $0x38] sm:$0xff] %v4299
        %4332 = vst [vmem:[#allocation2 + $0x40] sm:$0xff] %v4300
        %4333 = vst [vmem:[#allocation2 + $0x48] sm:$0xff] %v4301
        %4334 = vst [vmem:[#allocation2 + $0x50] sm:$0xff] %v4302
        %4335 = vst [vmem:[#allocation2 + $0x58] sm:$0xff] %v4303
        %4336 = vst [vmem:[#allocation2 + $0x60] sm:$0xff] %v4304
        %4337 = vst [vmem:[#allocation2 + $0x68] sm:$0xff] %v4305
        %4338 = vst [vmem:[#allocation2 + $0x70] sm:$0xff] %v4306
        %4339 = vst [vmem:[#allocation2 + $0x78] sm:$0xff] %v4307
        %4340 = vst [vmem:[#allocation2 + $0x80] sm:$0xff] %v4308
        %4341 = vst [vmem:[#allocation2 + $0x88] sm:$0xff] %v4309
        %4342 = vst [vmem:[#allocation2 + $0x90] sm:$0xff] %v4310
        %4343 = vst [vmem:[#allocation2 + $0x98] sm:$0xff] %v4311
        %4344 = vst [vmem:[#allocation2 + $0xa0] sm:$0xff] %v4312
        %4345 = vst [vmem:[#allocation2 + $0xa8] sm:$0xff] %v4313
        %4346 = vst [vmem:[#allocation2 + $0xb0] sm:$0xff] %v4314
        %4347 = vst [vmem:[#allocation2 + $0xb8] sm:$0xff] %v4315
        %4348 = vst [vmem:[#allocation2 + $0xc0] sm:$0xff] %v4316
        %4349 = vst [vmem:[#allocation2 + $0xc8] sm:$0xff] %v4317
        %4350 = vst [vmem:[#allocation2 + $0xd0] sm:$0xff] %v4318
        %4351 = vst [vmem:[#allocation2 + $0xd8] sm:$0xff] %v4319
        %4352 = vst [vmem:[#allocation2 + $0xe0] sm:$0xff] %v4320
        %4353 = vst [vmem:[#allocation2 + $0xe8] sm:$0xff] %v4321
        %4354 = vst [vmem:[#allocation2 + $0xf0] sm:$0xff] %v4322
        %4355 = vst [vmem:[#allocation2 + $0xf8] sm:$0xff] %v4323
        %v4356 = vld [vmem:[%s3905] sm:$0xf]
        %v4357 = vld [vmem:[%s3905 + $0x4] sm:$0xf]
        %v4358 = vld [vmem:[%s3905 + $0x8] sm:$0x1]
        %v4359 = vld [vmem:[%s3905 + $0xc] sm:$0xf]
        %v4360 = vld [vmem:[%s3905 + $0x10] sm:$0xf]
        %v4361 = vld [vmem:[%s3905 + $0x14] sm:$0x1]
        %v4362 = vld [vmem:[%s3905 + $0x18] sm:$0xf]
        %v4363 = vld [vmem:[%s3905 + $0x1c] sm:$0xf]
        %v4364 = vld [vmem:[%s3905 + $0x20] sm:$0x1]
        %v4365 = vld [vmem:[%s3905 + $0x24] sm:$0xf]
        %v4366 = vld [vmem:[%s3905 + $0x28] sm:$0xf]
        %v4367 = vld [vmem:[%s3905 + $0x2c] sm:$0x1]
        %v4368 = vld [vmem:[%s3905 + $0x30] sm:$0xf]
        %v4369 = vld [vmem:[%s3905 + $0x34] sm:$0xf]
        %v4370 = vld [vmem:[%s3905 + $0x38] sm:$0x1]
        %v4371 = vld [vmem:[%s3905 + $0x3c] sm:$0xf]
        %v4372 = vld [vmem:[%s3905 + $0x40] sm:$0xf]
        %v4373 = vld [vmem:[%s3905 + $0x44] sm:$0x1]
        %v4374 = vld [vmem:[%s3905 + $0x48] sm:$0xf]
        %v4375 = vld [vmem:[%s3905 + $0x4c] sm:$0xf]
        %v4376 = vld [vmem:[%s3905 + $0x50] sm:$0x1]
        %v4377 = vld [vmem:[%s3905 + $0x54] sm:$0xf]
        %v4378 = vld [vmem:[%s3905 + $0x58] sm:$0xf]
        %v4379 = vld [vmem:[%s3905 + $0x5c] sm:$0x1]
        %v4380 = vld [vmem:[%s3905 + $0x60] sm:$0xf]
        %v4381 = vld [vmem:[%s3905 + $0x64] sm:$0xf]
        %v4382 = vld [vmem:[%s3905 + $0x68] sm:$0x1]
        %v4383 = vld [vmem:[%s3905 + $0x6c] sm:$0xf]
        %v4384 = vld [vmem:[%s3905 + $0x70] sm:$0xf]
        %v4385 = vld [vmem:[%s3905 + $0x74] sm:$0x1]
        %v4386 = vld [vmem:[%s3905 + $0x78] sm:$0xf]
        %v4387 = vld [vmem:[%s3905 + $0x7c] sm:$0xf]
        %v4388 = vld [vmem:[%s3905 + $0x80] sm:$0x1]
        %v4389 = vld [vmem:[%s3905 + $0x84] sm:$0xf]
        %v4390 = vld [vmem:[%s3905 + $0x88] sm:$0xf]
        %v4391 = vld [vmem:[%s3905 + $0x8c] sm:$0x1]
        %v4392 = vld [vmem:[%s3905 + $0x90] sm:$0xf]
        %v4393 = vld [vmem:[%s3905 + $0x94] sm:$0xf]
        %v4394 = vld [vmem:[%s3905 + $0x98] sm:$0x1]
        %v4395 = vld [vmem:[%s3905 + $0x9c] sm:$0xf]
        %v4396 = vld [vmem:[%s3905 + $0xa0] sm:$0xf]
        %v4397 = vld [vmem:[%s3905 + $0xa4] sm:$0x1]
        %v4398 = vld [vmem:[%s3905 + $0xa8] sm:$0xf]
        %v4399 = vld [vmem:[%s3905 + $0xac] sm:$0xf]
        %v4400 = vld [vmem:[%s3905 + $0xb0] sm:$0x1]
        %v4401 = vld [vmem:[%s3905 + $0xb4] sm:$0xf]
        %v4402 = vld [vmem:[%s3905 + $0xb8] sm:$0xf]
        %v4403 = vld [vmem:[%s3905 + $0xbc] sm:$0x1]
        %v4405 = vshrl.u32 %v4356, 16
        %v4407 = vrot.slane %v4405, 4
        %v4408 = vshll.u32 %v4356, 16
        %v4410 = vrot.slane %v4408, 5
        %v4411 = vor.u32 %v4407, %v4410
        %v4412 = vrot.slane %v4411, 4
        %v4414 = vshll.u32 %v4357, 16
        %v4416 = vrot.slane %v4414, 5
        %v4417 = vsel %vm674, %v4412, %v4416
        %v4418 = vshrl.u32 %v4357, 16
        %v4420 = vrot.slane %v4418, 4
        %v4421 = vor.u32 %v4420, %v4416
        %v4422 = vrot.slane %v4421, 4
        %v4424 = vshll.u32 %v4358, 16
        %v4426 = vrot.slane %v4424, 5
        %v4427 = vsel %vm674, %v4422, %v4426
        %v4429 = vshrl.u32 %v4359, 16
        %v4431 = vrot.slane %v4429, 4
        %v4432 = vshll.u32 %v4359, 16
        %v4434 = vrot.slane %v4432, 5
        %v4435 = vor.u32 %v4431, %v4434
        %v4436 = vrot.slane %v4435, 4
        %v4438 = vshll.u32 %v4360, 16
        %v4440 = vrot.slane %v4438, 5
        %v4441 = vsel %vm674, %v4436, %v4440
        %v4442 = vshrl.u32 %v4360, 16
        %v4444 = vrot.slane %v4442, 4
        %v4445 = vor.u32 %v4444, %v4440
        %v4446 = vrot.slane %v4445, 4
        %v4448 = vshll.u32 %v4361, 16
        %v4450 = vrot.slane %v4448, 5
        %v4451 = vsel %vm674, %v4446, %v4450
        %v4453 = vshrl.u32 %v4362, 16
        %v4455 = vrot.slane %v4453, 4
        %v4456 = vshll.u32 %v4362, 16
        %v4458 = vrot.slane %v4456, 5
        %v4459 = vor.u32 %v4455, %v4458
        %v4460 = vrot.slane %v4459, 4
        %v4462 = vshll.u32 %v4363, 16
        %v4464 = vrot.slane %v4462, 5
        %v4465 = vsel %vm674, %v4460, %v4464
        %v4466 = vshrl.u32 %v4363, 16
        %v4468 = vrot.slane %v4466, 4
        %v4469 = vor.u32 %v4468, %v4464
        %v4470 = vrot.slane %v4469, 4
        %v4472 = vshll.u32 %v4364, 16
        %v4474 = vrot.slane %v4472, 5
        %v4475 = vsel %vm674, %v4470, %v4474
        %v4477 = vshrl.u32 %v4365, 16
        %v4479 = vrot.slane %v4477, 4
        %v4480 = vshll.u32 %v4365, 16
        %v4482 = vrot.slane %v4480, 5
        %v4483 = vor.u32 %v4479, %v4482
        %v4484 = vrot.slane %v4483, 4
        %v4486 = vshll.u32 %v4366, 16
        %v4488 = vrot.slane %v4486, 5
        %v4489 = vsel %vm674, %v4484, %v4488
        %v4490 = vshrl.u32 %v4366, 16
        %v4492 = vrot.slane %v4490, 4
        %v4493 = vor.u32 %v4492, %v4488
        %v4494 = vrot.slane %v4493, 4
        %v4496 = vshll.u32 %v4367, 16
        %v4498 = vrot.slane %v4496, 5
        %v4499 = vsel %vm674, %v4494, %v4498
        %v4501 = vshrl.u32 %v4368, 16
        %v4503 = vrot.slane %v4501, 4
        %v4504 = vshll.u32 %v4368, 16
        %v4506 = vrot.slane %v4504, 5
        %v4507 = vor.u32 %v4503, %v4506
        %v4508 = vrot.slane %v4507, 4
        %v4510 = vshll.u32 %v4369, 16
        %v4512 = vrot.slane %v4510, 5
        %v4513 = vsel %vm674, %v4508, %v4512
        %v4514 = vshrl.u32 %v4369, 16
        %v4516 = vrot.slane %v4514, 4
        %v4517 = vor.u32 %v4516, %v4512
        %v4518 = vrot.slane %v4517, 4
        %v4520 = vshll.u32 %v4370, 16
        %v4522 = vrot.slane %v4520, 5
        %v4523 = vsel %vm674, %v4518, %v4522
        %v4525 = vshrl.u32 %v4371, 16
        %v4527 = vrot.slane %v4525, 4
        %v4528 = vshll.u32 %v4371, 16
        %v4530 = vrot.slane %v4528, 5
        %v4531 = vor.u32 %v4527, %v4530
        %v4532 = vrot.slane %v4531, 4
        %v4534 = vshll.u32 %v4372, 16
        %v4536 = vrot.slane %v4534, 5
        %v4537 = vsel %vm674, %v4532, %v4536
        %v4538 = vshrl.u32 %v4372, 16
        %v4540 = vrot.slane %v4538, 4
        %v4541 = vor.u32 %v4540, %v4536
        %v4542 = vrot.slane %v4541, 4
        %v4544 = vshll.u32 %v4373, 16
        %v4546 = vrot.slane %v4544, 5
        %v4547 = vsel %vm674, %v4542, %v4546
        %v4549 = vshrl.u32 %v4374, 16
        %v4551 = vrot.slane %v4549, 4
        %v4552 = vshll.u32 %v4374, 16
        %v4554 = vrot.slane %v4552, 5
        %v4555 = vor.u32 %v4551, %v4554
        %v4556 = vrot.slane %v4555, 4
        %v4558 = vshll.u32 %v4375, 16
        %v4560 = vrot.slane %v4558, 5
        %v4561 = vsel %vm674, %v4556, %v4560
        %v4562 = vshrl.u32 %v4375, 16
        %v4564 = vrot.slane %v4562, 4
        %v4565 = vor.u32 %v4564, %v4560
        %v4566 = vrot.slane %v4565, 4
        %v4568 = vshll.u32 %v4376, 16
        %v4570 = vrot.slane %v4568, 5
        %v4571 = vsel %vm674, %v4566, %v4570
        %v4573 = vshrl.u32 %v4377, 16
        %v4575 = vrot.slane %v4573, 4
        %v4576 = vshll.u32 %v4377, 16
        %v4578 = vrot.slane %v4576, 5
        %v4579 = vor.u32 %v4575, %v4578
        %v4580 = vrot.slane %v4579, 4
        %v4582 = vshll.u32 %v4378, 16
        %v4584 = vrot.slane %v4582, 5
        %v4585 = vsel %vm674, %v4580, %v4584
        %v4586 = vshrl.u32 %v4378, 16
        %v4588 = vrot.slane %v4586, 4
        %v4589 = vor.u32 %v4588, %v4584
        %v4590 = vrot.slane %v4589, 4
        %v4592 = vshll.u32 %v4379, 16
        %v4594 = vrot.slane %v4592, 5
        %v4595 = vsel %vm674, %v4590, %v4594
        %v4597 = vshrl.u32 %v4380, 16
        %v4599 = vrot.slane %v4597, 4
        %v4600 = vshll.u32 %v4380, 16
        %v4602 = vrot.slane %v4600, 5
        %v4603 = vor.u32 %v4599, %v4602
        %v4604 = vrot.slane %v4603, 4
        %v4606 = vshll.u32 %v4381, 16
        %v4608 = vrot.slane %v4606, 5
        %v4609 = vsel %vm674, %v4604, %v4608
        %v4610 = vshrl.u32 %v4381, 16
        %v4612 = vrot.slane %v4610, 4
        %v4613 = vor.u32 %v4612, %v4608
        %v4614 = vrot.slane %v4613, 4
        %v4616 = vshll.u32 %v4382, 16
        %v4618 = vrot.slane %v4616, 5
        %v4619 = vsel %vm674, %v4614, %v4618
        %v4621 = vshrl.u32 %v4383, 16
        %v4623 = vrot.slane %v4621, 4
        %v4624 = vshll.u32 %v4383, 16
        %v4626 = vrot.slane %v4624, 5
        %v4627 = vor.u32 %v4623, %v4626
        %v4628 = vrot.slane %v4627, 4
        %v4630 = vshll.u32 %v4384, 16
        %v4632 = vrot.slane %v4630, 5
        %v4633 = vsel %vm674, %v4628, %v4632
        %v4634 = vshrl.u32 %v4384, 16
        %v4636 = vrot.slane %v4634, 4
        %v4637 = vor.u32 %v4636, %v4632
        %v4638 = vrot.slane %v4637, 4
        %v4640 = vshll.u32 %v4385, 16
        %v4642 = vrot.slane %v4640, 5
        %v4643 = vsel %vm674, %v4638, %v4642
        %v4645 = vshrl.u32 %v4386, 16
        %v4647 = vrot.slane %v4645, 4
        %v4648 = vshll.u32 %v4386, 16
        %v4650 = vrot.slane %v4648, 5
        %v4651 = vor.u32 %v4647, %v4650
        %v4652 = vrot.slane %v4651, 4
        %v4654 = vshll.u32 %v4387, 16
        %v4656 = vrot.slane %v4654, 5
        %v4657 = vsel %vm674, %v4652, %v4656
        %v4658 = vshrl.u32 %v4387, 16
        %v4660 = vrot.slane %v4658, 4
        %v4661 = vor.u32 %v4660, %v4656
        %v4662 = vrot.slane %v4661, 4
        %v4664 = vshll.u32 %v4388, 16
        %v4666 = vrot.slane %v4664, 5
        %v4667 = vsel %vm674, %v4662, %v4666
        %v4669 = vshrl.u32 %v4389, 16
        %v4671 = vrot.slane %v4669, 4
        %v4672 = vshll.u32 %v4389, 16
        %v4674 = vrot.slane %v4672, 5
        %v4675 = vor.u32 %v4671, %v4674
        %v4676 = vrot.slane %v4675, 4
        %v4678 = vshll.u32 %v4390, 16
        %v4680 = vrot.slane %v4678, 5
        %v4681 = vsel %vm674, %v4676, %v4680
        %v4682 = vshrl.u32 %v4390, 16
        %v4684 = vrot.slane %v4682, 4
        %v4685 = vor.u32 %v4684, %v4680
        %v4686 = vrot.slane %v4685, 4
        %v4688 = vshll.u32 %v4391, 16
        %v4690 = vrot.slane %v4688, 5
        %v4691 = vsel %vm674, %v4686, %v4690
        %v4693 = vshrl.u32 %v4392, 16
        %v4695 = vrot.slane %v4693, 4
        %v4696 = vshll.u32 %v4392, 16
        %v4698 = vrot.slane %v4696, 5
        %v4699 = vor.u32 %v4695, %v4698
        %v4700 = vrot.slane %v4699, 4
        %v4702 = vshll.u32 %v4393, 16
        %v4704 = vrot.slane %v4702, 5
        %v4705 = vsel %vm674, %v4700, %v4704
        %v4706 = vshrl.u32 %v4393, 16
        %v4708 = vrot.slane %v4706, 4
        %v4709 = vor.u32 %v4708, %v4704
        %v4710 = vrot.slane %v4709, 4
        %v4712 = vshll.u32 %v4394, 16
        %v4714 = vrot.slane %v4712, 5
        %v4715 = vsel %vm674, %v4710, %v4714
        %v4717 = vshrl.u32 %v4395, 16
        %v4719 = vrot.slane %v4717, 4
        %v4720 = vshll.u32 %v4395, 16
        %v4722 = vrot.slane %v4720, 5
        %v4723 = vor.u32 %v4719, %v4722
        %v4724 = vrot.slane %v4723, 4
        %v4726 = vshll.u32 %v4396, 16
        %v4728 = vrot.slane %v4726, 5
        %v4729 = vsel %vm674, %v4724, %v4728
        %v4730 = vshrl.u32 %v4396, 16
        %v4732 = vrot.slane %v4730, 4
        %v4733 = vor.u32 %v4732, %v4728
        %v4734 = vrot.slane %v4733, 4
        %v4736 = vshll.u32 %v4397, 16
        %v4738 = vrot.slane %v4736, 5
        %v4739 = vsel %vm674, %v4734, %v4738
        %v4741 = vshrl.u32 %v4398, 16
        %v4743 = vrot.slane %v4741, 4
        %v4744 = vshll.u32 %v4398, 16
        %v4746 = vrot.slane %v4744, 5
        %v4747 = vor.u32 %v4743, %v4746
        %v4748 = vrot.slane %v4747, 4
        %v4750 = vshll.u32 %v4399, 16
        %v4752 = vrot.slane %v4750, 5
        %v4753 = vsel %vm674, %v4748, %v4752
        %v4754 = vshrl.u32 %v4399, 16
        %v4756 = vrot.slane %v4754, 4
        %v4757 = vor.u32 %v4756, %v4752
        %v4758 = vrot.slane %v4757, 4
        %v4760 = vshll.u32 %v4400, 16
        %v4762 = vrot.slane %v4760, 5
        %v4763 = vsel %vm674, %v4758, %v4762
        %v4765 = vshrl.u32 %v4401, 16
        %v4767 = vrot.slane %v4765, 4
        %v4768 = vshll.u32 %v4401, 16
        %v4770 = vrot.slane %v4768, 5
        %v4771 = vor.u32 %v4767, %v4770
        %v4772 = vrot.slane %v4771, 4
        %v4774 = vshll.u32 %v4402, 16
        %v4776 = vrot.slane %v4774, 5
        %v4777 = vsel %vm674, %v4772, %v4776
        %v4778 = vshrl.u32 %v4402, 16
        %v4780 = vrot.slane %v4778, 4
        %v4781 = vor.u32 %v4780, %v4776
        %v4782 = vrot.slane %v4781, 4
        %v4784 = vshll.u32 %v4403, 16
        %v4786 = vrot.slane %v4784, 5
        %v4787 = vsel %vm674, %v4782, %v4786
        %s4788 = scalar_lea.vmem %s233, 448
        %v4789 = vld [vmem:[%s4788] sm:$0xf]
        %v4790 = vld [vmem:[%s4788 + $0x4] sm:$0xf]
        %v4791 = vld [vmem:[%s4788 + $0x8] sm:$0xf]
        %v4792 = vld [vmem:[%s4788 + $0xc] sm:$0xf]
        %v4793 = vld [vmem:[%s4788 + $0x10] sm:$0xf]
        %v4794 = vld [vmem:[%s4788 + $0x14] sm:$0xf]
        %v4795 = vld [vmem:[%s4788 + $0x18] sm:$0xf]
        %v4796 = vld [vmem:[%s4788 + $0x1c] sm:$0xf]
        %v4797 = vld [vmem:[%s4788 + $0x20] sm:$0xf]
        %v4798 = vld [vmem:[%s4788 + $0x24] sm:$0xf]
        %v4799 = vld [vmem:[%s4788 + $0x28] sm:$0xf]
        %v4800 = vld [vmem:[%s4788 + $0x2c] sm:$0xf]
        %v4801 = vld [vmem:[%s4788 + $0x30] sm:$0xf]
        %v4802 = vld [vmem:[%s4788 + $0x34] sm:$0xf]
        %v4803 = vld [vmem:[%s4788 + $0x38] sm:$0xf]
        %v4804 = vld [vmem:[%s4788 + $0x3c] sm:$0xf]
        %v4805 = vunpack.c.l.b16 %v4417
        %v4806 = vunpack.c.l.b16 %v4427
        %v4807 = vunpack.c.l.b16 %v4441
        %v4808 = vunpack.c.l.b16 %v4451
        %v4809 = vunpack.c.l.b16 %v4465
        %v4810 = vunpack.c.l.b16 %v4475
        %v4811 = vunpack.c.l.b16 %v4489
        %v4812 = vunpack.c.l.b16 %v4499
        %v4813 = vunpack.c.l.b16 %v4513
        %v4814 = vunpack.c.l.b16 %v4523
        %v4815 = vunpack.c.l.b16 %v4537
        %v4816 = vunpack.c.l.b16 %v4547
        %v4817 = vunpack.c.l.b16 %v4561
        %v4818 = vunpack.c.l.b16 %v4571
        %v4819 = vunpack.c.l.b16 %v4585
        %v4820 = vunpack.c.l.b16 %v4595
        %v4821 = vunpack.c.l.b16 %v4609
        %v4822 = vunpack.c.l.b16 %v4619
        %v4823 = vunpack.c.l.b16 %v4633
        %v4824 = vunpack.c.l.b16 %v4643
        %v4825 = vunpack.c.l.b16 %v4657
        %v4826 = vunpack.c.l.b16 %v4667
        %v4827 = vunpack.c.l.b16 %v4681
        %v4828 = vunpack.c.l.b16 %v4691
        %v4829 = vunpack.c.l.b16 %v4705
        %v4830 = vunpack.c.l.b16 %v4715
        %v4831 = vunpack.c.l.b16 %v4729
        %v4832 = vunpack.c.l.b16 %v4739
        %v4833 = vunpack.c.l.b16 %v4753
        %v4834 = vunpack.c.l.b16 %v4763
        %v4835 = vunpack.c.l.b16 %v4777
        %v4836 = vunpack.c.l.b16 %v4787
        %v4837 = vpack.c.b16 %v4806, %v4805
        %v4838 = vpack.c.b16 %v4808, %v4807
        %v4839 = vpack.c.b16 %v4810, %v4809
        %v4840 = vpack.c.b16 %v4812, %v4811
        %v4841 = vpack.c.b16 %v4814, %v4813
        %v4842 = vpack.c.b16 %v4816, %v4815
        %v4843 = vpack.c.b16 %v4818, %v4817
        %v4844 = vpack.c.b16 %v4820, %v4819
        %v4845 = vpack.c.b16 %v4822, %v4821
        %v4846 = vpack.c.b16 %v4824, %v4823
        %v4847 = vpack.c.b16 %v4826, %v4825
        %v4848 = vpack.c.b16 %v4828, %v4827
        %v4849 = vpack.c.b16 %v4830, %v4829
        %v4850 = vpack.c.b16 %v4832, %v4831
        %v4851 = vpack.c.b16 %v4834, %v4833
        %v4852 = vpack.c.b16 %v4836, %v4835
        %v4885 = vunpack.c.l.b16 %v4789
        %v4886 = vunpack.c.l.b16 %v4790
        %v4887 = vunpack.c.l.b16 %v4791
        %v4888 = vunpack.c.l.b16 %v4792
        %v4889 = vunpack.c.l.b16 %v4793
        %v4890 = vunpack.c.l.b16 %v4794
        %v4891 = vunpack.c.l.b16 %v4795
        %v4892 = vunpack.c.l.b16 %v4796
        %v4893 = vunpack.c.l.b16 %v4797
        %v4894 = vunpack.c.l.b16 %v4798
        %v4895 = vunpack.c.l.b16 %v4799
        %v4896 = vunpack.c.l.b16 %v4800
        %v4897 = vunpack.c.l.b16 %v4801
        %v4898 = vunpack.c.l.b16 %v4802
        %v4899 = vunpack.c.l.b16 %v4803
        %v4900 = vunpack.c.l.b16 %v4804
        %v4901 = vpack.c.b16 %v4886, %v4885
        %v4902 = vpack.c.b16 %v4888, %v4887
        %v4903 = vpack.c.b16 %v4890, %v4889
        %v4904 = vpack.c.b16 %v4892, %v4891
        %v4905 = vpack.c.b16 %v4894, %v4893
        %v4906 = vpack.c.b16 %v4896, %v4895
        %v4907 = vpack.c.b16 %v4898, %v4897
        %v4908 = vpack.c.b16 %v4900, %v4899
        %4917 = vmatprep.subr.bf16.mxu0 0
        %4918 = vmatpush1.bf16.msra.mxu0 %v4901
        %4919 = vmatprep.subr.bf16.mxu0 0
        %4920 = vmatpush1.bf16.msra.mxu0 %v4902
        %4921 = vmatprep.subr.bf16.mxu0 0
        %4922 = vmatpush1.bf16.msra.mxu0 %v4903
        %4923 = vmatprep.subr.bf16.mxu0 0
        %4924 = vmatpush1.bf16.msra.mxu0 %v4904
        %4925 = vmatprep.subr.bf16.mxu0 0
        %4926 = vmatpush1.bf16.msra.mxu0 %v4905
        %4927 = vmatprep.subr.bf16.mxu0 0
        %4928 = vmatpush1.bf16.msra.mxu0 %v4906
        %4929 = vmatprep.subr.bf16.mxu0 0
        %4930 = vmatpush1.bf16.msra.mxu0 %v4907
        %4931 = vmatprep.subr.bf16.mxu0 0
        %4932 = vmatpush1.bf16.msra.mxu0 %v4908
        %4933 = vmatprep.subr.bf16.mxu0 0
        %4934 = vmatpush1.bf16.msra.mxu0 0
        %4935 = vmatprep.subr.bf16.mxu0 0
        %4936 = vmatpush1.bf16.msra.mxu0 0
        %4937 = vmatprep.subr.bf16.mxu0 0
        %4938 = vmatpush1.bf16.msra.mxu0 0
        %4939 = vmatprep.subr.bf16.mxu0 0
        %4940 = vmatpush1.bf16.msra.mxu0 0
        %4941 = vmatprep.subr.bf16.mxu0 0
        %4942 = vmatpush1.bf16.msra.mxu0 0
        %4943 = vmatprep.subr.bf16.mxu0 0
        %4944 = vmatpush1.bf16.msra.mxu0 0
        %4945 = vmatprep.subr.bf16.mxu0 0
        %4946 = vmatpush1.bf16.msra.mxu0 0
        %4947 = vmatprep.subr.bf16.mxu0 0
        %4948 = vmatpush1.bf16.msra.mxu0 0
        %4949 = vmatprep.mubr.bf16.mxu0 0
        %4950 = vmatmul.mubr.bf16.gmra.mrb[0].mxu0 %v4837
        %v4951 = vpop.f32.mrb[0].mxu0
        %v4952 = vadd.f32 0.0, %v4951
        %v4953 = vpop.f32.mrb[0].mxu0
        %v4954 = vpop.f32.mrb[0].mxu0
        %v4955 = vadd.f32 0.0, %v4954
        %v4956 = vpop.f32.mrb[0].mxu0
        %4957 = vmatprep.mubr.bf16.mxu0 0
        %4958 = vmatmul.mubr.bf16.gmra.mrb[0].mxu0 %v4838
        %v4959 = vpop.f32.mrb[0].mxu0
        %v4960 = vadd.f32 0.0, %v4959
        %v4961 = vpop.f32.mrb[0].mxu0
        %v4962 = vpop.f32.mrb[0].mxu0
        %v4963 = vadd.f32 0.0, %v4962
        %v4964 = vpop.f32.mrb[0].mxu0
        %4965 = vmatprep.mubr.bf16.mxu0 0
        %4966 = vmatmul.mubr.bf16.gmra.mrb[0].mxu0 %v4839
        %v4967 = vpop.f32.mrb[0].mxu0
        %v4968 = vadd.f32 0.0, %v4967
        %v4969 = vpop.f32.mrb[0].mxu0
        %v4970 = vpop.f32.mrb[0].mxu0
        %v4971 = vadd.f32 0.0, %v4970
        %v4972 = vpop.f32.mrb[0].mxu0
        %4973 = vmatprep.mubr.bf16.mxu0 0
        %4974 = vmatmul.mubr.bf16.gmra.mrb[0].mxu0 %v4840
        %v4975 = vpop.f32.mrb[0].mxu0
        %v4976 = vadd.f32 0.0, %v4975
        %v4977 = vpop.f32.mrb[0].mxu0
        %v4978 = vpop.f32.mrb[0].mxu0
        %v4979 = vadd.f32 0.0, %v4978
        %v4980 = vpop.f32.mrb[0].mxu0
        %4981 = vmatprep.mubr.bf16.mxu0 0
        %4982 = vmatmul.mubr.bf16.gmra.mrb[0].mxu0 %v4841
        %v4983 = vpop.f32.mrb[0].mxu0
        %v4984 = vadd.f32 0.0, %v4983
        %v4985 = vpop.f32.mrb[0].mxu0
        %v4986 = vpop.f32.mrb[0].mxu0
        %v4987 = vadd.f32 0.0, %v4986
        %v4988 = vpop.f32.mrb[0].mxu0
        %4989 = vmatprep.mubr.bf16.mxu0 0
        %4990 = vmatmul.mubr.bf16.gmra.mrb[0].mxu0 %v4842
        %v4991 = vpop.f32.mrb[0].mxu0
        %v4992 = vadd.f32 0.0, %v4991
        %v4993 = vpop.f32.mrb[0].mxu0
        %v4994 = vpop.f32.mrb[0].mxu0
        %v4995 = vadd.f32 0.0, %v4994
        %v4996 = vpop.f32.mrb[0].mxu0
        %4997 = vmatprep.mubr.bf16.mxu0 0
        %4998 = vmatmul.mubr.bf16.gmra.mrb[0].mxu0 %v4843
        %v4999 = vpop.f32.mrb[0].mxu0
        %v5000 = vadd.f32 0.0, %v4999
        %v5001 = vpop.f32.mrb[0].mxu0
        %v5002 = vpop.f32.mrb[0].mxu0
        %v5003 = vadd.f32 0.0, %v5002
        %v5004 = vpop.f32.mrb[0].mxu0
        %5005 = vmatprep.mubr.bf16.mxu0 0
        %5006 = vmatmul.mubr.bf16.gmra.mrb[0].mxu0 %v4844
        %v5007 = vpop.f32.mrb[0].mxu0
        %v5008 = vadd.f32 0.0, %v5007
        %v5009 = vpop.f32.mrb[0].mxu0
        %v5010 = vpop.f32.mrb[0].mxu0
        %v5011 = vadd.f32 0.0, %v5010
        %v5012 = vpop.f32.mrb[0].mxu0
        %5013 = vmatprep.mubr.bf16.mxu0 0
        %5014 = vmatmul.mubr.bf16.gmra.mrb[0].mxu0 %v4845
        %v5015 = vpop.f32.mrb[0].mxu0
        %v5016 = vadd.f32 0.0, %v5015
        %v5017 = vpop.f32.mrb[0].mxu0
        %v5018 = vpop.f32.mrb[0].mxu0
        %v5019 = vadd.f32 0.0, %v5018
        %v5020 = vpop.f32.mrb[0].mxu0
        %5021 = vmatprep.mubr.bf16.mxu0 0
        %5022 = vmatmul.mubr.bf16.gmra.mrb[0].mxu0 %v4846
        %v5023 = vpop.f32.mrb[0].mxu0
        %v5024 = vadd.f32 0.0, %v5023
        %v5025 = vpop.f32.mrb[0].mxu0
        %v5026 = vpop.f32.mrb[0].mxu0
        %v5027 = vadd.f32 0.0, %v5026
        %v5028 = vpop.f32.mrb[0].mxu0
        %5029 = vmatprep.mubr.bf16.mxu0 0
        %5030 = vmatmul.mubr.bf16.gmra.mrb[0].mxu0 %v4847
        %v5031 = vpop.f32.mrb[0].mxu0
        %v5032 = vadd.f32 0.0, %v5031
        %v5033 = vpop.f32.mrb[0].mxu0
        %v5034 = vpop.f32.mrb[0].mxu0
        %v5035 = vadd.f32 0.0, %v5034
        %v5036 = vpop.f32.mrb[0].mxu0
        %5037 = vmatprep.mubr.bf16.mxu0 0
        %5038 = vmatmul.mubr.bf16.gmra.mrb[0].mxu0 %v4848
        %v5039 = vpop.f32.mrb[0].mxu0
        %v5040 = vadd.f32 0.0, %v5039
        %v5041 = vpop.f32.mrb[0].mxu0
        %v5042 = vpop.f32.mrb[0].mxu0
        %v5043 = vadd.f32 0.0, %v5042
        %v5044 = vpop.f32.mrb[0].mxu0
        %5045 = vmatprep.mubr.bf16.mxu0 0
        %5046 = vmatmul.mubr.bf16.gmra.mrb[0].mxu0 %v4849
        %v5047 = vpop.f32.mrb[0].mxu0
        %v5048 = vadd.f32 0.0, %v5047
        %v5049 = vpop.f32.mrb[0].mxu0
        %v5050 = vpop.f32.mrb[0].mxu0
        %v5051 = vadd.f32 0.0, %v5050
        %v5052 = vpop.f32.mrb[0].mxu0
        %5053 = vmatprep.mubr.bf16.mxu0 0
        %5054 = vmatmul.mubr.bf16.gmra.mrb[0].mxu0 %v4850
        %v5055 = vpop.f32.mrb[0].mxu0
        %v5056 = vadd.f32 0.0, %v5055
        %v5057 = vpop.f32.mrb[0].mxu0
        %v5058 = vpop.f32.mrb[0].mxu0
        %v5059 = vadd.f32 0.0, %v5058
        %v5060 = vpop.f32.mrb[0].mxu0
        %5061 = vmatprep.mubr.bf16.mxu0 0
        %5062 = vmatmul.mubr.bf16.gmra.mrb[0].mxu0 %v4851
        %v5063 = vpop.f32.mrb[0].mxu0
        %v5064 = vadd.f32 0.0, %v5063
        %v5065 = vpop.f32.mrb[0].mxu0
        %v5066 = vpop.f32.mrb[0].mxu0
        %v5067 = vadd.f32 0.0, %v5066
        %v5068 = vpop.f32.mrb[0].mxu0
        %5069 = vmatprep.mubr.bf16.mxu0 0
        %5070 = vmatmul.mubr.bf16.gmra.mrb[0].mxu0 %v4852
        %v5071 = vpop.f32.mrb[0].mxu0
        %v5072 = vadd.f32 0.0, %v5071
        %v5073 = vpop.f32.mrb[0].mxu0
        %v5074 = vpop.f32.mrb[0].mxu0
        %v5075 = vadd.f32 0.0, %v5074
        %v5076 = vpop.f32.mrb[0].mxu0
        %5077 = vdwg.mxu0
        %v5078 = vld [vmem:[#allocation2] sm:$0xff]
        %v5079 = vld [vmem:[#allocation2 + $0x8] sm:$0xff]
        %v5080 = vld [vmem:[#allocation2 + $0x10] sm:$0xff]
        %v5081 = vld [vmem:[#allocation2 + $0x18] sm:$0xff]
        %v5082 = vld [vmem:[#allocation2 + $0x20] sm:$0xff]
        %v5083 = vld [vmem:[#allocation2 + $0x28] sm:$0xff]
        %v5084 = vld [vmem:[#allocation2 + $0x30] sm:$0xff]
        %v5085 = vld [vmem:[#allocation2 + $0x38] sm:$0xff]
        %v5086 = vld [vmem:[#allocation2 + $0x40] sm:$0xff]
        %v5087 = vld [vmem:[#allocation2 + $0x48] sm:$0xff]
        %v5088 = vld [vmem:[#allocation2 + $0x50] sm:$0xff]
        %v5089 = vld [vmem:[#allocation2 + $0x58] sm:$0xff]
        %v5090 = vld [vmem:[#allocation2 + $0x60] sm:$0xff]
        %v5091 = vld [vmem:[#allocation2 + $0x68] sm:$0xff]
        %v5092 = vld [vmem:[#allocation2 + $0x70] sm:$0xff]
        %v5093 = vld [vmem:[#allocation2 + $0x78] sm:$0xff]
        %v5094 = vld [vmem:[#allocation2 + $0x80] sm:$0xff]
        %v5095 = vld [vmem:[#allocation2 + $0x88] sm:$0xff]
        %v5096 = vld [vmem:[#allocation2 + $0x90] sm:$0xff]
        %v5097 = vld [vmem:[#allocation2 + $0x98] sm:$0xff]
        %v5098 = vld [vmem:[#allocation2 + $0xa0] sm:$0xff]
        %v5099 = vld [vmem:[#allocation2 + $0xa8] sm:$0xff]
        %v5100 = vld [vmem:[#allocation2 + $0xb0] sm:$0xff]
        %v5101 = vld [vmem:[#allocation2 + $0xb8] sm:$0xff]
        %v5102 = vld [vmem:[#allocation2 + $0xc0] sm:$0xff]
        %v5103 = vld [vmem:[#allocation2 + $0xc8] sm:$0xff]
        %v5104 = vld [vmem:[#allocation2 + $0xd0] sm:$0xff]
        %v5105 = vld [vmem:[#allocation2 + $0xd8] sm:$0xff]
        %v5106 = vld [vmem:[#allocation2 + $0xe0] sm:$0xff]
        %v5107 = vld [vmem:[#allocation2 + $0xe8] sm:$0xff]
        %v5108 = vld [vmem:[#allocation2 + $0xf0] sm:$0xff]
        %v5109 = vld [vmem:[#allocation2 + $0xf8] sm:$0xff]
        %v5110 = vadd.f32 %v5078, %v4952
        %v5111 = vadd.f32 %v5079, %v4955
        %v5112 = vadd.f32 %v5080, %v4960
        %v5113 = vadd.f32 %v5081, %v4963
        %v5114 = vadd.f32 %v5082, %v4968
        %v5115 = vadd.f32 %v5083, %v4971
        %v5116 = vadd.f32 %v5084, %v4976
        %v5117 = vadd.f32 %v5085, %v4979
        %v5118 = vadd.f32 %v5086, %v4984
        %v5119 = vadd.f32 %v5087, %v4987
        %v5120 = vadd.f32 %v5088, %v4992
        %v5121 = vadd.f32 %v5089, %v4995
        %v5122 = vadd.f32 %v5090, %v5000
        %v5123 = vadd.f32 %v5091, %v5003
        %v5124 = vadd.f32 %v5092, %v5008
        %v5125 = vadd.f32 %v5093, %v5011
        %v5126 = vadd.f32 %v5094, %v5016
        %v5127 = vadd.f32 %v5095, %v5019
        %v5128 = vadd.f32 %v5096, %v5024
        %v5129 = vadd.f32 %v5097, %v5027
        %v5130 = vadd.f32 %v5098, %v5032
        %v5131 = vadd.f32 %v5099, %v5035
        %v5132 = vadd.f32 %v5100, %v5040
        %v5133 = vadd.f32 %v5101, %v5043
        %v5134 = vadd.f32 %v5102, %v5048
        %v5135 = vadd.f32 %v5103, %v5051
        %v5136 = vadd.f32 %v5104, %v5056
        %v5137 = vadd.f32 %v5105, %v5059
        %v5138 = vadd.f32 %v5106, %v5064
        %v5139 = vadd.f32 %v5107, %v5067
        %v5140 = vadd.f32 %v5108, %v5072
        %v5141 = vadd.f32 %v5109, %v5075
        %5142 = vst [vmem:[#allocation2] sm:$0xff] %v5110
        %5143 = vst [vmem:[#allocation2 + $0x8] sm:$0xff] %v5111
        %5144 = vst [vmem:[#allocation2 + $0x10] sm:$0xff] %v5112
        %5145 = vst [vmem:[#allocation2 + $0x18] sm:$0xff] %v5113
        %5146 = vst [vmem:[#allocation2 + $0x20] sm:$0xff] %v5114
        %5147 = vst [vmem:[#allocation2 + $0x28] sm:$0xff] %v5115
        %5148 = vst [vmem:[#allocation2 + $0x30] sm:$0xff] %v5116
        %5149 = vst [vmem:[#allocation2 + $0x38] sm:$0xff] %v5117
        %5150 = vst [vmem:[#allocation2 + $0x40] sm:$0xff] %v5118
        %5151 = vst [vmem:[#allocation2 + $0x48] sm:$0xff] %v5119
        %5152 = vst [vmem:[#allocation2 + $0x50] sm:$0xff] %v5120
        %5153 = vst [vmem:[#allocation2 + $0x58] sm:$0xff] %v5121
        %5154 = vst [vmem:[#allocation2 + $0x60] sm:$0xff] %v5122
        %5155 = vst [vmem:[#allocation2 + $0x68] sm:$0xff] %v5123
        %5156 = vst [vmem:[#allocation2 + $0x70] sm:$0xff] %v5124
        %5157 = vst [vmem:[#allocation2 + $0x78] sm:$0xff] %v5125
        %5158 = vst [vmem:[#allocation2 + $0x80] sm:$0xff] %v5126
        %5159 = vst [vmem:[#allocation2 + $0x88] sm:$0xff] %v5127
        %5160 = vst [vmem:[#allocation2 + $0x90] sm:$0xff] %v5128
        %5161 = vst [vmem:[#allocation2 + $0x98] sm:$0xff] %v5129
        %5162 = vst [vmem:[#allocation2 + $0xa0] sm:$0xff] %v5130
        %5163 = vst [vmem:[#allocation2 + $0xa8] sm:$0xff] %v5131
        %5164 = vst [vmem:[#allocation2 + $0xb0] sm:$0xff] %v5132
        %5165 = vst [vmem:[#allocation2 + $0xb8] sm:$0xff] %v5133
        %5166 = vst [vmem:[#allocation2 + $0xc0] sm:$0xff] %v5134
        %5167 = vst [vmem:[#allocation2 + $0xc8] sm:$0xff] %v5135
        %5168 = vst [vmem:[#allocation2 + $0xd0] sm:$0xff] %v5136
        %5169 = vst [vmem:[#allocation2 + $0xd8] sm:$0xff] %v5137
        %5170 = vst [vmem:[#allocation2 + $0xe0] sm:$0xff] %v5138
        %5171 = vst [vmem:[#allocation2 + $0xe8] sm:$0xff] %v5139
        %5172 = vst [vmem:[#allocation2 + $0xf0] sm:$0xff] %v5140
        %5173 = vst [vmem:[#allocation2 + $0xf8] sm:$0xff] %v5141
        %v5174 = vld [vmem:[%s3905] sm:$0xe]
        %v5175 = vld [vmem:[%s3905 + $0x4] sm:$0xf]
        %v5176 = vld [vmem:[%s3905 + $0x8] sm:$0x1]
        %v5177 = vld [vmem:[%s3905 + $0xc] sm:$0xe]
        %v5178 = vld [vmem:[%s3905 + $0x10] sm:$0xf]
        %v5179 = vld [vmem:[%s3905 + $0x14] sm:$0x1]
        %v5180 = vld [vmem:[%s3905 + $0x18] sm:$0xe]
        %v5181 = vld [vmem:[%s3905 + $0x1c] sm:$0xf]
        %v5182 = vld [vmem:[%s3905 + $0x20] sm:$0x1]
        %v5183 = vld [vmem:[%s3905 + $0x24] sm:$0xe]
        %v5184 = vld [vmem:[%s3905 + $0x28] sm:$0xf]
        %v5185 = vld [vmem:[%s3905 + $0x2c] sm:$0x1]
        %v5186 = vld [vmem:[%s3905 + $0x30] sm:$0xe]
        %v5187 = vld [vmem:[%s3905 + $0x34] sm:$0xf]
        %v5188 = vld [vmem:[%s3905 + $0x38] sm:$0x1]
        %v5189 = vld [vmem:[%s3905 + $0x3c] sm:$0xe]
        %v5190 = vld [vmem:[%s3905 + $0x40] sm:$0xf]
        %v5191 = vld [vmem:[%s3905 + $0x44] sm:$0x1]
        %v5192 = vld [vmem:[%s3905 + $0x48] sm:$0xe]
        %v5193 = vld [vmem:[%s3905 + $0x4c] sm:$0xf]
        %v5194 = vld [vmem:[%s3905 + $0x50] sm:$0x1]
        %v5195 = vld [vmem:[%s3905 + $0x54] sm:$0xe]
        %v5196 = vld [vmem:[%s3905 + $0x58] sm:$0xf]
        %v5197 = vld [vmem:[%s3905 + $0x5c] sm:$0x1]
        %v5198 = vld [vmem:[%s3905 + $0x60] sm:$0xe]
        %v5199 = vld [vmem:[%s3905 + $0x64] sm:$0xf]
        %v5200 = vld [vmem:[%s3905 + $0x68] sm:$0x1]
        %v5201 = vld [vmem:[%s3905 + $0x6c] sm:$0xe]
        %v5202 = vld [vmem:[%s3905 + $0x70] sm:$0xf]
        %v5203 = vld [vmem:[%s3905 + $0x74] sm:$0x1]
        %v5204 = vld [vmem:[%s3905 + $0x78] sm:$0xe]
        %v5205 = vld [vmem:[%s3905 + $0x7c] sm:$0xf]
        %v5206 = vld [vmem:[%s3905 + $0x80] sm:$0x1]
        %v5207 = vld [vmem:[%s3905 + $0x84] sm:$0xe]
        %v5208 = vld [vmem:[%s3905 + $0x88] sm:$0xf]
        %v5209 = vld [vmem:[%s3905 + $0x8c] sm:$0x1]
        %v5210 = vld [vmem:[%s3905 + $0x90] sm:$0xe]
        %v5211 = vld [vmem:[%s3905 + $0x94] sm:$0xf]
        %v5212 = vld [vmem:[%s3905 + $0x98] sm:$0x1]
        %v5213 = vld [vmem:[%s3905 + $0x9c] sm:$0xe]
        %v5214 = vld [vmem:[%s3905 + $0xa0] sm:$0xf]
        %v5215 = vld [vmem:[%s3905 + $0xa4] sm:$0x1]
        %v5216 = vld [vmem:[%s3905 + $0xa8] sm:$0xe]
        %v5217 = vld [vmem:[%s3905 + $0xac] sm:$0xf]
        %v5218 = vld [vmem:[%s3905 + $0xb0] sm:$0x1]
        %v5219 = vld [vmem:[%s3905 + $0xb4] sm:$0xe]
        %v5220 = vld [vmem:[%s3905 + $0xb8] sm:$0xf]
        %v5221 = vld [vmem:[%s3905 + $0xbc] sm:$0x1]
        %v5270 = vrot.slane %v5174, 5
        %v5271 = vrot.slane %v5270, 4
        %v5272 = vrot.slane %v5175, 5
        %v5273 = vsel %vm1543, %v5271, %v5272
        %v5274 = vrot.slane %v5272, 4
        %v5275 = vrot.slane %v5176, 5
        %v5276 = vsel %vm1543, %v5274, %v5275
        %v5277 = vrot.slane %v5177, 5
        %v5278 = vrot.slane %v5277, 4
        %v5279 = vrot.slane %v5178, 5
        %v5280 = vsel %vm1543, %v5278, %v5279
        %v5281 = vrot.slane %v5279, 4
        %v5282 = vrot.slane %v5179, 5
        %v5283 = vsel %vm1543, %v5281, %v5282
        %v5284 = vrot.slane %v5180, 5
        %v5285 = vrot.slane %v5284, 4
        %v5286 = vrot.slane %v5181, 5
        %v5287 = vsel %vm1543, %v5285, %v5286
        %v5288 = vrot.slane %v5286, 4
        %v5289 = vrot.slane %v5182, 5
        %v5290 = vsel %vm1543, %v5288, %v5289
        %v5291 = vrot.slane %v5183, 5
        %v5292 = vrot.slane %v5291, 4
        %v5293 = vrot.slane %v5184, 5
        %v5294 = vsel %vm1543, %v5292, %v5293
        %v5295 = vrot.slane %v5293, 4
        %v5296 = vrot.slane %v5185, 5
        %v5297 = vsel %vm1543, %v5295, %v5296
        %v5298 = vrot.slane %v5186, 5
        %v5299 = vrot.slane %v5298, 4
        %v5300 = vrot.slane %v5187, 5
        %v5301 = vsel %vm1543, %v5299, %v5300
        %v5302 = vrot.slane %v5300, 4
        %v5303 = vrot.slane %v5188, 5
        %v5304 = vsel %vm1543, %v5302, %v5303
        %v5305 = vrot.slane %v5189, 5
        %v5306 = vrot.slane %v5305, 4
        %v5307 = vrot.slane %v5190, 5
        %v5308 = vsel %vm1543, %v5306, %v5307
        %v5309 = vrot.slane %v5307, 4
        %v5310 = vrot.slane %v5191, 5
        %v5311 = vsel %vm1543, %v5309, %v5310
        %v5312 = vrot.slane %v5192, 5
        %v5313 = vrot.slane %v5312, 4
        %v5314 = vrot.slane %v5193, 5
        %v5315 = vsel %vm1543, %v5313, %v5314
        %v5316 = vrot.slane %v5314, 4
        %v5317 = vrot.slane %v5194, 5
        %v5318 = vsel %vm1543, %v5316, %v5317
        %v5319 = vrot.slane %v5195, 5
        %v5320 = vrot.slane %v5319, 4
        %v5321 = vrot.slane %v5196, 5
        %v5322 = vsel %vm1543, %v5320, %v5321
        %v5323 = vrot.slane %v5321, 4
        %v5324 = vrot.slane %v5197, 5
        %v5325 = vsel %vm1543, %v5323, %v5324
        %v5326 = vrot.slane %v5198, 5
        %v5327 = vrot.slane %v5326, 4
        %v5328 = vrot.slane %v5199, 5
        %v5329 = vsel %vm1543, %v5327, %v5328
        %v5330 = vrot.slane %v5328, 4
        %v5331 = vrot.slane %v5200, 5
        %v5332 = vsel %vm1543, %v5330, %v5331
        %v5333 = vrot.slane %v5201, 5
        %v5334 = vrot.slane %v5333, 4
        %v5335 = vrot.slane %v5202, 5
        %v5336 = vsel %vm1543, %v5334, %v5335
        %v5337 = vrot.slane %v5335, 4
        %v5338 = vrot.slane %v5203, 5
        %v5339 = vsel %vm1543, %v5337, %v5338
        %v5340 = vrot.slane %v5204, 5
        %v5341 = vrot.slane %v5340, 4
        %v5342 = vrot.slane %v5205, 5
        %v5343 = vsel %vm1543, %v5341, %v5342
        %v5344 = vrot.slane %v5342, 4
        %v5345 = vrot.slane %v5206, 5
        %v5346 = vsel %vm1543, %v5344, %v5345
        %v5347 = vrot.slane %v5207, 5
        %v5348 = vrot.slane %v5347, 4
        %v5349 = vrot.slane %v5208, 5
        %v5350 = vsel %vm1543, %v5348, %v5349
        %v5351 = vrot.slane %v5349, 4
        %v5352 = vrot.slane %v5209, 5
        %v5353 = vsel %vm1543, %v5351, %v5352
        %v5354 = vrot.slane %v5210, 5
        %v5355 = vrot.slane %v5354, 4
        %v5356 = vrot.slane %v5211, 5
        %v5357 = vsel %vm1543, %v5355, %v5356
        %v5358 = vrot.slane %v5356, 4
        %v5359 = vrot.slane %v5212, 5
        %v5360 = vsel %vm1543, %v5358, %v5359
        %v5361 = vrot.slane %v5213, 5
        %v5362 = vrot.slane %v5361, 4
        %v5363 = vrot.slane %v5214, 5
        %v5364 = vsel %vm1543, %v5362, %v5363
        %v5365 = vrot.slane %v5363, 4
        %v5366 = vrot.slane %v5215, 5
        %v5367 = vsel %vm1543, %v5365, %v5366
        %v5368 = vrot.slane %v5216, 5
        %v5369 = vrot.slane %v5368, 4
        %v5370 = vrot.slane %v5217, 5
        %v5371 = vsel %vm1543, %v5369, %v5370
        %v5372 = vrot.slane %v5370, 4
        %v5373 = vrot.slane %v5218, 5
        %v5374 = vsel %vm1543, %v5372, %v5373
        %v5375 = vrot.slane %v5219, 5
        %v5376 = vrot.slane %v5375, 4
        %v5377 = vrot.slane %v5220, 5
        %v5378 = vsel %vm1543, %v5376, %v5377
        %v5379 = vrot.slane %v5377, 4
        %v5380 = vrot.slane %v5221, 5
        %v5381 = vsel %vm1543, %v5379, %v5380
        %s5382 = scalar_lea.vmem %s233, 512
        %v5383 = vld [vmem:[%s5382] sm:$0xf]
        %v5384 = vld [vmem:[%s5382 + $0x4] sm:$0xf]
        %v5385 = vld [vmem:[%s5382 + $0x8] sm:$0xf]
        %v5386 = vld [vmem:[%s5382 + $0xc] sm:$0xf]
        %v5387 = vld [vmem:[%s5382 + $0x10] sm:$0xf]
        %v5388 = vld [vmem:[%s5382 + $0x14] sm:$0xf]
        %v5389 = vld [vmem:[%s5382 + $0x18] sm:$0xf]
        %v5390 = vld [vmem:[%s5382 + $0x1c] sm:$0xf]
        %v5391 = vld [vmem:[%s5382 + $0x20] sm:$0xf]
        %v5392 = vld [vmem:[%s5382 + $0x24] sm:$0xf]
        %v5393 = vld [vmem:[%s5382 + $0x28] sm:$0xf]
        %v5394 = vld [vmem:[%s5382 + $0x2c] sm:$0xf]
        %v5395 = vld [vmem:[%s5382 + $0x30] sm:$0xf]
        %v5396 = vld [vmem:[%s5382 + $0x34] sm:$0xf]
        %v5397 = vld [vmem:[%s5382 + $0x38] sm:$0xf]
        %v5398 = vld [vmem:[%s5382 + $0x3c] sm:$0xf]
        %v5399 = vunpack.c.l.b16 %v5273
        %v5400 = vunpack.c.l.b16 %v5276
        %v5401 = vunpack.c.l.b16 %v5280
        %v5402 = vunpack.c.l.b16 %v5283
        %v5403 = vunpack.c.l.b16 %v5287
        %v5404 = vunpack.c.l.b16 %v5290
        %v5405 = vunpack.c.l.b16 %v5294
        %v5406 = vunpack.c.l.b16 %v5297
        %v5407 = vunpack.c.l.b16 %v5301
        %v5408 = vunpack.c.l.b16 %v5304
        %v5409 = vunpack.c.l.b16 %v5308
        %v5410 = vunpack.c.l.b16 %v5311
        %v5411 = vunpack.c.l.b16 %v5315
        %v5412 = vunpack.c.l.b16 %v5318
        %v5413 = vunpack.c.l.b16 %v5322
        %v5414 = vunpack.c.l.b16 %v5325
        %v5415 = vunpack.c.l.b16 %v5329
        %v5416 = vunpack.c.l.b16 %v5332
        %v5417 = vunpack.c.l.b16 %v5336
        %v5418 = vunpack.c.l.b16 %v5339
        %v5419 = vunpack.c.l.b16 %v5343
        %v5420 = vunpack.c.l.b16 %v5346
        %v5421 = vunpack.c.l.b16 %v5350
        %v5422 = vunpack.c.l.b16 %v5353
        %v5423 = vunpack.c.l.b16 %v5357
        %v5424 = vunpack.c.l.b16 %v5360
        %v5425 = vunpack.c.l.b16 %v5364
        %v5426 = vunpack.c.l.b16 %v5367
        %v5427 = vunpack.c.l.b16 %v5371
        %v5428 = vunpack.c.l.b16 %v5374
        %v5429 = vunpack.c.l.b16 %v5378
        %v5430 = vunpack.c.l.b16 %v5381
        %v5431 = vpack.c.b16 %v5400, %v5399
        %v5432 = vpack.c.b16 %v5402, %v5401
        %v5433 = vpack.c.b16 %v5404, %v5403
        %v5434 = vpack.c.b16 %v5406, %v5405
        %v5435 = vpack.c.b16 %v5408, %v5407
        %v5436 = vpack.c.b16 %v5410, %v5409
        %v5437 = vpack.c.b16 %v5412, %v5411
        %v5438 = vpack.c.b16 %v5414, %v5413
        %v5439 = vpack.c.b16 %v5416, %v5415
        %v5440 = vpack.c.b16 %v5418, %v5417
        %v5441 = vpack.c.b16 %v5420, %v5419
        %v5442 = vpack.c.b16 %v5422, %v5421
        %v5443 = vpack.c.b16 %v5424, %v5423
        %v5444 = vpack.c.b16 %v5426, %v5425
        %v5445 = vpack.c.b16 %v5428, %v5427
        %v5446 = vpack.c.b16 %v5430, %v5429
        %v5479 = vunpack.c.l.b16 %v5383
        %v5480 = vunpack.c.l.b16 %v5384
        %v5481 = vunpack.c.l.b16 %v5385
        %v5482 = vunpack.c.l.b16 %v5386
        %v5483 = vunpack.c.l.b16 %v5387
        %v5484 = vunpack.c.l.b16 %v5388
        %v5485 = vunpack.c.l.b16 %v5389
        %v5486 = vunpack.c.l.b16 %v5390
        %v5487 = vunpack.c.l.b16 %v5391
        %v5488 = vunpack.c.l.b16 %v5392
        %v5489 = vunpack.c.l.b16 %v5393
        %v5490 = vunpack.c.l.b16 %v5394
        %v5491 = vunpack.c.l.b16 %v5395
        %v5492 = vunpack.c.l.b16 %v5396
        %v5493 = vunpack.c.l.b16 %v5397
        %v5494 = vunpack.c.l.b16 %v5398
        %v5495 = vpack.c.b16 %v5480, %v5479
        %v5496 = vpack.c.b16 %v5482, %v5481
        %v5497 = vpack.c.b16 %v5484, %v5483
        %v5498 = vpack.c.b16 %v5486, %v5485
        %v5499 = vpack.c.b16 %v5488, %v5487
        %v5500 = vpack.c.b16 %v5490, %v5489
        %v5501 = vpack.c.b16 %v5492, %v5491
        %v5502 = vpack.c.b16 %v5494, %v5493
        %5511 = vmatprep.subr.bf16.mxu0 0
        %5512 = vmatpush1.bf16.msra.mxu0 %v5495
        %5513 = vmatprep.subr.bf16.mxu0 0
        %5514 = vmatpush1.bf16.msra.mxu0 %v5496
        %5515 = vmatprep.subr.bf16.mxu0 0
        %5516 = vmatpush1.bf16.msra.mxu0 %v5497
        %5517 = vmatprep.subr.bf16.mxu0 0
        %5518 = vmatpush1.bf16.msra.mxu0 %v5498
        %5519 = vmatprep.subr.bf16.mxu0 0
        %5520 = vmatpush1.bf16.msra.mxu0 %v5499
        %5521 = vmatprep.subr.bf16.mxu0 0
        %5522 = vmatpush1.bf16.msra.mxu0 %v5500
        %5523 = vmatprep.subr.bf16.mxu0 0
        %5524 = vmatpush1.bf16.msra.mxu0 %v5501
        %5525 = vmatprep.subr.bf16.mxu0 0
        %5526 = vmatpush1.bf16.msra.mxu0 %v5502
        %5527 = vmatprep.subr.bf16.mxu0 0
        %5528 = vmatpush1.bf16.msra.mxu0 0
        %5529 = vmatprep.subr.bf16.mxu0 0
        %5530 = vmatpush1.bf16.msra.mxu0 0
        %5531 = vmatprep.subr.bf16.mxu0 0
        %5532 = vmatpush1.bf16.msra.mxu0 0
        %5533 = vmatprep.subr.bf16.mxu0 0
        %5534 = vmatpush1.bf16.msra.mxu0 0
        %5535 = vmatprep.subr.bf16.mxu0 0
        %5536 = vmatpush1.bf16.msra.mxu0 0
        %5537 = vmatprep.subr.bf16.mxu0 0
        %5538 = vmatpush1.bf16.msra.mxu0 0
        %5539 = vmatprep.subr.bf16.mxu0 0
        %5540 = vmatpush1.bf16.msra.mxu0 0
        %5541 = vmatprep.subr.bf16.mxu0 0
        %5542 = vmatpush1.bf16.msra.mxu0 0
        %5543 = vmatprep.mubr.bf16.mxu0 0
        %5544 = vmatmul.mubr.bf16.gmra.mrb[0].mxu0 %v5431
        %v5545 = vpop.f32.mrb[0].mxu0
        %v5546 = vadd.f32 0.0, %v5545
        %v5547 = vpop.f32.mrb[0].mxu0
        %v5548 = vpop.f32.mrb[0].mxu0
        %v5549 = vadd.f32 0.0, %v5548
        %v5550 = vpop.f32.mrb[0].mxu0
        %5551 = vmatprep.mubr.bf16.mxu0 0
        %5552 = vmatmul.mubr.bf16.gmra.mrb[0].mxu0 %v5432
        %v5553 = vpop.f32.mrb[0].mxu0
        %v5554 = vadd.f32 0.0, %v5553
        %v5555 = vpop.f32.mrb[0].mxu0
        %v5556 = vpop.f32.mrb[0].mxu0
        %v5557 = vadd.f32 0.0, %v5556
        %v5558 = vpop.f32.mrb[0].mxu0
        %5559 = vmatprep.mubr.bf16.mxu0 0
        %5560 = vmatmul.mubr.bf16.gmra.mrb[0].mxu0 %v5433
        %v5561 = vpop.f32.mrb[0].mxu0
        %v5562 = vadd.f32 0.0, %v5561
        %v5563 = vpop.f32.mrb[0].mxu0
        %v5564 = vpop.f32.mrb[0].mxu0
        %v5565 = vadd.f32 0.0, %v5564
        %v5566 = vpop.f32.mrb[0].mxu0
        %5567 = vmatprep.mubr.bf16.mxu0 0
        %5568 = vmatmul.mubr.bf16.gmra.mrb[0].mxu0 %v5434
        %v5569 = vpop.f32.mrb[0].mxu0
        %v5570 = vadd.f32 0.0, %v5569
        %v5571 = vpop.f32.mrb[0].mxu0
        %v5572 = vpop.f32.mrb[0].mxu0
        %v5573 = vadd.f32 0.0, %v5572
        %v5574 = vpop.f32.mrb[0].mxu0
        %5575 = vmatprep.mubr.bf16.mxu0 0
        %5576 = vmatmul.mubr.bf16.gmra.mrb[0].mxu0 %v5435
        %v5577 = vpop.f32.mrb[0].mxu0
        %v5578 = vadd.f32 0.0, %v5577
        %v5579 = vpop.f32.mrb[0].mxu0
        %v5580 = vpop.f32.mrb[0].mxu0
        %v5581 = vadd.f32 0.0, %v5580
        %v5582 = vpop.f32.mrb[0].mxu0
        %5583 = vmatprep.mubr.bf16.mxu0 0
        %5584 = vmatmul.mubr.bf16.gmra.mrb[0].mxu0 %v5436
        %v5585 = vpop.f32.mrb[0].mxu0
        %v5586 = vadd.f32 0.0, %v5585
        %v5587 = vpop.f32.mrb[0].mxu0
        %v5588 = vpop.f32.mrb[0].mxu0
        %v5589 = vadd.f32 0.0, %v5588
        %v5590 = vpop.f32.mrb[0].mxu0
        %5591 = vmatprep.mubr.bf16.mxu0 0
        %5592 = vmatmul.mubr.bf16.gmra.mrb[0].mxu0 %v5437
        %v5593 = vpop.f32.mrb[0].mxu0
        %v5594 = vadd.f32 0.0, %v5593
        %v5595 = vpop.f32.mrb[0].mxu0
        %v5596 = vpop.f32.mrb[0].mxu0
        %v5597 = vadd.f32 0.0, %v5596
        %v5598 = vpop.f32.mrb[0].mxu0
        %5599 = vmatprep.mubr.bf16.mxu0 0
        %5600 = vmatmul.mubr.bf16.gmra.mrb[0].mxu0 %v5438
        %v5601 = vpop.f32.mrb[0].mxu0
        %v5602 = vadd.f32 0.0, %v5601
        %v5603 = vpop.f32.mrb[0].mxu0
        %v5604 = vpop.f32.mrb[0].mxu0
        %v5605 = vadd.f32 0.0, %v5604
        %v5606 = vpop.f32.mrb[0].mxu0
        %5607 = vmatprep.mubr.bf16.mxu0 0
        %5608 = vmatmul.mubr.bf16.gmra.mrb[0].mxu0 %v5439
        %v5609 = vpop.f32.mrb[0].mxu0
        %v5610 = vadd.f32 0.0, %v5609
        %v5611 = vpop.f32.mrb[0].mxu0
        %v5612 = vpop.f32.mrb[0].mxu0
        %v5613 = vadd.f32 0.0, %v5612
        %v5614 = vpop.f32.mrb[0].mxu0
        %5615 = vmatprep.mubr.bf16.mxu0 0
        %5616 = vmatmul.mubr.bf16.gmra.mrb[0].mxu0 %v5440
        %v5617 = vpop.f32.mrb[0].mxu0
        %v5618 = vadd.f32 0.0, %v5617
        %v5619 = vpop.f32.mrb[0].mxu0
        %v5620 = vpop.f32.mrb[0].mxu0
        %v5621 = vadd.f32 0.0, %v5620
        %v5622 = vpop.f32.mrb[0].mxu0
        %5623 = vmatprep.mubr.bf16.mxu0 0
        %5624 = vmatmul.mubr.bf16.gmra.mrb[0].mxu0 %v5441
        %v5625 = vpop.f32.mrb[0].mxu0
        %v5626 = vadd.f32 0.0, %v5625
        %v5627 = vpop.f32.mrb[0].mxu0
        %v5628 = vpop.f32.mrb[0].mxu0
        %v5629 = vadd.f32 0.0, %v5628
        %v5630 = vpop.f32.mrb[0].mxu0
        %5631 = vmatprep.mubr.bf16.mxu0 0
        %5632 = vmatmul.mubr.bf16.gmra.mrb[0].mxu0 %v5442
        %v5633 = vpop.f32.mrb[0].mxu0
        %v5634 = vadd.f32 0.0, %v5633
        %v5635 = vpop.f32.mrb[0].mxu0
        %v5636 = vpop.f32.mrb[0].mxu0
        %v5637 = vadd.f32 0.0, %v5636
        %v5638 = vpop.f32.mrb[0].mxu0
        %5639 = vmatprep.mubr.bf16.mxu0 0
        %5640 = vmatmul.mubr.bf16.gmra.mrb[0].mxu0 %v5443
        %v5641 = vpop.f32.mrb[0].mxu0
        %v5642 = vadd.f32 0.0, %v5641
        %v5643 = vpop.f32.mrb[0].mxu0
        %v5644 = vpop.f32.mrb[0].mxu0
        %v5645 = vadd.f32 0.0, %v5644
        %v5646 = vpop.f32.mrb[0].mxu0
        %5647 = vmatprep.mubr.bf16.mxu0 0
        %5648 = vmatmul.mubr.bf16.gmra.mrb[0].mxu0 %v5444
        %v5649 = vpop.f32.mrb[0].mxu0
        %v5650 = vadd.f32 0.0, %v5649
        %v5651 = vpop.f32.mrb[0].mxu0
        %v5652 = vpop.f32.mrb[0].mxu0
        %v5653 = vadd.f32 0.0, %v5652
        %v5654 = vpop.f32.mrb[0].mxu0
        %5655 = vmatprep.mubr.bf16.mxu0 0
        %5656 = vmatmul.mubr.bf16.gmra.mrb[0].mxu0 %v5445
        %v5657 = vpop.f32.mrb[0].mxu0
        %v5658 = vadd.f32 0.0, %v5657
        %v5659 = vpop.f32.mrb[0].mxu0
        %v5660 = vpop.f32.mrb[0].mxu0
        %v5661 = vadd.f32 0.0, %v5660
        %v5662 = vpop.f32.mrb[0].mxu0
        %5663 = vmatprep.mubr.bf16.mxu0 0
        %5664 = vmatmul.mubr.bf16.gmra.mrb[0].mxu0 %v5446
        %v5665 = vpop.f32.mrb[0].mxu0
        %v5666 = vadd.f32 0.0, %v5665
        %v5667 = vpop.f32.mrb[0].mxu0
        %v5668 = vpop.f32.mrb[0].mxu0
        %v5669 = vadd.f32 0.0, %v5668
        %v5670 = vpop.f32.mrb[0].mxu0
        %5671 = vdwg.mxu0
        %v5672 = vld [vmem:[#allocation2] sm:$0xff]
        %v5673 = vld [vmem:[#allocation2 + $0x8] sm:$0xff]
        %v5674 = vld [vmem:[#allocation2 + $0x10] sm:$0xff]
        %v5675 = vld [vmem:[#allocation2 + $0x18] sm:$0xff]
        %v5676 = vld [vmem:[#allocation2 + $0x20] sm:$0xff]
        %v5677 = vld [vmem:[#allocation2 + $0x28] sm:$0xff]
        %v5678 = vld [vmem:[#allocation2 + $0x30] sm:$0xff]
        %v5679 = vld [vmem:[#allocation2 + $0x38] sm:$0xff]
        %v5680 = vld [vmem:[#allocation2 + $0x40] sm:$0xff]
        %v5681 = vld [vmem:[#allocation2 + $0x48] sm:$0xff]
        %v5682 = vld [vmem:[#allocation2 + $0x50] sm:$0xff]
        %v5683 = vld [vmem:[#allocation2 + $0x58] sm:$0xff]
        %v5684 = vld [vmem:[#allocation2 + $0x60] sm:$0xff]
        %v5685 = vld [vmem:[#allocation2 + $0x68] sm:$0xff]
        %v5686 = vld [vmem:[#allocation2 + $0x70] sm:$0xff]
        %v5687 = vld [vmem:[#allocation2 + $0x78] sm:$0xff]
        %v5688 = vld [vmem:[#allocation2 + $0x80] sm:$0xff]
        %v5689 = vld [vmem:[#allocation2 + $0x88] sm:$0xff]
        %v5690 = vld [vmem:[#allocation2 + $0x90] sm:$0xff]
        %v5691 = vld [vmem:[#allocation2 + $0x98] sm:$0xff]
        %v5692 = vld [vmem:[#allocation2 + $0xa0] sm:$0xff]
        %v5693 = vld [vmem:[#allocation2 + $0xa8] sm:$0xff]
        %v5694 = vld [vmem:[#allocation2 + $0xb0] sm:$0xff]
        %v5695 = vld [vmem:[#allocation2 + $0xb8] sm:$0xff]
        %v5696 = vld [vmem:[#allocation2 + $0xc0] sm:$0xff]
        %v5697 = vld [vmem:[#allocation2 + $0xc8] sm:$0xff]
        %v5698 = vld [vmem:[#allocation2 + $0xd0] sm:$0xff]
        %v5699 = vld [vmem:[#allocation2 + $0xd8] sm:$0xff]
        %v5700 = vld [vmem:[#allocation2 + $0xe0] sm:$0xff]
        %v5701 = vld [vmem:[#allocation2 + $0xe8] sm:$0xff]
        %v5702 = vld [vmem:[#allocation2 + $0xf0] sm:$0xff]
        %v5703 = vld [vmem:[#allocation2 + $0xf8] sm:$0xff]
        %v5704 = vadd.f32 %v5672, %v5546
        %v5705 = vadd.f32 %v5673, %v5549
        %v5706 = vadd.f32 %v5674, %v5554
        %v5707 = vadd.f32 %v5675, %v5557
        %v5708 = vadd.f32 %v5676, %v5562
        %v5709 = vadd.f32 %v5677, %v5565
        %v5710 = vadd.f32 %v5678, %v5570
        %v5711 = vadd.f32 %v5679, %v5573
        %v5712 = vadd.f32 %v5680, %v5578
        %v5713 = vadd.f32 %v5681, %v5581
        %v5714 = vadd.f32 %v5682, %v5586
        %v5715 = vadd.f32 %v5683, %v5589
        %v5716 = vadd.f32 %v5684, %v5594
        %v5717 = vadd.f32 %v5685, %v5597
        %v5718 = vadd.f32 %v5686, %v5602
        %v5719 = vadd.f32 %v5687, %v5605
        %v5720 = vadd.f32 %v5688, %v5610
        %v5721 = vadd.f32 %v5689, %v5613
        %v5722 = vadd.f32 %v5690, %v5618
        %v5723 = vadd.f32 %v5691, %v5621
        %v5724 = vadd.f32 %v5692, %v5626
        %v5725 = vadd.f32 %v5693, %v5629
        %v5726 = vadd.f32 %v5694, %v5634
        %v5727 = vadd.f32 %v5695, %v5637
        %v5728 = vadd.f32 %v5696, %v5642
        %v5729 = vadd.f32 %v5697, %v5645
        %v5730 = vadd.f32 %v5698, %v5650
        %v5731 = vadd.f32 %v5699, %v5653
        %v5732 = vadd.f32 %v5700, %v5658
        %v5733 = vadd.f32 %v5701, %v5661
        %v5734 = vadd.f32 %v5702, %v5666
        %v5735 = vadd.f32 %v5703, %v5669
        %5736 = vst [vmem:[#allocation2] sm:$0xff] %v5704
        %5737 = vst [vmem:[#allocation2 + $0x8] sm:$0xff] %v5705
        %5738 = vst [vmem:[#allocation2 + $0x10] sm:$0xff] %v5706
        %5739 = vst [vmem:[#allocation2 + $0x18] sm:$0xff] %v5707
        %5740 = vst [vmem:[#allocation2 + $0x20] sm:$0xff] %v5708
        %5741 = vst [vmem:[#allocation2 + $0x28] sm:$0xff] %v5709
        %5742 = vst [vmem:[#allocation2 + $0x30] sm:$0xff] %v5710
        %5743 = vst [vmem:[#allocation2 + $0x38] sm:$0xff] %v5711
        %5744 = vst [vmem:[#allocation2 + $0x40] sm:$0xff] %v5712
        %5745 = vst [vmem:[#allocation2 + $0x48] sm:$0xff] %v5713
        %5746 = vst [vmem:[#allocation2 + $0x50] sm:$0xff] %v5714
        %5747 = vst [vmem:[#allocation2 + $0x58] sm:$0xff] %v5715
        %5748 = vst [vmem:[#allocation2 + $0x60] sm:$0xff] %v5716
        %5749 = vst [vmem:[#allocation2 + $0x68] sm:$0xff] %v5717
        %5750 = vst [vmem:[#allocation2 + $0x70] sm:$0xff] %v5718
        %5751 = vst [vmem:[#allocation2 + $0x78] sm:$0xff] %v5719
        %5752 = vst [vmem:[#allocation2 + $0x80] sm:$0xff] %v5720
        %5753 = vst [vmem:[#allocation2 + $0x88] sm:$0xff] %v5721
        %5754 = vst [vmem:[#allocation2 + $0x90] sm:$0xff] %v5722
        %5755 = vst [vmem:[#allocation2 + $0x98] sm:$0xff] %v5723
        %5756 = vst [vmem:[#allocation2 + $0xa0] sm:$0xff] %v5724
        %5757 = vst [vmem:[#allocation2 + $0xa8] sm:$0xff] %v5725
        %5758 = vst [vmem:[#allocation2 + $0xb0] sm:$0xff] %v5726
        %5759 = vst [vmem:[#allocation2 + $0xb8] sm:$0xff] %v5727
        %5760 = vst [vmem:[#allocation2 + $0xc0] sm:$0xff] %v5728
        %5761 = vst [vmem:[#allocation2 + $0xc8] sm:$0xff] %v5729
        %5762 = vst [vmem:[#allocation2 + $0xd0] sm:$0xff] %v5730
        %5763 = vst [vmem:[#allocation2 + $0xd8] sm:$0xff] %v5731
        %5764 = vst [vmem:[#allocation2 + $0xe0] sm:$0xff] %v5732
        %5765 = vst [vmem:[#allocation2 + $0xe8] sm:$0xff] %v5733
        %5766 = vst [vmem:[#allocation2 + $0xf0] sm:$0xff] %v5734
        %5767 = vst [vmem:[#allocation2 + $0xf8] sm:$0xff] %v5735
        %v5768 = vld [vmem:[#allocation2] sm:$0xff]
        %v5769 = vld [vmem:[#allocation2 + $0x8] sm:$0xff]
        %v5770 = vld [vmem:[#allocation2 + $0x10] sm:$0xff]
        %v5771 = vld [vmem:[#allocation2 + $0x18] sm:$0xff]
        %v5772 = vld [vmem:[#allocation2 + $0x20] sm:$0xff]
        %v5773 = vld [vmem:[#allocation2 + $0x28] sm:$0xff]
        %v5774 = vld [vmem:[#allocation2 + $0x30] sm:$0xff]
        %v5775 = vld [vmem:[#allocation2 + $0x38] sm:$0xff]
        %v5776 = vld [vmem:[#allocation2 + $0x40] sm:$0xff]
        %v5777 = vld [vmem:[#allocation2 + $0x48] sm:$0xff]
        %v5778 = vld [vmem:[#allocation2 + $0x50] sm:$0xff]
        %v5779 = vld [vmem:[#allocation2 + $0x58] sm:$0xff]
        %v5780 = vld [vmem:[#allocation2 + $0x60] sm:$0xff]
        %v5781 = vld [vmem:[#allocation2 + $0x68] sm:$0xff]
        %v5782 = vld [vmem:[#allocation2 + $0x70] sm:$0xff]
        %v5783 = vld [vmem:[#allocation2 + $0x78] sm:$0xff]
        %v5784 = vld [vmem:[#allocation2 + $0x80] sm:$0xff]
        %v5785 = vld [vmem:[#allocation2 + $0x88] sm:$0xff]
        %v5786 = vld [vmem:[#allocation2 + $0x90] sm:$0xff]
        %v5787 = vld [vmem:[#allocation2 + $0x98] sm:$0xff]
        %v5788 = vld [vmem:[#allocation2 + $0xa0] sm:$0xff]
        %v5789 = vld [vmem:[#allocation2 + $0xa8] sm:$0xff]
        %v5790 = vld [vmem:[#allocation2 + $0xb0] sm:$0xff]
        %v5791 = vld [vmem:[#allocation2 + $0xb8] sm:$0xff]
        %v5792 = vld [vmem:[#allocation2 + $0xc0] sm:$0xff]
        %v5793 = vld [vmem:[#allocation2 + $0xc8] sm:$0xff]
        %v5794 = vld [vmem:[#allocation2 + $0xd0] sm:$0xff]
        %v5795 = vld [vmem:[#allocation2 + $0xd8] sm:$0xff]
        %v5796 = vld [vmem:[#allocation2 + $0xe0] sm:$0xff]
        %v5797 = vld [vmem:[#allocation2 + $0xe8] sm:$0xff]
        %v5798 = vld [vmem:[#allocation2 + $0xf0] sm:$0xff]
        %v5799 = vld [vmem:[#allocation2 + $0xf8] sm:$0xff]
        %v5800 = vld [vmem:[%s236] sm:$0x1]
        %v5802 = vlaneseq
        %v5803 = vshrl.u32 %v5802, 7
        %v5804 = vsub.s32 0, %v5803
        %v5805 = vrot.slane %v5800, %v5804
        %v5807 = vadd.f32 %v5768, %v5805
        %v5808 = vadd.f32 %v5769, %v5805
        %v5809 = vadd.f32 %v5770, %v5805
        %v5810 = vadd.f32 %v5771, %v5805
        %v5811 = vadd.f32 %v5772, %v5805
        %v5812 = vadd.f32 %v5773, %v5805
        %v5813 = vadd.f32 %v5774, %v5805
        %v5814 = vadd.f32 %v5775, %v5805
        %v5815 = vadd.f32 %v5776, %v5805
        %v5816 = vadd.f32 %v5777, %v5805
        %v5817 = vadd.f32 %v5778, %v5805
        %v5818 = vadd.f32 %v5779, %v5805
        %v5819 = vadd.f32 %v5780, %v5805
        %v5820 = vadd.f32 %v5781, %v5805
        %v5821 = vadd.f32 %v5782, %v5805
        %v5822 = vadd.f32 %v5783, %v5805
        %v5823 = vadd.f32 %v5784, %v5805
        %v5824 = vadd.f32 %v5785, %v5805
        %v5825 = vadd.f32 %v5786, %v5805
        %v5826 = vadd.f32 %v5787, %v5805
        %v5827 = vadd.f32 %v5788, %v5805
        %v5828 = vadd.f32 %v5789, %v5805
        %v5829 = vadd.f32 %v5790, %v5805
        %v5830 = vadd.f32 %v5791, %v5805
        %v5831 = vadd.f32 %v5792, %v5805
        %v5832 = vadd.f32 %v5793, %v5805
        %v5833 = vadd.f32 %v5794, %v5805
        %v5834 = vadd.f32 %v5795, %v5805
        %v5835 = vadd.f32 %v5796, %v5805
        %v5836 = vadd.f32 %v5797, %v5805
        %v5837 = vadd.f32 %v5798, %v5805
        %v5838 = vadd.f32 %v5799, %v5805
        %v5839 = vmax.f32 %v5807, 0.0
        %v5840 = vmax.f32 %v5808, 0.0
        %v5841 = vmax.f32 %v5809, 0.0
        %v5842 = vmax.f32 %v5810, 0.0
        %v5843 = vmax.f32 %v5811, 0.0
        %v5844 = vmax.f32 %v5812, 0.0
        %v5845 = vmax.f32 %v5813, 0.0
        %v5846 = vmax.f32 %v5814, 0.0
        %v5847 = vmax.f32 %v5815, 0.0
        %v5848 = vmax.f32 %v5816, 0.0
        %v5849 = vmax.f32 %v5817, 0.0
        %v5850 = vmax.f32 %v5818, 0.0
        %v5851 = vmax.f32 %v5819, 0.0
        %v5852 = vmax.f32 %v5820, 0.0
        %v5853 = vmax.f32 %v5821, 0.0
        %v5854 = vmax.f32 %v5822, 0.0
        %v5855 = vmax.f32 %v5823, 0.0
        %v5856 = vmax.f32 %v5824, 0.0
        %v5857 = vmax.f32 %v5825, 0.0
        %v5858 = vmax.f32 %v5826, 0.0
        %v5859 = vmax.f32 %v5827, 0.0
        %v5860 = vmax.f32 %v5828, 0.0
        %v5861 = vmax.f32 %v5829, 0.0
        %v5862 = vmax.f32 %v5830, 0.0
        %v5863 = vmax.f32 %v5831, 0.0
        %v5864 = vmax.f32 %v5832, 0.0
        %v5865 = vmax.f32 %v5833, 0.0
        %v5866 = vmax.f32 %v5834, 0.0
        %v5867 = vmax.f32 %v5835, 0.0
        %v5868 = vmax.f32 %v5836, 0.0
        %v5869 = vmax.f32 %v5837, 0.0
        %v5870 = vmax.f32 %v5838, 0.0
        %5871 = vst [vmem:[%s220] sm:$0xff] %v5839
        %5872 = vst [vmem:[%s220 + $0x8] sm:$0xff] %v5840
        %5873 = vst [vmem:[%s220 + $0x10] sm:$0xff] %v5841
        %5874 = vst [vmem:[%s220 + $0x18] sm:$0xff] %v5842
        %5875 = vst [vmem:[%s220 + $0x20] sm:$0xff] %v5843
        %5876 = vst [vmem:[%s220 + $0x28] sm:$0xff] %v5844
        %5877 = vst [vmem:[%s220 + $0x30] sm:$0xff] %v5845
        %5878 = vst [vmem:[%s220 + $0x38] sm:$0xff] %v5846
        %5879 = vst [vmem:[%s220 + $0x40] sm:$0xff] %v5847
        %5880 = vst [vmem:[%s220 + $0x48] sm:$0xff] %v5848
        %5881 = vst [vmem:[%s220 + $0x50] sm:$0xff] %v5849
        %5882 = vst [vmem:[%s220 + $0x58] sm:$0xff] %v5850
        %5883 = vst [vmem:[%s220 + $0x60] sm:$0xff] %v5851
        %5884 = vst [vmem:[%s220 + $0x68] sm:$0xff] %v5852
        %5885 = vst [vmem:[%s220 + $0x70] sm:$0xff] %v5853
        %5886 = vst [vmem:[%s220 + $0x78] sm:$0xff] %v5854
        %5887 = vst [vmem:[%s220 + $0x80] sm:$0xff] %v5855
        %5888 = vst [vmem:[%s220 + $0x88] sm:$0xff] %v5856
        %5889 = vst [vmem:[%s220 + $0x90] sm:$0xff] %v5857
        %5890 = vst [vmem:[%s220 + $0x98] sm:$0xff] %v5858
        %5891 = vst [vmem:[%s220 + $0xa0] sm:$0xff] %v5859
        %5892 = vst [vmem:[%s220 + $0xa8] sm:$0xff] %v5860
        %5893 = vst [vmem:[%s220 + $0xb0] sm:$0xff] %v5861
        %5894 = vst [vmem:[%s220 + $0xb8] sm:$0xff] %v5862
        %5895 = vst [vmem:[%s220 + $0xc0] sm:$0xff] %v5863
        %5896 = vst [vmem:[%s220 + $0xc8] sm:$0xff] %v5864
        %5897 = vst [vmem:[%s220 + $0xd0] sm:$0xff] %v5865
        %5898 = vst [vmem:[%s220 + $0xd8] sm:$0xff] %v5866
        %5899 = vst [vmem:[%s220 + $0xe0] sm:$0xff] %v5867
        %5900 = vst [vmem:[%s220 + $0xe8] sm:$0xff] %v5868
        %5901 = vst [vmem:[%s220 + $0xf0] sm:$0xff] %v5869
        %5902 = vst [vmem:[%s220 + $0xf8] sm:$0xff] %v5870
        %s5903 = sand.u32 %s128, 1
        %s5904 = scalar_lea.sflag [#allocation4], %s5903
        %s5905 = sand.u32 %s128, 1
        %s5906 = smul.addr %s5905, 256
        %s5907 = scalar_lea.vmem [#allocation3], %s5906
        // Predicated region
        $region33: #{tpu_custom_call.1} parent=31 // pred_check
          %p5908 = pneg %p138
        $region34: #{tpu_custom_call.1} parent=31 // pred_check_branch
          %5910 = sbr.rel (%p5908) target = $region36
        $region35: #{tpu_custom_call.1} parent=31 // pred_region
          %s5911 = smul.u32 16, %s23
          %s5913 = ssub.s32 4096, 4096
          %5914 = vsyncadd %s5904, %s5913
          %s5915 = smul.addr %s5911, 2
          %s5916 = sadd.s32 %s24, %s5915
          %s5917 = smul.addr %s22, 32
          %s5918 = sadd.s32 %s5916, %s5917
          %s5919 = smul.addr %s5918, 128
          %s5920 = scalar_lea.hbm %s3, %s5919
          %s5921 = sshll.u32 %s5907, 4
          %s5922 = int_to_ptr.vmem [resolvable:$true] %s5921
          %5927 = dma.vmem_to_hbm [thread:$0]  %s5922, 4096, %s5920, %s5904, 128, 128, 8
        $region36: #{tpu_custom_call.1} parent=31 // pred_fallthru
          _
      $region32: #{tpu_custom_call.1} parent=5 // pred_fallthru
        _
      %p5928 = scmp.le.s32.totalorder 2, %s12
      // Predicated region
      $region37: #{tpu_custom_call.1} parent=5 // pred_check
        %p5929 = pneg %p5928
      $region38: #{tpu_custom_call.1} parent=5 // pred_check_branch
        %5931 = sbr.rel (%p5929) target = $region40
      $region39: #{tpu_custom_call.1} parent=5 // pred_region
        %s5932 = ssub.s32 %s12, 2
        // Predicated region
        $region41: #{tpu_custom_call.1} parent=39 // pred_check
          %p5933 = pneg %p144
        $region42: #{tpu_custom_call.1} parent=39 // pred_check_branch
          %5935 = sbr.rel (%p5933) target = $region44
        $region43: #{tpu_custom_call.1} parent=39 // pred_region
          %s5936 = sand.u32 %s129, 1
          %s5937 = scalar_lea.sflag [#allocation4], %s5936
          %s5938 = sand.u32 %s129, 1
          %s5939 = smul.addr %s5938, 256
          %s5940 = scalar_lea.vmem [#allocation3], %s5939
          %5941 = dma.done %s5937, 4096
        $region44: #{tpu_custom_call.1} parent=39 // pred_fallthru
          _
      $region40: #{tpu_custom_call.1} parent=5 // pred_fallthru
        _
    $region6: #{tpu_custom_call.1} parent=1 // loop_footer
      %s16 = sadd.s32 1, %s12
    $region7: #{tpu_custom_call.1} parent=1 // loop_footer_branch
      %11 = sbr.rel target = $region3
    $region8: #{tpu_custom_call.1} parent=1 // loop_exit
      _
    %5942 = vsyncpa [#allocation4], 1
    %s5943 = scalar_lea.sflag [#allocation4], 1
    %5944 = vsyncpa %s5943, 1

</llo_original>
